<compile_context>
chip_gen: v5e
topology: v5e:2x2
jax: 0.10.0
libtpu: 0.0.40
codegen_flags: <defaults>
</compile_context>

<pallas_src>
import jax
import jax.numpy as jnp
from jax import lax
from jax.experimental import pallas as pl
from jax.experimental.pallas import tpu as pltpu


def basic_block_kernel(xc_ref, xtop_ref, xbot_ref,
                       w1_ref, s1_ref, b1_ref, w2_ref, s2_ref, b2_ref,
                       out_ref, xbuf, mid):
    # xc_ref:   (1, TH, W, C)  main row block of x (bf16) -- also the residual
    # xtop_ref: (1, 2, W, C)   two rows above the block (clamped at the top edge)
    # xbot_ref: (1, 2, W, C)   two rows below the block (clamped at the bottom)
    # w*_ref:   (3, 3*C, C)    per-kh weights, K laid out as (kw, cin) (bf16)
    # s*/b*:    (1, C)         folded BN scale / bias (f32)
    # out_ref:  (1, TH, W, C)  f32
    # xbuf:     (TH+4, W+2, C) bf16 scratch: zero-padded input row window
    # mid:      (TH+2, W+2, C) bf16 scratch: zero-padded conv1 output rows
    TH, W, C = out_ref.shape[1], out_ref.shape[2], out_ref.shape[3]
    R1 = TH + 2

    i = pl.program_id(1)
    nH = pl.num_programs(1)
    H = nH * TH

    # Zero the scratch buffers once per image.  Only the halo (padding) rows /
    # columns need to stay zero; the interior is fully overwritten every step.
    @pl.when(i == 0)
    def _init():
        xbuf[...] = jnp.zeros(xbuf.shape, xbuf.dtype)
        mid[...] = jnp.zeros(mid.shape, mid.dtype)

    # Assemble x rows [i*TH-2, i*TH+TH+2) (zeros outside [0, H)) into xbuf.
    top_keep = jnp.where(i == 0, 0.0, 1.0).astype(xbuf.dtype)
    bot_keep = jnp.where(i == nH - 1, 0.0, 1.0).astype(xbuf.dtype)
    xbuf[0:2, 1:W + 1, :] = xtop_ref[0] * top_keep
    xbuf[2:TH + 2, 1:W + 1, :] = xc_ref[0]
    xbuf[TH + 2:TH + 4, 1:W + 1, :] = xbot_ref[0] * bot_keep

    x = xbuf[...]                                       # (TH+4, W+2, C)

    # ---- conv1 over TH+2 output rows (global rows i*TH-1 .. i*TH+TH) ----
    # kw taps merged along K: 3 matmuls with K = 3*C, f32 accumulation.
    acc1 = jnp.zeros((R1 * W, C), jnp.float32)
    for kh in range(3):
        rows = x[kh:kh + R1]                            # (R1, W+2, C)
        patch = jnp.concatenate(
            [rows[:, 0:W, :].reshape(R1 * W, C),
             rows[:, 1:W + 1, :].reshape(R1 * W, C),
             rows[:, 2:W + 2, :].reshape(R1 * W, C)], axis=1)
        acc1 += jnp.dot(patch, w1_ref[kh], preferred_element_type=jnp.float32)
    y = jnp.maximum(acc1 * s1_ref[...] + b1_ref[...], 0.0).reshape(R1, W, C)
    # Rows at global index -1 / H are conv2's zero padding, not conv1 outputs.
    g = i * TH - 1 + lax.broadcasted_iota(jnp.int32, (R1, 1, 1), 0)
    y = y * ((g >= 0) & (g < H)).astype(jnp.float32)
    mid[:, 1:W + 1, :] = y.astype(mid.dtype)

    # ---- conv2 over the TH output rows, fused BN2 + residual + ReLU ----
    m = mid[...]                                        # (TH+2, W+2, C)
    acc2 = jnp.zeros((TH * W, C), jnp.float32)
    for kh in range(3):
        rows = m[kh:kh + TH]                            # (TH, W+2, C)
        patch = jnp.concatenate(
            [rows[:, 0:W, :].reshape(TH * W, C),
             rows[:, 1:W + 1, :].reshape(TH * W, C),
             rows[:, 2:W + 2, :].reshape(TH * W, C)], axis=1)
        acc2 += jnp.dot(patch, w2_ref[kh], preferred_element_type=jnp.float32)
    z = (acc2 * s2_ref[...] + b2_ref[...]).reshape(TH, W, C)
    z = z + xc_ref[0].astype(jnp.float32)               # residual, already in VMEM
    out_ref[0] = jnp.maximum(z, 0.0).astype(out_ref.dtype)


def _fold_bn(gamma, beta, mean, var, eps=1e-5):
    scale = gamma.astype(jnp.float32) / jnp.sqrt(var.astype(jnp.float32) + eps)
    bias = beta.astype(jnp.float32) - mean.astype(jnp.float32) * scale
    return scale.reshape(1, -1), bias.reshape(1, -1)


def _pick_row_tile(H):
    for t in (32, 16, 8):
        if H % t == 0 and H // t >= 2:
            return t
    return H


def basic_block_pallas(x_nchw, w1_oihw, bn1, w2_oihw, bn2, eps=1e-5):
    """BasicBlock forward: x_nchw (B, Cin, H, W) -> (B, Cout, H, W), float32."""
    x = jnp.transpose(x_nchw, (0, 2, 3, 1))             # NHWC
    B, H, W, Cin = x.shape
    Cout = w1_oihw.shape[0]
    assert Cin == Cout, "residual=None path requires inplanes == planes"

    TH = _pick_row_tile(H)
    nH = H // TH
    assert nH == 1 or (TH % 2 == 0 and H % 2 == 0)
    th2 = TH // 2
    nhb = max(H // 2, 1)                                # number of 2-row halo blocks

    # bf16 matmul operands (2x MXU rate, half the HBM/VMEM traffic); all
    # accumulation / BN / residual / ReLU math stays f32 inside the kernel.
    xb = x.astype(jnp.bfloat16)
    # OIHW -> (kh, kw, cin, cout) -> (3, 3*Cin, Cout): K is (kw, cin), kw-major.
    w1 = jnp.transpose(w1_oihw, (2, 3, 1, 0)).reshape(3, 3 * Cin, Cout).astype(jnp.bfloat16)
    w2 = jnp.transpose(w2_oihw, (2, 3, 1, 0)).reshape(3, 3 * Cout, Cout).astype(jnp.bfloat16)
    s1, b1 = _fold_bn(*bn1, eps=eps)
    s2, b2 = _fold_bn(*bn2, eps=eps)

    grid_spec = pltpu.PrefetchScalarGridSpec(
        num_scalar_prefetch=0,
        grid=(B, nH),
        in_specs=[
            # main rows of x (reused as the residual inside the kernel)
            pl.BlockSpec((1, TH, W, Cin), lambda b, i: (b, i, 0, 0)),
            # 2-row halos above / below (clamped at the image edges; masked in-kernel)
            pl.BlockSpec((1, 2, W, Cin),
                         lambda b, i: (b, jnp.maximum(i * th2 - 1, 0), 0, 0)),
            pl.BlockSpec((1, 2, W, Cin),
                         lambda b, i: (b, jnp.minimum(i * th2 + th2, nhb - 1), 0, 0)),
            pl.BlockSpec((3, 3 * Cin, Cout), lambda b, i: (0, 0, 0)),
            pl.BlockSpec((1, Cout), lambda b, i: (0, 0)),
            pl.BlockSpec((1, Cout), lambda b, i: (0, 0)),
            pl.BlockSpec((3, 3 * Cout, Cout), lambda b, i: (0, 0, 0)),
            pl.BlockSpec((1, Cout), lambda b, i: (0, 0)),
            pl.BlockSpec((1, Cout), lambda b, i: (0, 0)),
        ],
        out_specs=pl.BlockSpec((1, TH, W, Cout), lambda b, i: (b, i, 0, 0)),
        scratch_shapes=[
            pltpu.VMEM((TH + 4, W + 2, Cin), jnp.bfloat16),   # padded x row window
            pltpu.VMEM((TH + 2, W + 2, Cout), jnp.bfloat16),  # padded conv1 output
        ],
    )

    out_nhwc = pl.pallas_call(
        basic_block_kernel,
        out_shape=jax.ShapeDtypeStruct((B, H, W, Cout), jnp.float32),
        grid_spec=grid_spec,
        compiler_params=pltpu.CompilerParams(
            dimension_semantics=("parallel", "arbitrary"),
            vmem_limit_bytes=64 * 1024 * 1024,
        ),
    )(xb, xb, xb, w1, s1, b1, w2, s2, b2)

    return jnp.transpose(out_nhwc, (0, 3, 1, 2))         # back to NCHW


def basic_block_reference(x_nchw, w1_oihw, bn1, w2_oihw, bn2, eps=1e-5,
                          match_bf16=True):
    """Pure-JAX reference (PyTorch inference semantics; optional bf16 matmul
    inputs with f32 accumulation, matching the kernel's precision)."""
    x = jnp.transpose(x_nchw, (0, 2, 3, 1)).astype(jnp.float32)
    w1 = jnp.transpose(w1_oihw, (2, 3, 1, 0)).astype(jnp.float32)
    w2 = jnp.transpose(w2_oihw, (2, 3, 1, 0)).astype(jnp.float32)
    s1, b1 = _fold_bn(*bn1, eps=eps)
    s2, b2 = _fold_bn(*bn2, eps=eps)
    dn = ('NHWC', 'HWIO', 'NHWC')
    if match_bf16:
        xc, w1c, w2c = (x.astype(jnp.bfloat16), w1.astype(jnp.bfloat16),
                        w2.astype(jnp.bfloat16))
    else:
        xc, w1c, w2c = x, w1, w2
    y = lax.conv_general_dilated(xc, w1c, (1, 1), 'SAME', dimension_numbers=dn,
                                 preferred_element_type=jnp.float32)
    y = jnp.maximum(y * s1 + b1, 0.0)
    yc = y.astype(jnp.bfloat16) if match_bf16 else y
    z = lax.conv_general_dilated(yc, w2c, (1, 1), 'SAME', dimension_numbers=dn,
                                 preferred_element_type=jnp.float32)
    res = xc.astype(jnp.float32) if match_bf16 else x
    z = jnp.maximum(z * s2 + b2 + res, 0.0)
    return jnp.transpose(z, (0, 3, 1, 2))


def _make_inputs(B, C, Hdim, Wdim, seed=0):
    key = jax.random.PRNGKey(seed)
    ks = jax.random.split(key, 11)
    x = jax.random.normal(ks[0], (B, C, Hdim, Wdim), jnp.float32)
    w1 = jax.random.normal(ks[1], (C, C, 3, 3), jnp.float32) * 0.1   # OIHW, bias=False
    w2 = jax.random.normal(ks[2], (C, C, 3, 3), jnp.float32) * 0.1
    bn1 = (jax.random.normal(ks[3], (C,)) * 0.1 + 1.0,               # gamma
           jax.random.normal(ks[4], (C,)) * 0.1,                     # beta
           jax.random.normal(ks[5], (C,)) * 0.1,                     # running_mean
           jnp.abs(jax.random.normal(ks[6], (C,))) * 0.1 + 0.9)      # running_var
    bn2 = (jax.random.normal(ks[7], (C,)) * 0.1 + 1.0,
           jax.random.normal(ks[8], (C,)) * 0.1,
           jax.random.normal(ks[9], (C,)) * 0.1,
           jnp.abs(jax.random.normal(ks[10], (C,))) * 0.1 + 0.9)
    return x, w1, bn1, w2, bn2


if __name__ == "__main__":
    fwd = jax.jit(basic_block_pallas)

    # shape 1: B=2, C=4, 16x16 -> TH=8, two row tiles (both image edges).
    # shape 2: B=1, C=4, 24x16 -> three row tiles, exercises an interior tile.
    for (B, C, Hdim, Wdim) in ((2, 4, 16, 16), (1, 4, 24, 16)):
        x, w1, bn1, w2, bn2 = _make_inputs(B, C, Hdim, Wdim, seed=0)
        out = fwd(x, w1, bn1, w2, bn2)
        out = jax.block_until_ready(out)
        assert out.shape == (B, C, Hdim, Wdim)

        ref_m = basic_block_reference(x, w1, bn1, w2, bn2, match_bf16=True)
        err_m = float(jnp.max(jnp.abs(out - ref_m)))
        assert jnp.allclose(out, ref_m, atol=1e-3, rtol=1e-3), \
            f"shape {(B, C, Hdim, Wdim)}: max err vs precision-matched ref {err_m}"

        ref_f = basic_block_reference(x, w1, bn1, w2, bn2, match_bf16=False)
        err_f = float(jnp.max(jnp.abs(out - ref_f)))
        assert jnp.allclose(out, ref_f, atol=5e-2, rtol=5e-2), \
            f"shape {(B, C, Hdim, Wdim)}: max err vs f32 ref {err_f}"

    print("KERNEL_OK")
</pallas_src>

<mosaic_0001>
module attributes {stable_mosaic.version = 11 : i64} {
  func.func @basic_block_kernel(%arg0: i32, %arg1: i32, %arg2: memref<1x8x16x4xbf16, #tpu.memory_space<vmem>>, %arg3: memref<1x2x16x4xbf16, #tpu.memory_space<vmem>>, %arg4: memref<1x2x16x4xbf16, #tpu.memory_space<vmem>>, %arg5: memref<3x12x4xbf16, #tpu.memory_space<vmem>>, %arg6: memref<1x4xf32, #tpu.memory_space<vmem>>, %arg7: memref<1x4xf32, #tpu.memory_space<vmem>>, %arg8: memref<3x12x4xbf16, #tpu.memory_space<vmem>>, %arg9: memref<1x4xf32, #tpu.memory_space<vmem>>, %arg10: memref<1x4xf32, #tpu.memory_space<vmem>>, %arg11: memref<1x8x16x4xf32, #tpu.memory_space<vmem>>, %arg12: memref<12x18x4xbf16, #tpu.memory_space<vmem>>, %arg13: memref<10x18x4xbf16, #tpu.memory_space<vmem>>) attributes {dimension_semantics = [#tpu.dimension_semantics<parallel>, #tpu.dimension_semantics<arbitrary>], iteration_bounds = array<i64: 2, 2>, scalar_prefetch = 0 : i64, scratch_operands = 2 : i64, tpu.core_type = #tpu.core_type<tc>, window_params = [{transform_indices = @transform_0, window_bounds = array<i64: 1, 8, 16, 4>}, {transform_indices = @transform_1, window_bounds = array<i64: 1, 2, 16, 4>}, {transform_indices = @transform_2, window_bounds = array<i64: 1, 2, 16, 4>}, {pipeline_mode = #tpu.pipeline_mode<synchronous>, transform_indices = @transform_3, window_bounds = array<i64: 3, 12, 4>}, {pipeline_mode = #tpu.pipeline_mode<synchronous>, transform_indices = @transform_4, window_bounds = array<i64: 1, 4>}, {pipeline_mode = #tpu.pipeline_mode<synchronous>, transform_indices = @transform_5, window_bounds = array<i64: 1, 4>}, {pipeline_mode = #tpu.pipeline_mode<synchronous>, transform_indices = @transform_6, window_bounds = array<i64: 3, 12, 4>}, {pipeline_mode = #tpu.pipeline_mode<synchronous>, transform_indices = @transform_7, window_bounds = array<i64: 1, 4>}, {pipeline_mode = #tpu.pipeline_mode<synchronous>, transform_indices = @transform_8, window_bounds = array<i64: 1, 4>}, {transform_indices = @transform_9, window_bounds = array<i64: 1, 8, 16, 4>}]} {
    %c0_i32 = arith.constant 0 : i32
    %0 = arith.cmpi eq, %arg1, %c0_i32 : i32
    %1 = arith.extui %0 : i1 to i32
    %c0_i32_0 = arith.constant 0 : i32
    %2 = arith.cmpi ne, %1, %c0_i32_0 : i32
    scf.if %2 {
      %cst_77 = arith.constant 0.000000e+00 : bf16
      %139 = vector.broadcast %cst_77 : bf16 to vector<12x18x4xbf16>
      %c0_78 = arith.constant 0 : index
      %c0_79 = arith.constant 0 : index
      %c0_80 = arith.constant 0 : index
      %140 = vector.load %arg12[%c0_78, %c0_79, %c0_80] : memref<12x18x4xbf16, #tpu.memory_space<vmem>>, vector<12x18x4xbf16>
      tpu.vector_store %arg12[%c0_78, %c0_79, %c0_80], %139 {strides = array<i32>} : memref<12x18x4xbf16, #tpu.memory_space<vmem>>, vector<12x18x4xbf16>,
      %cst_81 = arith.constant 0.000000e+00 : bf16
      %141 = vector.broadcast %cst_81 : bf16 to vector<10x18x4xbf16>
      %c0_82 = arith.constant 0 : index
      %c0_83 = arith.constant 0 : index
      %c0_84 = arith.constant 0 : index
      %142 = vector.load %arg13[%c0_82, %c0_83, %c0_84] : memref<10x18x4xbf16, #tpu.memory_space<vmem>>, vector<10x18x4xbf16>
      tpu.vector_store %arg13[%c0_82, %c0_83, %c0_84], %141 {strides = array<i32>} : memref<10x18x4xbf16, #tpu.memory_space<vmem>>, vector<10x18x4xbf16>,
    } else {
    }
    %c0_i32_1 = arith.constant 0 : i32
    %3 = arith.cmpi eq, %arg1, %c0_i32_1 : i32
    %cst = arith.constant 0.000000e+00 : f32
    %cst_2 = arith.constant 1.000000e+00 : f32
    %4 = arith.select %3, %cst, %cst_2 : f32
    %5 = arith.truncf %4 : f32 to bf16
    %c1_i32 = arith.constant 1 : i32
    %6 = arith.cmpi eq, %arg1, %c1_i32 : i32
    %cst_3 = arith.constant 0.000000e+00 : f32
    %cst_4 = arith.constant 1.000000e+00 : f32
    %7 = arith.select %6, %cst_3, %cst_4 : f32
    %8 = arith.truncf %7 : f32 to bf16
    %c0 = arith.constant 0 : index
    %c0_5 = arith.constant 0 : index
    %c0_6 = arith.constant 0 : index
    %c0_7 = arith.constant 0 : index
    %9 = vector.load %arg3[%c0, %c0_5, %c0_6, %c0_7] : memref<1x2x16x4xbf16, #tpu.memory_space<vmem>>, vector<1x2x16x4xbf16>
    %10 = vector.shape_cast %9 : vector<1x2x16x4xbf16> to vector<2x16x4xbf16>
    %11 = vector.broadcast %5 : bf16 to vector<2x16x4xbf16>
    %12 = arith.mulf %10, %11 : vector<2x16x4xbf16>
    %c0_8 = arith.constant 0 : index
    %c1 = arith.constant 1 : index
    %c0_9 = arith.constant 0 : index
    %13 = vector.load %arg12[%c0_8, %c1, %c0_9] : memref<12x18x4xbf16, #tpu.memory_space<vmem>>, vector<2x16x4xbf16>
    tpu.vector_store %arg12[%c0_8, %c1, %c0_9], %12 {strides = array<i32>} : memref<12x18x4xbf16, #tpu.memory_space<vmem>>, vector<2x16x4xbf16>,
    %c0_10 = arith.constant 0 : index
    %c0_11 = arith.constant 0 : index
    %c0_12 = arith.constant 0 : index
    %c0_13 = arith.constant 0 : index
    %14 = vector.load %arg2[%c0_10, %c0_11, %c0_12, %c0_13] : memref<1x8x16x4xbf16, #tpu.memory_space<vmem>>, vector<1x8x16x4xbf16>
    %15 = vector.shape_cast %14 : vector<1x8x16x4xbf16> to vector<8x16x4xbf16>
    %c2 = arith.constant 2 : index
    %c1_14 = arith.constant 1 : index
    %c0_15 = arith.constant 0 : index
    %16 = vector.load %arg12[%c2, %c1_14, %c0_15] : memref<12x18x4xbf16, #tpu.memory_space<vmem>>, vector<8x16x4xbf16>
    tpu.vector_store %arg12[%c2, %c1_14, %c0_15], %15 {strides = array<i32>} : memref<12x18x4xbf16, #tpu.memory_space<vmem>>, vector<8x16x4xbf16>,
    %c0_16 = arith.constant 0 : index
    %c0_17 = arith.constant 0 : index
    %c0_18 = arith.constant 0 : index
    %c0_19 = arith.constant 0 : index
    %17 = vector.load %arg4[%c0_16, %c0_17, %c0_18, %c0_19] : memref<1x2x16x4xbf16, #tpu.memory_space<vmem>>, vector<1x2x16x4xbf16>
    %18 = vector.shape_cast %17 : vector<1x2x16x4xbf16> to vector<2x16x4xbf16>
    %19 = vector.broadcast %8 : bf16 to vector<2x16x4xbf16>
    %20 = arith.mulf %18, %19 : vector<2x16x4xbf16>
    %c10 = arith.constant 10 : index
    %c1_20 = arith.constant 1 : index
    %c0_21 = arith.constant 0 : index
    %21 = vector.load %arg12[%c10, %c1_20, %c0_21] : memref<12x18x4xbf16, #tpu.memory_space<vmem>>, vector<2x16x4xbf16>
    tpu.vector_store %arg12[%c10, %c1_20, %c0_21], %20 {strides = array<i32>} : memref<12x18x4xbf16, #tpu.memory_space<vmem>>, vector<2x16x4xbf16>,
    %c0_22 = arith.constant 0 : index
    %c0_23 = arith.constant 0 : index
    %c0_24 = arith.constant 0 : index
    %22 = vector.load %arg12[%c0_22, %c0_23, %c0_24] : memref<12x18x4xbf16, #tpu.memory_space<vmem>>, vector<12x18x4xbf16>
    %cst_25 = arith.constant 0.000000e+00 : f32
    %23 = vector.broadcast %cst_25 : f32 to vector<160x4xf32>
    %24 = vector.extract_strided_slice %22 {offsets = [0, 0, 0], sizes = [10, 18, 4], strides = [1, 1, 1]} : vector<12x18x4xbf16> to vector<10x18x4xbf16>
    %25 = vector.extract_strided_slice %24 {offsets = [0, 0, 0], sizes = [10, 16, 4], strides = [1, 1, 1]} : vector<10x18x4xbf16> to vector<10x16x4xbf16>
    %26 = vector.shape_cast %25 : vector<10x16x4xbf16> to vector<160x4xbf16>
    %27 = vector.extract_strided_slice %24 {offsets = [0, 1, 0], sizes = [10, 16, 4], strides = [1, 1, 1]} : vector<10x18x4xbf16> to vector<10x16x4xbf16>
    %28 = vector.shape_cast %27 : vector<10x16x4xbf16> to vector<160x4xbf16>
    %29 = vector.extract_strided_slice %24 {offsets = [0, 2, 0], sizes = [10, 16, 4], strides = [1, 1, 1]} : vector<10x18x4xbf16> to vector<10x16x4xbf16>
    %30 = vector.shape_cast %29 : vector<10x16x4xbf16> to vector<160x4xbf16>
    %31 = tpu.concatenate %26, %28, %30 in 1 : vector<160x4xbf16>, vector<160x4xbf16>, vector<160x4xbf16> -> vector<160x12xbf16>
    %c0_26 = arith.constant 0 : index
    %c0_27 = arith.constant 0 : index
    %c0_28 = arith.constant 0 : index
    %32 = vector.load %arg5[%c0_26, %c0_27, %c0_28] : memref<3x12x4xbf16, #tpu.memory_space<vmem>>, vector<1x12x4xbf16>
    %33 = vector.shape_cast %32 : vector<1x12x4xbf16> to vector<12x4xbf16>
    %cst_29 = arith.constant dense<0.000000e+00> : vector<160x4xf32>
    %34 = tpu.matmul %31, %33, %cst_29 {dimension_numbers = #tpu.dot_dimension_numbers<[1], [0], [0], [1], [0, 0, 1, 1], [], []>} : vector<160x12xbf16>, vector<12x4xbf16>, vector<160x4xf32> -> vector<160x4xf32>
    %35 = arith.addf %23, %34 : vector<160x4xf32>
    %36 = vector.extract_strided_slice %22 {offsets = [1, 0, 0], sizes = [10, 18, 4], strides = [1, 1, 1]} : vector<12x18x4xbf16> to vector<10x18x4xbf16>
    %37 = vector.extract_strided_slice %36 {offsets = [0, 0, 0], sizes = [10, 16, 4], strides = [1, 1, 1]} : vector<10x18x4xbf16> to vector<10x16x4xbf16>
    %38 = vector.shape_cast %37 : vector<10x16x4xbf16> to vector<160x4xbf16>
    %39 = vector.extract_strided_slice %36 {offsets = [0, 1, 0], sizes = [10, 16, 4], strides = [1, 1, 1]} : vector<10x18x4xbf16> to vector<10x16x4xbf16>
    %40 = vector.shape_cast %39 : vector<10x16x4xbf16> to vector<160x4xbf16>
    %41 = vector.extract_strided_slice %36 {offsets = [0, 2, 0], sizes = [10, 16, 4], strides = [1, 1, 1]} : vector<10x18x4xbf16> to vector<10x16x4xbf16>
    %42 = vector.shape_cast %41 : vector<10x16x4xbf16> to vector<160x4xbf16>
    %43 = tpu.concatenate %38, %40, %42 in 1 : vector<160x4xbf16>, vector<160x4xbf16>, vector<160x4xbf16> -> vector<160x12xbf16>
    %c1_30 = arith.constant 1 : index
    %c0_31 = arith.constant 0 : index
    %c0_32 = arith.constant 0 : index
    %44 = vector.load %arg5[%c1_30, %c0_31, %c0_32] : memref<3x12x4xbf16, #tpu.memory_space<vmem>>, vector<1x12x4xbf16>
    %45 = vector.shape_cast %44 : vector<1x12x4xbf16> to vector<12x4xbf16>
    %cst_33 = arith.constant dense<0.000000e+00> : vector<160x4xf32>
    %46 = tpu.matmul %43, %45, %cst_33 {dimension_numbers = #tpu.dot_dimension_numbers<[1], [0], [0], [1], [0, 0, 1, 1], [], []>} : vector<160x12xbf16>, vector<12x4xbf16>, vector<160x4xf32> -> vector<160x4xf32>
    %47 = arith.addf %35, %46 : vector<160x4xf32>
    %48 = vector.extract_strided_slice %22 {offsets = [2, 0, 0], sizes = [10, 18, 4], strides = [1, 1, 1]} : vector<12x18x4xbf16> to vector<10x18x4xbf16>
    %49 = vector.extract_strided_slice %48 {offsets = [0, 0, 0], sizes = [10, 16, 4], strides = [1, 1, 1]} : vector<10x18x4xbf16> to vector<10x16x4xbf16>
    %50 = vector.shape_cast %49 : vector<10x16x4xbf16> to vector<160x4xbf16>
    %51 = vector.extract_strided_slice %48 {offsets = [0, 1, 0], sizes = [10, 16, 4], strides = [1, 1, 1]} : vector<10x18x4xbf16> to vector<10x16x4xbf16>
    %52 = vector.shape_cast %51 : vector<10x16x4xbf16> to vector<160x4xbf16>
    %53 = vector.extract_strided_slice %48 {offsets = [0, 2, 0], sizes = [10, 16, 4], strides = [1, 1, 1]} : vector<10x18x4xbf16> to vector<10x16x4xbf16>
    %54 = vector.shape_cast %53 : vector<10x16x4xbf16> to vector<160x4xbf16>
    %55 = tpu.concatenate %50, %52, %54 in 1 : vector<160x4xbf16>, vector<160x4xbf16>, vector<160x4xbf16> -> vector<160x12xbf16>
    %c2_34 = arith.constant 2 : index
    %c0_35 = arith.constant 0 : index
    %c0_36 = arith.constant 0 : index
    %56 = vector.load %arg5[%c2_34, %c0_35, %c0_36] : memref<3x12x4xbf16, #tpu.memory_space<vmem>>, vector<1x12x4xbf16>
    %57 = vector.shape_cast %56 : vector<1x12x4xbf16> to vector<12x4xbf16>
    %cst_37 = arith.constant dense<0.000000e+00> : vector<160x4xf32>
    %58 = tpu.matmul %55, %57, %cst_37 {dimension_numbers = #tpu.dot_dimension_numbers<[1], [0], [0], [1], [0, 0, 1, 1], [], []>} : vector<160x12xbf16>, vector<12x4xbf16>, vector<160x4xf32> -> vector<160x4xf32>
    %59 = arith.addf %47, %58 : vector<160x4xf32>
    %c0_38 = arith.constant 0 : index
    %c0_39 = arith.constant 0 : index
    %60 = vector.load %arg6[%c0_38, %c0_39] : memref<1x4xf32, #tpu.memory_space<vmem>>, vector<1x4xf32>
    %61 = vector.broadcast %60 : vector<1x4xf32> to vector<160x4xf32>
    %62 = arith.mulf %59, %61 : vector<160x4xf32>
    %c0_40 = arith.constant 0 : index
    %c0_41 = arith.constant 0 : index
    %63 = vector.load %arg7[%c0_40, %c0_41] : memref<1x4xf32, #tpu.memory_space<vmem>>, vector<1x4xf32>
    %64 = vector.broadcast %63 : vector<1x4xf32> to vector<160x4xf32>
    %65 = arith.addf %62, %64 : vector<160x4xf32>
    %cst_42 = arith.constant 0.000000e+00 : f32
    %66 = vector.broadcast %cst_42 : f32 to vector<160x4xf32>
    %67 = arith.maximumf %65, %66 : vector<160x4xf32>
    %68 = vector.shape_cast %67 : vector<160x4xf32> to vector<10x16x4xf32>
    %c8_i32 = arith.constant 8 : i32
    %69 = arith.muli %arg1, %c8_i32 : i32
    %c1_i32_43 = arith.constant 1 : i32
    %70 = arith.subi %69, %c1_i32_43 : i32
    %71 = tpu.iota {dimensions = array<i32: 0>} : vector<10x1x1xi32>
    %72 = vector.broadcast %70 : i32 to vector<10x1x1xi32>
    %73 = arith.addi %72, %71 : vector<10x1x1xi32>
    %c0_i32_44 = arith.constant 0 : i32
    %74 = vector.broadcast %c0_i32_44 : i32 to vector<10x1x1xi32>
    %75 = arith.cmpi sge, %73, %74 : vector<10x1x1xi32>
    %c16_i32 = arith.constant 16 : i32
    %76 = vector.broadcast %c16_i32 : i32 to vector<10x1x1xi32>
    %77 = arith.cmpi slt, %73, %76 : vector<10x1x1xi32>
    %78 = arith.andi %75, %77 : vector<10x1x1xi1>
    %79 = arith.extui %78 : vector<10x1x1xi1> to vector<10x1x1xi32>
    %80 = arith.sitofp %79 : vector<10x1x1xi32> to vector<10x1x1xf32>
    %81 = vector.broadcast %80 : vector<10x1x1xf32> to vector<10x16x4xf32>
    %82 = arith.mulf %68, %81 : vector<10x16x4xf32>
    %83 = arith.truncf %82 : vector<10x16x4xf32> to vector<10x16x4xbf16>
    %c0_45 = arith.constant 0 : index
    %c1_46 = arith.constant 1 : index
    %c0_47 = arith.constant 0 : index
    %84 = vector.load %arg13[%c0_45, %c1_46, %c0_47] : memref<10x18x4xbf16, #tpu.memory_space<vmem>>, vector<10x16x4xbf16>
    tpu.vector_store %arg13[%c0_45, %c1_46, %c0_47], %83 {strides = array<i32>} : memref<10x18x4xbf16, #tpu.memory_space<vmem>>, vector<10x16x4xbf16>,
    %c0_48 = arith.constant 0 : index
    %c0_49 = arith.constant 0 : index
    %c0_50 = arith.constant 0 : index
    %85 = vector.load %arg13[%c0_48, %c0_49, %c0_50] : memref<10x18x4xbf16, #tpu.memory_space<vmem>>, vector<10x18x4xbf16>
    %cst_51 = arith.constant 0.000000e+00 : f32
    %86 = vector.broadcast %cst_51 : f32 to vector<128x4xf32>
    %87 = vector.extract_strided_slice %85 {offsets = [0, 0, 0], sizes = [8, 18, 4], strides = [1, 1, 1]} : vector<10x18x4xbf16> to vector<8x18x4xbf16>
    %88 = vector.extract_strided_slice %87 {offsets = [0, 0, 0], sizes = [8, 16, 4], strides = [1, 1, 1]} : vector<8x18x4xbf16> to vector<8x16x4xbf16>
    %89 = vector.shape_cast %88 : vector<8x16x4xbf16> to vector<128x4xbf16>
    %90 = vector.extract_strided_slice %87 {offsets = [0, 1, 0], sizes = [8, 16, 4], strides = [1, 1, 1]} : vector<8x18x4xbf16> to vector<8x16x4xbf16>
    %91 = vector.shape_cast %90 : vector<8x16x4xbf16> to vector<128x4xbf16>
    %92 = vector.extract_strided_slice %87 {offsets = [0, 2, 0], sizes = [8, 16, 4], strides = [1, 1, 1]} : vector<8x18x4xbf16> to vector<8x16x4xbf16>
    %93 = vector.shape_cast %92 : vector<8x16x4xbf16> to vector<128x4xbf16>
    %94 = tpu.concatenate %89, %91, %93 in 1 : vector<128x4xbf16>, vector<128x4xbf16>, vector<128x4xbf16> -> vector<128x12xbf16>
    %c0_52 = arith.constant 0 : index
    %c0_53 = arith.constant 0 : index
    %c0_54 = arith.constant 0 : index
    %95 = vector.load %arg8[%c0_52, %c0_53, %c0_54] : memref<3x12x4xbf16, #tpu.memory_space<vmem>>, vector<1x12x4xbf16>
    %96 = vector.shape_cast %95 : vector<1x12x4xbf16> to vector<12x4xbf16>
    %cst_55 = arith.constant dense<0.000000e+00> : vector<128x4xf32>
    %97 = tpu.matmul %94, %96, %cst_55 {dimension_numbers = #tpu.dot_dimension_numbers<[1], [0], [0], [1], [0, 0, 1, 1], [], []>} : vector<128x12xbf16>, vector<12x4xbf16>, vector<128x4xf32> -> vector<128x4xf32>
    %98 = arith.addf %86, %97 : vector<128x4xf32>
    %99 = vector.extract_strided_slice %85 {offsets = [1, 0, 0], sizes = [8, 18, 4], strides = [1, 1, 1]} : vector<10x18x4xbf16> to vector<8x18x4xbf16>
    %100 = vector.extract_strided_slice %99 {offsets = [0, 0, 0], sizes = [8, 16, 4], strides = [1, 1, 1]} : vector<8x18x4xbf16> to vector<8x16x4xbf16>
    %101 = vector.shape_cast %100 : vector<8x16x4xbf16> to vector<128x4xbf16>
    %102 = vector.extract_strided_slice %99 {offsets = [0, 1, 0], sizes = [8, 16, 4], strides = [1, 1, 1]} : vector<8x18x4xbf16> to vector<8x16x4xbf16>
    %103 = vector.shape_cast %102 : vector<8x16x4xbf16> to vector<128x4xbf16>
    %104 = vector.extract_strided_slice %99 {offsets = [0, 2, 0], sizes = [8, 16, 4], strides = [1, 1, 1]} : vector<8x18x4xbf16> to vector<8x16x4xbf16>
    %105 = vector.shape_cast %104 : vector<8x16x4xbf16> to vector<128x4xbf16>
    %106 = tpu.concatenate %101, %103, %105 in 1 : vector<128x4xbf16>, vector<128x4xbf16>, vector<128x4xbf16> -> vector<128x12xbf16>
    %c1_56 = arith.constant 1 : index
    %c0_57 = arith.constant 0 : index
    %c0_58 = arith.constant 0 : index
    %107 = vector.load %arg8[%c1_56, %c0_57, %c0_58] : memref<3x12x4xbf16, #tpu.memory_space<vmem>>, vector<1x12x4xbf16>
    %108 = vector.shape_cast %107 : vector<1x12x4xbf16> to vector<12x4xbf16>
    %cst_59 = arith.constant dense<0.000000e+00> : vector<128x4xf32>
    %109 = tpu.matmul %106, %108, %cst_59 {dimension_numbers = #tpu.dot_dimension_numbers<[1], [0], [0], [1], [0, 0, 1, 1], [], []>} : vector<128x12xbf16>, vector<12x4xbf16>, vector<128x4xf32> -> vector<128x4xf32>
    %110 = arith.addf %98, %109 : vector<128x4xf32>
    %111 = vector.extract_strided_slice %85 {offsets = [2, 0, 0], sizes = [8, 18, 4], strides = [1, 1, 1]} : vector<10x18x4xbf16> to vector<8x18x4xbf16>
    %112 = vector.extract_strided_slice %111 {offsets = [0, 0, 0], sizes = [8, 16, 4], strides = [1, 1, 1]} : vector<8x18x4xbf16> to vector<8x16x4xbf16>
    %113 = vector.shape_cast %112 : vector<8x16x4xbf16> to vector<128x4xbf16>
    %114 = vector.extract_strided_slice %111 {offsets = [0, 1, 0], sizes = [8, 16, 4], strides = [1, 1, 1]} : vector<8x18x4xbf16> to vector<8x16x4xbf16>
    %115 = vector.shape_cast %114 : vector<8x16x4xbf16> to vector<128x4xbf16>
    %116 = vector.extract_strided_slice %111 {offsets = [0, 2, 0], sizes = [8, 16, 4], strides = [1, 1, 1]} : vector<8x18x4xbf16> to vector<8x16x4xbf16>
    %117 = vector.shape_cast %116 : vector<8x16x4xbf16> to vector<128x4xbf16>
    %118 = tpu.concatenate %113, %115, %117 in 1 : vector<128x4xbf16>, vector<128x4xbf16>, vector<128x4xbf16> -> vector<128x12xbf16>
    %c2_60 = arith.constant 2 : index
    %c0_61 = arith.constant 0 : index
    %c0_62 = arith.constant 0 : index
    %119 = vector.load %arg8[%c2_60, %c0_61, %c0_62] : memref<3x12x4xbf16, #tpu.memory_space<vmem>>, vector<1x12x4xbf16>
    %120 = vector.shape_cast %119 : vector<1x12x4xbf16> to vector<12x4xbf16>
    %cst_63 = arith.constant dense<0.000000e+00> : vector<128x4xf32>
    %121 = tpu.matmul %118, %120, %cst_63 {dimension_numbers = #tpu.dot_dimension_numbers<[1], [0], [0], [1], [0, 0, 1, 1], [], []>} : vector<128x12xbf16>, vector<12x4xbf16>, vector<128x4xf32> -> vector<128x4xf32>
    %122 = arith.addf %110, %121 : vector<128x4xf32>
    %c0_64 = arith.constant 0 : index
    %c0_65 = arith.constant 0 : index
    %123 = vector.load %arg9[%c0_64, %c0_65] : memref<1x4xf32, #tpu.memory_space<vmem>>, vector<1x4xf32>
    %124 = vector.broadcast %123 : vector<1x4xf32> to vector<128x4xf32>
    %125 = arith.mulf %122, %124 : vector<128x4xf32>
    %c0_66 = arith.constant 0 : index
    %c0_67 = arith.constant 0 : index
    %126 = vector.load %arg10[%c0_66, %c0_67] : memref<1x4xf32, #tpu.memory_space<vmem>>, vector<1x4xf32>
    %127 = vector.broadcast %126 : vector<1x4xf32> to vector<128x4xf32>
    %128 = arith.addf %125, %127 : vector<128x4xf32>
    %129 = vector.shape_cast %128 : vector<128x4xf32> to vector<8x16x4xf32>
    %c0_68 = arith.constant 0 : index
    %c0_69 = arith.constant 0 : index
    %c0_70 = arith.constant 0 : index
    %c0_71 = arith.constant 0 : index
    %130 = vector.load %arg2[%c0_68, %c0_69, %c0_70, %c0_71] : memref<1x8x16x4xbf16, #tpu.memory_space<vmem>>, vector<1x8x16x4xbf16>
    %131 = vector.shape_cast %130 : vector<1x8x16x4xbf16> to vector<8x16x4xbf16>
    %132 = arith.extf %131 : vector<8x16x4xbf16> to vector<8x16x4xf32>
    %133 = arith.addf %129, %132 : vector<8x16x4xf32>
    %cst_72 = arith.constant 0.000000e+00 : f32
    %134 = vector.broadcast %cst_72 : f32 to vector<8x16x4xf32>
    %135 = arith.maximumf %133, %134 : vector<8x16x4xf32>
    %c0_73 = arith.constant 0 : index
    %c0_74 = arith.constant 0 : index
    %c0_75 = arith.constant 0 : index
    %c0_76 = arith.constant 0 : index
    %136 = vector.load %arg11[%c0_73, %c0_74, %c0_75, %c0_76] : memref<1x8x16x4xf32, #tpu.memory_space<vmem>>, vector<1x8x16x4xf32>
    %137 = vector.shape_cast %136 : vector<1x8x16x4xf32> to vector<8x16x4xf32>
    %138 = vector.shape_cast %135 : vector<8x16x4xf32> to vector<1x8x16x4xf32>
    tpu.vector_store %arg11[%c0_73, %c0_74, %c0_75, %c0_76], %138 {strides = array<i32>} : memref<1x8x16x4xf32, #tpu.memory_space<vmem>>, vector<1x8x16x4xf32>,
    return
  }
  func.func @transform_0(%arg0: i32, %arg1: i32) -> (i32, i32, i32, i32) {
    %c0_i32 = arith.constant 0 : i32
    %c0_i32_0 = arith.constant 0 : i32
    %c0_i32_1 = arith.constant 0 : i32
    return %arg0, %arg1, %c0_i32, %c0_i32_0 : i32, i32, i32, i32
  }
  func.func @transform_1(%arg0: i32, %arg1: i32) -> (i32, i32, i32, i32) {
    %c4_i32 = arith.constant 4 : i32
    %0 = arith.muli %arg1, %c4_i32 : i32
    %c1_i32 = arith.constant 1 : i32
    %1 = arith.subi %0, %c1_i32 : i32
    %c0_i32 = arith.constant 0 : i32
    %2 = arith.maxsi %1, %c0_i32 : i32
    %c0_i32_0 = arith.constant 0 : i32
    %c0_i32_1 = arith.constant 0 : i32
    %c0_i32_2 = arith.constant 0 : i32
    return %arg0, %2, %c0_i32_0, %c0_i32_1 : i32, i32, i32, i32
  }
  func.func @transform_2(%arg0: i32, %arg1: i32) -> (i32, i32, i32, i32) {
    %c4_i32 = arith.constant 4 : i32
    %0 = arith.muli %arg1, %c4_i32 : i32
    %c4_i32_0 = arith.constant 4 : i32
    %1 = arith.addi %0, %c4_i32_0 : i32
    %c7_i32 = arith.constant 7 : i32
    %2 = arith.minsi %1, %c7_i32 : i32
    %c0_i32 = arith.constant 0 : i32
    %c0_i32_1 = arith.constant 0 : i32
    %c0_i32_2 = arith.constant 0 : i32
    return %arg0, %2, %c0_i32, %c0_i32_1 : i32, i32, i32, i32
  }
  func.func @transform_3(%arg0: i32, %arg1: i32) -> (i32, i32, i32) {
    %c0_i32 = arith.constant 0 : i32
    %c0_i32_0 = arith.constant 0 : i32
    %c0_i32_1 = arith.constant 0 : i32
    %c0_i32_2 = arith.constant 0 : i32
    return %c0_i32, %c0_i32_0, %c0_i32_1 : i32, i32, i32
  }
  func.func @transform_4(%arg0: i32, %arg1: i32) -> (i32, i32) {
    %c0_i32 = arith.constant 0 : i32
    %c0_i32_0 = arith.constant 0 : i32
    %c0_i32_1 = arith.constant 0 : i32
    return %c0_i32, %c0_i32_0 : i32, i32
  }
  func.func @transform_5(%arg0: i32, %arg1: i32) -> (i32, i32) {
    %c0_i32 = arith.constant 0 : i32
    %c0_i32_0 = arith.constant 0 : i32
    %c0_i32_1 = arith.constant 0 : i32
    return %c0_i32, %c0_i32_0 : i32, i32
  }
  func.func @transform_6(%arg0: i32, %arg1: i32) -> (i32, i32, i32) {
    %c0_i32 = arith.constant 0 : i32
    %c0_i32_0 = arith.constant 0 : i32
    %c0_i32_1 = arith.constant 0 : i32
    %c0_i32_2 = arith.constant 0 : i32
    return %c0_i32, %c0_i32_0, %c0_i32_1 : i32, i32, i32
  }
  func.func @transform_7(%arg0: i32, %arg1: i32) -> (i32, i32) {
    %c0_i32 = arith.constant 0 : i32
    %c0_i32_0 = arith.constant 0 : i32
    %c0_i32_1 = arith.constant 0 : i32
    return %c0_i32, %c0_i32_0 : i32, i32
  }
  func.func @transform_8(%arg0: i32, %arg1: i32) -> (i32, i32) {
    %c0_i32 = arith.constant 0 : i32
    %c0_i32_0 = arith.constant 0 : i32
    %c0_i32_1 = arith.constant 0 : i32
    return %c0_i32, %c0_i32_0 : i32, i32
  }
  func.func @transform_9(%arg0: i32, %arg1: i32) -> (i32, i32, i32, i32) {
    %c0_i32 = arith.constant 0 : i32
    %c0_i32_0 = arith.constant 0 : i32
    %c0_i32_1 = arith.constant 0 : i32
    return %arg0, %arg1, %c0_i32, %c0_i32_0 : i32, i32, i32, i32
  }
}

</mosaic_0001>

<llo_original>
// kernel: basic_block_pallas.1
$region0: #{basic_block_pallas.1}
  #allocation0 [shape = 'u32[]', space=smem, size = 0x4, offset = 0x4, fixed_abs, tag = 'smem constant byte address 0x4 - core index']
  #allocation1 [shape = 'u32[72,128]{1,0:T(1,128)}', space=vmem, size = 0x9000, scoped, tag = 'internal scratch']
  #allocation2 [shape = 'bf16[12,18,4]{2,1,0:T(8,128)(2,1)}', space=vmem, size = 0x12000, scoped, tag = 'scratch operand']
  #allocation3 [shape = 'bf16[10,18,4]{2,1,0:T(8,128)(2,1)}', space=vmem, size = 0xf000, scoped, tag = 'scratch operand']
  %s0 = inlined_call_operand.vmem [shape: bf16[2,16,16,4], index: 0, kind: input, shape index: {}, may-alias: {0,1,2}]
  %s1 = inlined_call_operand.vmem [shape: bf16[2,16,16,4], index: 1, kind: input, shape index: {}, may-alias: {0,1,2}]
  %s2 = inlined_call_operand.vmem [shape: bf16[2,16,16,4], index: 2, kind: input, shape index: {}, may-alias: {0,1,2}]
  %s3 = inlined_call_operand.vmem [shape: bf16[3,12,4], index: 3, kind: input, shape index: {}]
  %s4 = inlined_call_operand.vmem [shape: f32[1,4], index: 4, kind: input, shape index: {}]
  %s5 = inlined_call_operand.vmem [shape: f32[1,4], index: 5, kind: input, shape index: {}]
  %s6 = inlined_call_operand.vmem [shape: bf16[3,12,4], index: 6, kind: input, shape index: {}]
  %s7 = inlined_call_operand.vmem [shape: f32[1,4], index: 7, kind: input, shape index: {}]
  %s8 = inlined_call_operand.vmem [shape: f32[1,4], index: 8, kind: input, shape index: {}]
  %s9 = inlined_call_operand.vmem [shape: f32[2,16,16,4], index: 9, kind: output, shape index: {}]
  %s10 = sld [smem:[#allocation0]]
  $region73: #{basic_block_pallas.1} parent=0
    _
  %s12 = ssub.s32 1, %s10
  %s13 = scalar_select 0, %s12, %s10
  loop: start=0, step=1, limit=6
  $region2: #{basic_block_pallas.1} parent=0 // loop_pre_header
    _
  $region3: #{basic_block_pallas.1} parent=0 // loop_header
    %s15 = sphi 0, %s19
    %p16 = scmp.ge.s32.totalorder %s15, 6
    %s22 = sphi 0, %s34
    %s23 = sphi 0, %s30
    %s24 = sphi 0, %s22
    %s25 = sphi 0, %s23
    %s26 = sphi 0, %s24
    %s27 = sphi 0, %s25
    %s39 = sphi 0, %s41
    %s42 = sphi 0, %s39
    %s43 = sphi 0, %s42
    %s59 = sphi 0, %s43
    %s75 = sphi 0, %s77
    %s78 = sphi 0, %s75
    %s79 = sphi 0, %s78
    %s95 = sphi 0, %s79
    %s111 = sphi 0, %s113
    %s114 = sphi 0, %s111
    %s115 = sphi 0, %s114
    %s131 = sphi 0, %s115
    %s135 = sphi 0, %s135
    %s137 = sphi 0, %s135
    %s138 = sphi 0, %s137
    %s152 = sphi 0, %s138
    %s156 = sphi 0, %s156
    %s158 = sphi 0, %s156
    %s159 = sphi 0, %s158
    %s173 = sphi 0, %s159
    %s177 = sphi 0, %s177
    %s179 = sphi 0, %s177
    %s180 = sphi 0, %s179
    %s194 = sphi 0, %s180
    %s198 = sphi 0, %s198
    %s200 = sphi 0, %s198
    %s201 = sphi 0, %s200
    %s215 = sphi 0, %s201
    %s219 = sphi 0, %s219
    %s221 = sphi 0, %s219
    %s222 = sphi 0, %s221
    %s236 = sphi 0, %s222
    %s240 = sphi 0, %s240
    %s242 = sphi 0, %s240
    %s243 = sphi 0, %s242
    %s257 = sphi 0, %s243
    %s265 = sphi 0, %s267
    %s268 = sphi 0, %s265
    %s269 = sphi 0, %s268
    %s285 = sphi 0, %s269
  $region4: #{basic_block_pallas.1} parent=0 // loop_header_branch
    %18 = sbr.rel (%p16) target = $region8
  $region5: #{basic_block_pallas.1} parent=0 // loop_body
    %s20 = ssub.s32 %s15, 1
    %s21 = ssub.s32 %s15, 2
    %s28 = sadd.s32 1, %s23
    %p29 = scmp.ge.s32.totalorder %s28, 2
    %s30 = scalar_select %p29, 0, %s28
    %s31 = sadd.s32 1, %s22
    %s32 = scalar_select %p29, %s31, %s22
    %p33 = scmp.ge.s32.totalorder %s32, 2
    %s34 = scalar_select %p33, 0, %s32
    %s35 = ssub.s32 %s22, %s34
    %s36 = ssub.s32 %s23, %s30
    %s37 = sor.u32 %s35, %s36
    %p38 = scmp.eq.s32.totalorder %s37, 0
    %s40 = sadd.s32 %s39, 1
    %s41 = scalar_select %p38, %s39, %s40
    %p44 = pneg %p38
    %p45 = scmp.eq.s32.totalorder %s15, 3
    %p46 = por %p44, %p45
    %p47 = scmp.ne.s32.totalorder %s39, %s42
    %p48 = scmp.eq.s32.totalorder %s15, 0
    %p49 = por %p47, %p48
    %p50 = scmp.ne.s32.totalorder %s39, %s42
    %p51 = scmp.eq.s32.totalorder %s20, 3
    %p52 = por %p50, %p51
    %p53 = scmp.ne.s32.totalorder %s42, %s43
    %p54 = scmp.eq.s32.totalorder %s20, 0
    %p55 = por %p53, %p54
    %p56 = scmp.ne.s32.totalorder %s42, %s43
    %p57 = scmp.eq.s32.totalorder %s21, 3
    %p58 = por %p56, %p57
    %p60 = scmp.ne.s32.totalorder %s43, %s59
    %p61 = scmp.eq.s32.totalorder %s21, 0
    %p62 = por %p60, %p61
    %s63 = smul.u32 %s23, 4
    %s64 = ssub.s32 %s63, 1
    %p65 = scmp.gt.s32.totalorder %s64, 0
    %s66 = scalar_select %p65, %s64, 0
    %s67 = smul.u32 %s30, 4
    %s68 = ssub.s32 %s67, 1
    %p69 = scmp.gt.s32.totalorder %s68, 0
    %s70 = scalar_select %p69, %s68, 0
    %s71 = ssub.s32 %s22, %s34
    %s72 = ssub.s32 %s66, %s70
    %s73 = sor.u32 %s71, %s72
    %p74 = scmp.eq.s32.totalorder %s73, 0
    %s76 = sadd.s32 %s75, 1
    %s77 = scalar_select %p74, %s75, %s76
    %p80 = pneg %p74
    %p81 = scmp.eq.s32.totalorder %s15, 3
    %p82 = por %p80, %p81
    %p83 = scmp.ne.s32.totalorder %s75, %s78
    %p84 = scmp.eq.s32.totalorder %s15, 0
    %p85 = por %p83, %p84
    %p86 = scmp.ne.s32.totalorder %s75, %s78
    %p87 = scmp.eq.s32.totalorder %s20, 3
    %p88 = por %p86, %p87
    %p89 = scmp.ne.s32.totalorder %s78, %s79
    %p90 = scmp.eq.s32.totalorder %s20, 0
    %p91 = por %p89, %p90
    %p92 = scmp.ne.s32.totalorder %s78, %s79
    %p93 = scmp.eq.s32.totalorder %s21, 3
    %p94 = por %p92, %p93
    %p96 = scmp.ne.s32.totalorder %s79, %s95
    %p97 = scmp.eq.s32.totalorder %s21, 0
    %p98 = por %p96, %p97
    %s99 = smul.u32 %s23, 4
    %s100 = sadd.s32 %s99, 4
    %p101 = scmp.lt.s32.totalorder %s100, 7
    %s102 = scalar_select %p101, %s100, 7
    %s103 = smul.u32 %s30, 4
    %s104 = sadd.s32 %s103, 4
    %p105 = scmp.lt.s32.totalorder %s104, 7
    %s106 = scalar_select %p105, %s104, 7
    %s107 = ssub.s32 %s22, %s34
    %s108 = ssub.s32 %s102, %s106
    %s109 = sor.u32 %s107, %s108
    %p110 = scmp.eq.s32.totalorder %s109, 0
    %s112 = sadd.s32 %s111, 1
    %s113 = scalar_select %p110, %s111, %s112
    %p116 = pneg %p110
    %p117 = scmp.eq.s32.totalorder %s15, 3
    %p118 = por %p116, %p117
    %p119 = scmp.ne.s32.totalorder %s111, %s114
    %p120 = scmp.eq.s32.totalorder %s15, 0
    %p121 = por %p119, %p120
    %p122 = scmp.ne.s32.totalorder %s111, %s114
    %p123 = scmp.eq.s32.totalorder %s20, 3
    %p124 = por %p122, %p123
    %p125 = scmp.ne.s32.totalorder %s114, %s115
    %p126 = scmp.eq.s32.totalorder %s20, 0
    %p127 = por %p125, %p126
    %p128 = scmp.ne.s32.totalorder %s114, %s115
    %p129 = scmp.eq.s32.totalorder %s21, 3
    %p130 = por %p128, %p129
    %p132 = scmp.ne.s32.totalorder %s115, %s131
    %p133 = scmp.eq.s32.totalorder %s21, 0
    %p134 = por %p132, %p133
    %s136 = sadd.s32 %s135, 1
    %p139 = scmp.eq.s32.totalorder %s15, 3
    %p140 = scmp.ne.s32.totalorder %s135, %s137
    %p141 = scmp.eq.s32.totalorder %s15, 0
    %p142 = por %p140, %p141
    %p143 = scmp.ne.s32.totalorder %s135, %s137
    %p144 = scmp.eq.s32.totalorder %s20, 3
    %p145 = por %p143, %p144
    %p146 = scmp.ne.s32.totalorder %s137, %s138
    %p147 = scmp.eq.s32.totalorder %s20, 0
    %p148 = por %p146, %p147
    %p149 = scmp.ne.s32.totalorder %s137, %s138
    %p150 = scmp.eq.s32.totalorder %s21, 3
    %p151 = por %p149, %p150
    %p153 = scmp.ne.s32.totalorder %s138, %s152
    %p154 = scmp.eq.s32.totalorder %s21, 0
    %p155 = por %p153, %p154
    %s157 = sadd.s32 %s156, 1
    %p160 = scmp.eq.s32.totalorder %s15, 3
    %p161 = scmp.ne.s32.totalorder %s156, %s158
    %p162 = scmp.eq.s32.totalorder %s15, 0
    %p163 = por %p161, %p162
    %p164 = scmp.ne.s32.totalorder %s156, %s158
    %p165 = scmp.eq.s32.totalorder %s20, 3
    %p166 = por %p164, %p165
    %p167 = scmp.ne.s32.totalorder %s158, %s159
    %p168 = scmp.eq.s32.totalorder %s20, 0
    %p169 = por %p167, %p168
    %p170 = scmp.ne.s32.totalorder %s158, %s159
    %p171 = scmp.eq.s32.totalorder %s21, 3
    %p172 = por %p170, %p171
    %p174 = scmp.ne.s32.totalorder %s159, %s173
    %p175 = scmp.eq.s32.totalorder %s21, 0
    %p176 = por %p174, %p175
    %s178 = sadd.s32 %s177, 1
    %p181 = scmp.eq.s32.totalorder %s15, 3
    %p182 = scmp.ne.s32.totalorder %s177, %s179
    %p183 = scmp.eq.s32.totalorder %s15, 0
    %p184 = por %p182, %p183
    %p185 = scmp.ne.s32.totalorder %s177, %s179
    %p186 = scmp.eq.s32.totalorder %s20, 3
    %p187 = por %p185, %p186
    %p188 = scmp.ne.s32.totalorder %s179, %s180
    %p189 = scmp.eq.s32.totalorder %s20, 0
    %p190 = por %p188, %p189
    %p191 = scmp.ne.s32.totalorder %s179, %s180
    %p192 = scmp.eq.s32.totalorder %s21, 3
    %p193 = por %p191, %p192
    %p195 = scmp.ne.s32.totalorder %s180, %s194
    %p196 = scmp.eq.s32.totalorder %s21, 0
    %p197 = por %p195, %p196
    %s199 = sadd.s32 %s198, 1
    %p202 = scmp.eq.s32.totalorder %s15, 3
    %p203 = scmp.ne.s32.totalorder %s198, %s200
    %p204 = scmp.eq.s32.totalorder %s15, 0
    %p205 = por %p203, %p204
    %p206 = scmp.ne.s32.totalorder %s198, %s200
    %p207 = scmp.eq.s32.totalorder %s20, 3
    %p208 = por %p206, %p207
    %p209 = scmp.ne.s32.totalorder %s200, %s201
    %p210 = scmp.eq.s32.totalorder %s20, 0
    %p211 = por %p209, %p210
    %p212 = scmp.ne.s32.totalorder %s200, %s201
    %p213 = scmp.eq.s32.totalorder %s21, 3
    %p214 = por %p212, %p213
    %p216 = scmp.ne.s32.totalorder %s201, %s215
    %p217 = scmp.eq.s32.totalorder %s21, 0
    %p218 = por %p216, %p217
    %s220 = sadd.s32 %s219, 1
    %p223 = scmp.eq.s32.totalorder %s15, 3
    %p224 = scmp.ne.s32.totalorder %s219, %s221
    %p225 = scmp.eq.s32.totalorder %s15, 0
    %p226 = por %p224, %p225
    %p227 = scmp.ne.s32.totalorder %s219, %s221
    %p228 = scmp.eq.s32.totalorder %s20, 3
    %p229 = por %p227, %p228
    %p230 = scmp.ne.s32.totalorder %s221, %s222
    %p231 = scmp.eq.s32.totalorder %s20, 0
    %p232 = por %p230, %p231
    %p233 = scmp.ne.s32.totalorder %s221, %s222
    %p234 = scmp.eq.s32.totalorder %s21, 3
    %p235 = por %p233, %p234
    %p237 = scmp.ne.s32.totalorder %s222, %s236
    %p238 = scmp.eq.s32.totalorder %s21, 0
    %p239 = por %p237, %p238
    %s241 = sadd.s32 %s240, 1
    %p244 = scmp.eq.s32.totalorder %s15, 3
    %p245 = scmp.ne.s32.totalorder %s240, %s242
    %p246 = scmp.eq.s32.totalorder %s15, 0
    %p247 = por %p245, %p246
    %p248 = scmp.ne.s32.totalorder %s240, %s242
    %p249 = scmp.eq.s32.totalorder %s20, 3
    %p250 = por %p248, %p249
    %p251 = scmp.ne.s32.totalorder %s242, %s243
    %p252 = scmp.eq.s32.totalorder %s20, 0
    %p253 = por %p251, %p252
    %p254 = scmp.ne.s32.totalorder %s242, %s243
    %p255 = scmp.eq.s32.totalorder %s21, 3
    %p256 = por %p254, %p255
    %p258 = scmp.ne.s32.totalorder %s243, %s257
    %p259 = scmp.eq.s32.totalorder %s21, 0
    %p260 = por %p258, %p259
    %s261 = ssub.s32 %s22, %s34
    %s262 = ssub.s32 %s23, %s30
    %s263 = sor.u32 %s261, %s262
    %p264 = scmp.eq.s32.totalorder %s263, 0
    %s266 = sadd.s32 %s265, 1
    %s267 = scalar_select %p264, %s265, %s266
    %p270 = pneg %p264
    %p271 = scmp.eq.s32.totalorder %s15, 3
    %p272 = por %p270, %p271
    %p273 = scmp.ne.s32.totalorder %s265, %s268
    %p274 = scmp.eq.s32.totalorder %s15, 0
    %p275 = por %p273, %p274
    %p276 = scmp.ne.s32.totalorder %s265, %s268
    %p277 = scmp.eq.s32.totalorder %s20, 3
    %p278 = por %p276, %p277
    %p279 = scmp.ne.s32.totalorder %s268, %s269
    %p280 = scmp.eq.s32.totalorder %s20, 0
    %p281 = por %p279, %p280
    %p282 = scmp.ne.s32.totalorder %s268, %s269
    %p283 = scmp.eq.s32.totalorder %s21, 3
    %p284 = por %p282, %p283
    %p286 = scmp.ne.s32.totalorder %s269, %s285
    %p287 = scmp.eq.s32.totalorder %s21, 0
    %p288 = por %p286, %p287
    %p289 = scmp.le.s32.totalorder 1, %s15
    %p290 = scmp.lt.s32.totalorder %s15, 5
    %p291 = pnand %p289, %p290
    %p292 = pneg %p291
    // Predicated region
    $region9: #{basic_block_pallas.1} parent=5 // pred_check
      _
    $region10: #{basic_block_pallas.1} parent=5 // pred_check_branch
      %294 = sbr.rel (%p291) target = $region12
    $region11: #{basic_block_pallas.1} parent=5 // pred_region
      %s295 = ssub.s32 %s15, 1
      // Predicated region
      $region13: #{basic_block_pallas.1} parent=11 // pred_check
        %p296 = pneg %p148
      $region14: #{basic_block_pallas.1} parent=11 // pred_check_branch
        %298 = sbr.rel (%p296) target = $region16
      $region15: #{basic_block_pallas.1} parent=11 // pred_region
        _
      $region16: #{basic_block_pallas.1} parent=11 // pred_fallthru
        _
      // Predicated region
      $region17: #{basic_block_pallas.1} parent=11 // pred_check
        %p299 = pneg %p169
      $region18: #{basic_block_pallas.1} parent=11 // pred_check_branch
        %301 = sbr.rel (%p299) target = $region20
      $region19: #{basic_block_pallas.1} parent=11 // pred_region
        _
      $region20: #{basic_block_pallas.1} parent=11 // pred_fallthru
        _
      // Predicated region
      $region21: #{basic_block_pallas.1} parent=11 // pred_check
        %p302 = pneg %p190
      $region22: #{basic_block_pallas.1} parent=11 // pred_check_branch
        %304 = sbr.rel (%p302) target = $region24
      $region23: #{basic_block_pallas.1} parent=11 // pred_region
        _
      $region24: #{basic_block_pallas.1} parent=11 // pred_fallthru
        _
      // Predicated region
      $region25: #{basic_block_pallas.1} parent=11 // pred_check
        %p305 = pneg %p211
      $region26: #{basic_block_pallas.1} parent=11 // pred_check_branch
        %307 = sbr.rel (%p305) target = $region28
      $region27: #{basic_block_pallas.1} parent=11 // pred_region
        _
      $region28: #{basic_block_pallas.1} parent=11 // pred_fallthru
        _
      // Predicated region
      $region29: #{basic_block_pallas.1} parent=11 // pred_check
        %p308 = pneg %p232
      $region30: #{basic_block_pallas.1} parent=11 // pred_check_branch
        %310 = sbr.rel (%p308) target = $region32
      $region31: #{basic_block_pallas.1} parent=11 // pred_region
        _
      $region32: #{basic_block_pallas.1} parent=11 // pred_fallthru
        _
      // Predicated region
      $region33: #{basic_block_pallas.1} parent=11 // pred_check
        %p311 = pneg %p253
      $region34: #{basic_block_pallas.1} parent=11 // pred_check_branch
        %313 = sbr.rel (%p311) target = $region36
      $region35: #{basic_block_pallas.1} parent=11 // pred_region
        _
      $region36: #{basic_block_pallas.1} parent=11 // pred_fallthru
        _
    $region12: #{basic_block_pallas.1} parent=5 // pred_fallthru
      _
    %p314 = scmp.lt.s32.totalorder %s15, 4
    // Predicated region
    $region37: #{basic_block_pallas.1} parent=5 // pred_check
      %p315 = pneg %p314
    $region38: #{basic_block_pallas.1} parent=5 // pred_check_branch
      %317 = sbr.rel (%p315) target = $region40
    $region39: #{basic_block_pallas.1} parent=5 // pred_region
      // Predicated region
      $region41: #{basic_block_pallas.1} parent=39 // pred_check
        %p318 = pneg %p49
      $region42: #{basic_block_pallas.1} parent=39 // pred_check_branch
        %320 = sbr.rel (%p318) target = $region44
      $region43: #{basic_block_pallas.1} parent=39 // pred_region
        %s321 = smul.u32 8, %s23
        %p322 = scmp.lt.s32.totalorder %s22, 1
        %s323 = scalar_select %p322, %s22, 1
        %p324 = scmp.lt.s32.totalorder %s321, 15
        %s325 = scalar_select %p324, %s321, 15
        %s326 = smul.addr %s325, 2
        %s327 = smul.addr %s323, 32
        %s328 = sadd.s32 %s326, %s327
        %s329 = smul.addr %s328, 4
        %s330 = scalar_lea.vmem %s0, %s329
        %s331 = smul.u32 8, %s23
      $region44: #{basic_block_pallas.1} parent=39 // pred_fallthru
        _
      // Predicated region
      $region45: #{basic_block_pallas.1} parent=39 // pred_check
        %p332 = pneg %p85
      $region46: #{basic_block_pallas.1} parent=39 // pred_check_branch
        %334 = sbr.rel (%p332) target = $region48
      $region47: #{basic_block_pallas.1} parent=39 // pred_region
        %s335 = smul.u32 %s23, 4
        %s336 = ssub.s32 %s335, 1
        %p337 = scmp.gt.s32.totalorder %s336, 0
        %s338 = scalar_select %p337, %s336, 0
        %s339 = smul.u32 2, %s338
        %p340 = scmp.lt.s32.totalorder %s22, 1
        %s341 = scalar_select %p340, %s22, 1
        %p342 = scmp.lt.s32.totalorder %s339, 15
        %s343 = scalar_select %p342, %s339, 15
        %s344 = smul.addr %s343, 2
        %s345 = smul.addr %s341, 32
        %s346 = sadd.s32 %s344, %s345
        %s347 = smul.addr %s346, 4
        %s348 = scalar_lea.vmem %s1, %s347
        %s349 = smul.u32 %s23, 4
        %s350 = ssub.s32 %s349, 1
        %p351 = scmp.gt.s32.totalorder %s350, 0
        %s352 = scalar_select %p351, %s350, 0
        %s353 = smul.u32 2, %s352
      $region48: #{basic_block_pallas.1} parent=39 // pred_fallthru
        _
      // Predicated region
      $region49: #{basic_block_pallas.1} parent=39 // pred_check
        %p354 = pneg %p121
      $region50: #{basic_block_pallas.1} parent=39 // pred_check_branch
        %356 = sbr.rel (%p354) target = $region52
      $region51: #{basic_block_pallas.1} parent=39 // pred_region
        %s357 = smul.u32 %s23, 4
        %s358 = sadd.s32 %s357, 4
        %p359 = scmp.lt.s32.totalorder %s358, 7
        %s360 = scalar_select %p359, %s358, 7
        %s361 = smul.u32 2, %s360
        %p362 = scmp.lt.s32.totalorder %s22, 1
        %s363 = scalar_select %p362, %s22, 1
        %p364 = scmp.lt.s32.totalorder %s361, 15
        %s365 = scalar_select %p364, %s361, 15
        %s366 = smul.addr %s365, 2
        %s367 = smul.addr %s363, 32
        %s368 = sadd.s32 %s366, %s367
        %s369 = smul.addr %s368, 4
        %s370 = scalar_lea.vmem %s2, %s369
        %s371 = smul.u32 %s23, 4
        %s372 = sadd.s32 %s371, 4
        %p373 = scmp.lt.s32.totalorder %s372, 7
        %s374 = scalar_select %p373, %s372, 7
        %s375 = smul.u32 2, %s374
      $region52: #{basic_block_pallas.1} parent=39 // pred_fallthru
        _
    $region40: #{basic_block_pallas.1} parent=5 // pred_fallthru
      _
    %p376 = scmp.le.s32.totalorder 1, %s15
    %p377 = scmp.lt.s32.totalorder %s15, 5
    %p378 = pnand %p376, %p377
    %p379 = pneg %p378
    // Predicated region
    $region53: #{basic_block_pallas.1} parent=5 // pred_check
      _
    $region54: #{basic_block_pallas.1} parent=5 // pred_check_branch
      %381 = sbr.rel (%p378) target = $region56
    $region55: #{basic_block_pallas.1} parent=5 // pred_region
      %s382 = ssub.s32 %s15, 1
      %s383 = smul.u32 8, %s25
      %p384 = scmp.lt.s32.totalorder %s24, 1
      %s385 = scalar_select %p384, %s24, 1
      %p386 = scmp.lt.s32.totalorder %s383, 15
      %s387 = scalar_select %p386, %s383, 15
      %s388 = smul.addr %s387, 2
      %s389 = smul.addr %s385, 32
      %s390 = sadd.s32 %s388, %s389
      %s391 = smul.addr %s390, 4
      %s392 = scalar_lea.vmem %s0, %s391
      %p393 = pneg %p55
      %p394 = pneg %p52
      %s395 = smul.u32 %s25, 4
      %s396 = ssub.s32 %s395, 1
      %p397 = scmp.gt.s32.totalorder %s396, 0
      %s398 = scalar_select %p397, %s396, 0
      %s399 = smul.u32 2, %s398
      %p400 = scmp.lt.s32.totalorder %s24, 1
      %s401 = scalar_select %p400, %s24, 1
      %p402 = scmp.lt.s32.totalorder %s399, 15
      %s403 = scalar_select %p402, %s399, 15
      %s404 = smul.addr %s403, 2
      %s405 = smul.addr %s401, 32
      %s406 = sadd.s32 %s404, %s405
      %s407 = smul.addr %s406, 4
      %s408 = scalar_lea.vmem %s1, %s407
      %p409 = pneg %p91
      %p410 = pneg %p88
      %s411 = smul.u32 %s25, 4
      %s412 = sadd.s32 %s411, 4
      %p413 = scmp.lt.s32.totalorder %s412, 7
      %s414 = scalar_select %p413, %s412, 7
      %s415 = smul.u32 2, %s414
      %p416 = scmp.lt.s32.totalorder %s24, 1
      %s417 = scalar_select %p416, %s24, 1
      %p418 = scmp.lt.s32.totalorder %s415, 15
      %s419 = scalar_select %p418, %s415, 15
      %s420 = smul.addr %s419, 2
      %s421 = smul.addr %s417, 32
      %s422 = sadd.s32 %s420, %s421
      %s423 = smul.addr %s422, 4
      %s424 = scalar_lea.vmem %s2, %s423
      %p425 = pneg %p127
      %p426 = pneg %p124
      %p427 = pneg %p148
      %p428 = pneg %p145
      %p429 = pneg %p169
      %p430 = pneg %p166
      %p431 = pneg %p190
      %p432 = pneg %p187
      %p433 = pneg %p211
      %p434 = pneg %p208
      %p435 = pneg %p232
      %p436 = pneg %p229
      %p437 = pneg %p253
      %p438 = pneg %p250
      %p439 = pneg %p281
      %p440 = pneg %p278
      %s441 = smul.u32 8, %s25
      %p442 = scmp.lt.s32.totalorder %s24, 1
      %s443 = scalar_select %p442, %s24, 1
      %p444 = scmp.lt.s32.totalorder %s441, 15
      %s445 = scalar_select %p444, %s441, 15
      %s446 = smul.addr %s445, 2
      %s447 = smul.addr %s443, 32
      %s448 = sadd.s32 %s446, %s447
      %s449 = smul.addr %s448, 8
      %s450 = scalar_lea.vmem %s9, %s449
      %s451 = smul.u32 8, %s25
      %p452 = scmp.lt.s32.totalorder %s24, 1
      %s453 = scalar_select %p452, %s24, 1
      %p454 = scmp.lt.s32.totalorder %s451, 15
      %s455 = scalar_select %p454, %s451, 15
      %s456 = smul.addr %s455, 2
      %s457 = smul.addr %s453, 32
      %s458 = sadd.s32 %s456, %s457
      %s459 = smul.addr %s458, 4
      %s460 = scalar_lea.vmem %s0, %s459
      %s461 = smul.u32 8, %s25
      %s462 = smul.u32 %s25, 4
      %s463 = ssub.s32 %s462, 1
      %p464 = scmp.gt.s32.totalorder %s463, 0
      %s465 = scalar_select %p464, %s463, 0
      %s466 = smul.u32 2, %s465
      %p467 = scmp.lt.s32.totalorder %s24, 1
      %s468 = scalar_select %p467, %s24, 1
      %p469 = scmp.lt.s32.totalorder %s466, 15
      %s470 = scalar_select %p469, %s466, 15
      %s471 = smul.addr %s470, 2
      %s472 = smul.addr %s468, 32
      %s473 = sadd.s32 %s471, %s472
      %s474 = smul.addr %s473, 4
      %s475 = scalar_lea.vmem %s1, %s474
      %s476 = smul.u32 %s25, 4
      %s477 = ssub.s32 %s476, 1
      %p478 = scmp.gt.s32.totalorder %s477, 0
      %s479 = scalar_select %p478, %s477, 0
      %s480 = smul.u32 2, %s479
      %s481 = smul.u32 %s25, 4
      %s482 = sadd.s32 %s481, 4
      %p483 = scmp.lt.s32.totalorder %s482, 7
      %s484 = scalar_select %p483, %s482, 7
      %s485 = smul.u32 2, %s484
      %p486 = scmp.lt.s32.totalorder %s24, 1
      %s487 = scalar_select %p486, %s24, 1
      %p488 = scmp.lt.s32.totalorder %s485, 15
      %s489 = scalar_select %p488, %s485, 15
      %s490 = smul.addr %s489, 2
      %s491 = smul.addr %s487, 32
      %s492 = sadd.s32 %s490, %s491
      %s493 = smul.addr %s492, 4
      %s494 = scalar_lea.vmem %s2, %s493
      %s495 = smul.u32 %s25, 4
      %s496 = sadd.s32 %s495, 4
      %p497 = scmp.lt.s32.totalorder %s496, 7
      %s498 = scalar_select %p497, %s496, 7
      %s499 = smul.u32 2, %s498
      %s500 = smul.u32 8, %s25
      %p501 = scmp.lt.s32.totalorder %s24, 1
      %s502 = scalar_select %p501, %s24, 1
      %p503 = scmp.lt.s32.totalorder %s500, 15
      %s504 = scalar_select %p503, %s500, 15
      %s505 = smul.addr %s504, 2
      %s506 = smul.addr %s502, 32
      %s507 = sadd.s32 %s505, %s506
      %s508 = smul.addr %s507, 8
      %s509 = scalar_lea.vmem %s9, %s508
      %s510 = smul.u32 8, %s25
      %p512 = scmp.eq.s32.totalorder %s25, 0
      // Predicated region
      $region57: #{basic_block_pallas.1} parent=55 // pred_check
        %p513 = pneg %p512
      $region58: #{basic_block_pallas.1} parent=55 // pred_check_branch
        %515 = sbr.rel (%p513) target = $region60
      $region59: #{basic_block_pallas.1} parent=55 // pred_region
        %vm516 = vcmask 27648
        %517 = vst.msk [vmem:[#allocation2] sm:$0xf] %vm516, 0
        %518 = vst.msk [vmem:[#allocation2 + $0x4] sm:$0xf] %vm516, 0
        %vm519 = vcmask 24576
        %520 = vst.msk [vmem:[#allocation2 + $0x8] sm:$0x1] %vm519, 0
        %521 = vst.msk [vmem:[#allocation2 + $0xc] sm:$0xf] %vm516, 0
        %522 = vst.msk [vmem:[#allocation2 + $0x10] sm:$0xf] %vm516, 0
        %523 = vst.msk [vmem:[#allocation2 + $0x14] sm:$0x1] %vm519, 0
        %524 = vst.msk [vmem:[#allocation2 + $0x18] sm:$0xf] %vm516, 0
        %525 = vst.msk [vmem:[#allocation2 + $0x1c] sm:$0xf] %vm516, 0
        %526 = vst.msk [vmem:[#allocation2 + $0x20] sm:$0x1] %vm519, 0
        %527 = vst.msk [vmem:[#allocation2 + $0x24] sm:$0xf] %vm516, 0
        %528 = vst.msk [vmem:[#allocation2 + $0x28] sm:$0xf] %vm516, 0
        %529 = vst.msk [vmem:[#allocation2 + $0x2c] sm:$0x1] %vm519, 0
        %530 = vst.msk [vmem:[#allocation2 + $0x30] sm:$0xf] %vm516, 0
        %531 = vst.msk [vmem:[#allocation2 + $0x34] sm:$0xf] %vm516, 0
        %532 = vst.msk [vmem:[#allocation2 + $0x38] sm:$0x1] %vm519, 0
        %533 = vst.msk [vmem:[#allocation2 + $0x3c] sm:$0xf] %vm516, 0
        %534 = vst.msk [vmem:[#allocation2 + $0x40] sm:$0xf] %vm516, 0
        %535 = vst.msk [vmem:[#allocation2 + $0x44] sm:$0x1] %vm519, 0
        %536 = vst.msk [vmem:[#allocation2 + $0x48] sm:$0xf] %vm516, 0
        %537 = vst.msk [vmem:[#allocation2 + $0x4c] sm:$0xf] %vm516, 0
        %538 = vst.msk [vmem:[#allocation2 + $0x50] sm:$0x1] %vm519, 0
        %539 = vst.msk [vmem:[#allocation2 + $0x54] sm:$0xf] %vm516, 0
        %540 = vst.msk [vmem:[#allocation2 + $0x58] sm:$0xf] %vm516, 0
        %541 = vst.msk [vmem:[#allocation2 + $0x5c] sm:$0x1] %vm519, 0
        %542 = vst.msk [vmem:[#allocation2 + $0x60] sm:$0xf] %vm516, 0
        %543 = vst.msk [vmem:[#allocation2 + $0x64] sm:$0xf] %vm516, 0
        %544 = vst.msk [vmem:[#allocation2 + $0x68] sm:$0x1] %vm519, 0
        %545 = vst.msk [vmem:[#allocation2 + $0x6c] sm:$0xf] %vm516, 0
        %546 = vst.msk [vmem:[#allocation2 + $0x70] sm:$0xf] %vm516, 0
        %547 = vst.msk [vmem:[#allocation2 + $0x74] sm:$0x1] %vm519, 0
        %548 = vst.msk [vmem:[#allocation2 + $0x78] sm:$0xf] %vm516, 0
        %549 = vst.msk [vmem:[#allocation2 + $0x7c] sm:$0xf] %vm516, 0
        %550 = vst.msk [vmem:[#allocation2 + $0x80] sm:$0x1] %vm519, 0
        %551 = vst.msk [vmem:[#allocation2 + $0x84] sm:$0xf] %vm516, 0
        %552 = vst.msk [vmem:[#allocation2 + $0x88] sm:$0xf] %vm516, 0
        %553 = vst.msk [vmem:[#allocation2 + $0x8c] sm:$0x1] %vm519, 0
        %554 = vst.msk [vmem:[#allocation3] sm:$0xf] %vm516, 0
        %555 = vst.msk [vmem:[#allocation3 + $0x4] sm:$0xf] %vm516, 0
        %556 = vst.msk [vmem:[#allocation3 + $0x8] sm:$0x1] %vm519, 0
        %557 = vst.msk [vmem:[#allocation3 + $0xc] sm:$0xf] %vm516, 0
        %558 = vst.msk [vmem:[#allocation3 + $0x10] sm:$0xf] %vm516, 0
        %559 = vst.msk [vmem:[#allocation3 + $0x14] sm:$0x1] %vm519, 0
        %560 = vst.msk [vmem:[#allocation3 + $0x18] sm:$0xf] %vm516, 0
        %561 = vst.msk [vmem:[#allocation3 + $0x1c] sm:$0xf] %vm516, 0
        %562 = vst.msk [vmem:[#allocation3 + $0x20] sm:$0x1] %vm519, 0
        %563 = vst.msk [vmem:[#allocation3 + $0x24] sm:$0xf] %vm516, 0
        %564 = vst.msk [vmem:[#allocation3 + $0x28] sm:$0xf] %vm516, 0
        %565 = vst.msk [vmem:[#allocation3 + $0x2c] sm:$0x1] %vm519, 0
        %566 = vst.msk [vmem:[#allocation3 + $0x30] sm:$0xf] %vm516, 0
        %567 = vst.msk [vmem:[#allocation3 + $0x34] sm:$0xf] %vm516, 0
        %568 = vst.msk [vmem:[#allocation3 + $0x38] sm:$0x1] %vm519, 0
        %569 = vst.msk [vmem:[#allocation3 + $0x3c] sm:$0xf] %vm516, 0
        %570 = vst.msk [vmem:[#allocation3 + $0x40] sm:$0xf] %vm516, 0
        %571 = vst.msk [vmem:[#allocation3 + $0x44] sm:$0x1] %vm519, 0
        %572 = vst.msk [vmem:[#allocation3 + $0x48] sm:$0xf] %vm516, 0
        %573 = vst.msk [vmem:[#allocation3 + $0x4c] sm:$0xf] %vm516, 0
        %574 = vst.msk [vmem:[#allocation3 + $0x50] sm:$0x1] %vm519, 0
        %575 = vst.msk [vmem:[#allocation3 + $0x54] sm:$0xf] %vm516, 0
        %576 = vst.msk [vmem:[#allocation3 + $0x58] sm:$0xf] %vm516, 0
        %577 = vst.msk [vmem:[#allocation3 + $0x5c] sm:$0x1] %vm519, 0
        %578 = vst.msk [vmem:[#allocation3 + $0x60] sm:$0xf] %vm516, 0
        %579 = vst.msk [vmem:[#allocation3 + $0x64] sm:$0xf] %vm516, 0
        %580 = vst.msk [vmem:[#allocation3 + $0x68] sm:$0x1] %vm519, 0
        %581 = vst.msk [vmem:[#allocation3 + $0x6c] sm:$0xf] %vm516, 0
        %582 = vst.msk [vmem:[#allocation3 + $0x70] sm:$0xf] %vm516, 0
        %583 = vst.msk [vmem:[#allocation3 + $0x74] sm:$0x1] %vm519, 0
      $region60: #{basic_block_pallas.1} parent=55 // pred_fallthru
        _
      %s584 = scalar_select %p512, 0.0, 1.0
      %p586 = scmp.ne.f32.partialorder %s584, %s584
      %s587 = sshrl.u32 %s584, 16
      %s588 = sand.u32 %s587, 1
      %s589 = sadd.s32 32767, %s588
      %s590 = sadd.s32 %s584, %s589
      %s591 = sand.u32 %s590, 4294901760
      %s592 = scalar_select %p586, 2143289344, %s591
      %s594 = sshrl.u32 %s592, 16
      %p595 = scmp.eq.s32.totalorder %s25, 1
      %s596 = scalar_select %p595, 0.0, 1.0
      %p598 = scmp.ne.f32.partialorder %s596, %s596
      %s599 = sshrl.u32 %s596, 16
      %s600 = sand.u32 %s599, 1
      %s601 = sadd.s32 32767, %s600
      %s602 = sadd.s32 %s596, %s601
      %s603 = sand.u32 %s602, 4294901760
      %s604 = scalar_select %p598, 2143289344, %s603
      %s606 = sshrl.u32 %s604, 16
      %v607 = vld [vmem:[%s475] sm:$0xf]
      %v608 = vld [vmem:[%s475 + $0x4] sm:$0xf]
      %v609 = vld [vmem:[%s475 + $0x8] sm:$0xf]
      %v610 = vld [vmem:[%s475 + $0xc] sm:$0xf]
      %s611 = sshll.u32 %s594, 16
      %s612 = sor.u32 %s594, %s611
      %v613 = vstv %s612
      %v615 = vunpack.c.l.bf16 %v607
      %v616 = vunpack.c.l.bf16 %v608
      %v617 = vunpack.c.l.bf16 %v609
      %v618 = vunpack.c.l.bf16 %v610
      %v619 = vunpack.c.l.bf16 %v613
      %v620 = vmul.f32 %v615, %v619
      %v621 = vmul.f32 %v616, %v619
      %v622 = vmul.f32 %v617, %v619
      %v623 = vmul.f32 %v618, %v619
      %v624 = vpack.c.bf16 %v620, %v620
      %v625 = vpack.c.bf16 %v621, %v621
      %v626 = vpack.c.bf16 %v622, %v622
      %v627 = vpack.c.bf16 %v623, %v623
      %vm628 = vsmask.f32 256
      %vm629 = vsmask.f32 4368
      %vm630 = vmor %vm628, %vm629
      %v632 = vshrl.u32 %v624, 16
      %v634 = vrot.slane %v632, 7
      %v635 = vshll.u32 %v624, 16
      %v637 = vor.u32 %v634, %v635
      %v638 = vrot.slane %v634, 4
      %v640 = vshrl.u32 %v625, 16
      %v642 = vrot.slane %v640, 7
      %v643 = vshll.u32 %v625, 16
      %v645 = vor.u32 %v642, %v643
      %v646 = vsel %vm630, %v638, %v645
      %v647 = vrot.slane %v642, 4
      %v649 = vshrl.u32 %v626, 16
      %v651 = vrot.slane %v649, 7
      %v652 = vshll.u32 %v626, 16
      %v654 = vor.u32 %v651, %v652
      %v655 = vrot.slane %v651, 4
      %v657 = vshrl.u32 %v627, 16
      %v659 = vrot.slane %v657, 7
      %v660 = vshll.u32 %v627, 16
      %v662 = vor.u32 %v659, %v660
      %v663 = vsel %vm630, %v655, %v662
      %v664 = vrot.slane %v659, 4
      %vm671 = vcmask 27648
      %vm672 = vsmask.f32 7938
      %vm673 = vmand %vm671, %vm672
      %v674 = vld [vmem:[#allocation2] sm:$0xf]
      %v675 = vsel %vm673, %v637, %v674
      %676 = vst [vmem:[#allocation2] sm:$0xf] %v675
      %vm677 = vcmask 27648
      %678 = vst.msk [vmem:[#allocation2 + $0x4] sm:$0xf] %vm677, %v646
      %vm679 = vcmask 24576
      %vm680 = vmand %vm679, %vm628
      %v681 = vld [vmem:[#allocation2 + $0x8] sm:$0x1]
      %v682 = vsel %vm680, %v647, %v681
      %683 = vst [vmem:[#allocation2 + $0x8] sm:$0x1] %v682
      %v684 = vld [vmem:[#allocation2 + $0xc] sm:$0xf]
      %v685 = vsel %vm673, %v654, %v684
      %686 = vst [vmem:[#allocation2 + $0xc] sm:$0xf] %v685
      %687 = vst.msk [vmem:[#allocation2 + $0x10] sm:$0xf] %vm677, %v663
      %v688 = vld [vmem:[#allocation2 + $0x14] sm:$0x1]
      %v689 = vsel %vm680, %v664, %v688
      %690 = vst [vmem:[#allocation2 + $0x14] sm:$0x1] %v689
      %v691 = vld [vmem:[%s460] sm:$0xf]
      %v692 = vld [vmem:[%s460 + $0x4] sm:$0xf]
      %v693 = vld [vmem:[%s460 + $0x8] sm:$0xf]
      %v694 = vld [vmem:[%s460 + $0xc] sm:$0xf]
      %v695 = vld [vmem:[%s460 + $0x10] sm:$0xf]
      %v696 = vld [vmem:[%s460 + $0x14] sm:$0xf]
      %v697 = vld [vmem:[%s460 + $0x18] sm:$0xf]
      %v698 = vld [vmem:[%s460 + $0x1c] sm:$0xf]
      %v699 = vld [vmem:[%s460 + $0x20] sm:$0xf]
      %v700 = vld [vmem:[%s460 + $0x24] sm:$0xf]
      %v701 = vld [vmem:[%s460 + $0x28] sm:$0xf]
      %v702 = vld [vmem:[%s460 + $0x2c] sm:$0xf]
      %v703 = vld [vmem:[%s460 + $0x30] sm:$0xf]
      %v704 = vld [vmem:[%s460 + $0x34] sm:$0xf]
      %v705 = vld [vmem:[%s460 + $0x38] sm:$0xf]
      %v706 = vld [vmem:[%s460 + $0x3c] sm:$0xf]
      %v708 = vshrl.u32 %v691, 16
      %v710 = vrot.slane %v708, 7
      %v711 = vshll.u32 %v691, 16
      %v713 = vor.u32 %v710, %v711
      %v714 = vrot.slane %v710, 4
      %v716 = vshrl.u32 %v692, 16
      %v718 = vrot.slane %v716, 7
      %v719 = vshll.u32 %v692, 16
      %v721 = vor.u32 %v718, %v719
      %v722 = vsel %vm630, %v714, %v721
      %v723 = vrot.slane %v718, 4
      %v725 = vshrl.u32 %v693, 16
      %v727 = vrot.slane %v725, 7
      %v728 = vshll.u32 %v693, 16
      %v730 = vor.u32 %v727, %v728
      %v731 = vrot.slane %v727, 4
      %v733 = vshrl.u32 %v694, 16
      %v735 = vrot.slane %v733, 7
      %v736 = vshll.u32 %v694, 16
      %v738 = vor.u32 %v735, %v736
      %v739 = vsel %vm630, %v731, %v738
      %v740 = vrot.slane %v735, 4
      %v742 = vshrl.u32 %v695, 16
      %v744 = vrot.slane %v742, 7
      %v745 = vshll.u32 %v695, 16
      %v747 = vor.u32 %v744, %v745
      %v748 = vrot.slane %v744, 4
      %v750 = vshrl.u32 %v696, 16
      %v752 = vrot.slane %v750, 7
      %v753 = vshll.u32 %v696, 16
      %v755 = vor.u32 %v752, %v753
      %v756 = vsel %vm630, %v748, %v755
      %v757 = vrot.slane %v752, 4
      %v759 = vshrl.u32 %v697, 16
      %v761 = vrot.slane %v759, 7
      %v762 = vshll.u32 %v697, 16
      %v764 = vor.u32 %v761, %v762
      %v765 = vrot.slane %v761, 4
      %v767 = vshrl.u32 %v698, 16
      %v769 = vrot.slane %v767, 7
      %v770 = vshll.u32 %v698, 16
      %v772 = vor.u32 %v769, %v770
      %v773 = vsel %vm630, %v765, %v772
      %v774 = vrot.slane %v769, 4
      %v776 = vshrl.u32 %v699, 16
      %v778 = vrot.slane %v776, 7
      %v779 = vshll.u32 %v699, 16
      %v781 = vor.u32 %v778, %v779
      %v782 = vrot.slane %v778, 4
      %v784 = vshrl.u32 %v700, 16
      %v786 = vrot.slane %v784, 7
      %v787 = vshll.u32 %v700, 16
      %v789 = vor.u32 %v786, %v787
      %v790 = vsel %vm630, %v782, %v789
      %v791 = vrot.slane %v786, 4
      %v793 = vshrl.u32 %v701, 16
      %v795 = vrot.slane %v793, 7
      %v796 = vshll.u32 %v701, 16
      %v798 = vor.u32 %v795, %v796
      %v799 = vrot.slane %v795, 4
      %v801 = vshrl.u32 %v702, 16
      %v803 = vrot.slane %v801, 7
      %v804 = vshll.u32 %v702, 16
      %v806 = vor.u32 %v803, %v804
      %v807 = vsel %vm630, %v799, %v806
      %v808 = vrot.slane %v803, 4
      %v810 = vshrl.u32 %v703, 16
      %v812 = vrot.slane %v810, 7
      %v813 = vshll.u32 %v703, 16
      %v815 = vor.u32 %v812, %v813
      %v816 = vrot.slane %v812, 4
      %v818 = vshrl.u32 %v704, 16
      %v820 = vrot.slane %v818, 7
      %v821 = vshll.u32 %v704, 16
      %v823 = vor.u32 %v820, %v821
      %v824 = vsel %vm630, %v816, %v823
      %v825 = vrot.slane %v820, 4
      %v827 = vshrl.u32 %v705, 16
      %v829 = vrot.slane %v827, 7
      %v830 = vshll.u32 %v705, 16
      %v832 = vor.u32 %v829, %v830
      %v833 = vrot.slane %v829, 4
      %v835 = vshrl.u32 %v706, 16
      %v837 = vrot.slane %v835, 7
      %v838 = vshll.u32 %v706, 16
      %v840 = vor.u32 %v837, %v838
      %v841 = vsel %vm630, %v833, %v840
      %v842 = vrot.slane %v837, 4
      %s867 = scalar_lea.vmem [#allocation2], 24
      %v868 = vld [vmem:[%s867] sm:$0xf]
      %v869 = vsel %vm673, %v713, %v868
      %870 = vst [vmem:[%s867] sm:$0xf] %v869
      %871 = vst.msk [vmem:[%s867 + $0x4] sm:$0xf] %vm677, %v722
      %v872 = vld [vmem:[%s867 + $0x8] sm:$0x1]
      %v873 = vsel %vm680, %v723, %v872
      %874 = vst [vmem:[%s867 + $0x8] sm:$0x1] %v873
      %v875 = vld [vmem:[%s867 + $0xc] sm:$0xf]
      %v876 = vsel %vm673, %v730, %v875
      %877 = vst [vmem:[%s867 + $0xc] sm:$0xf] %v876
      %878 = vst.msk [vmem:[%s867 + $0x10] sm:$0xf] %vm677, %v739
      %v879 = vld [vmem:[%s867 + $0x14] sm:$0x1]
      %v880 = vsel %vm680, %v740, %v879
      %881 = vst [vmem:[%s867 + $0x14] sm:$0x1] %v880
      %v882 = vld [vmem:[%s867 + $0x18] sm:$0xf]
      %v883 = vsel %vm673, %v747, %v882
      %884 = vst [vmem:[%s867 + $0x18] sm:$0xf] %v883
      %885 = vst.msk [vmem:[%s867 + $0x1c] sm:$0xf] %vm677, %v756
      %v886 = vld [vmem:[%s867 + $0x20] sm:$0x1]
      %v887 = vsel %vm680, %v757, %v886
      %888 = vst [vmem:[%s867 + $0x20] sm:$0x1] %v887
      %v889 = vld [vmem:[%s867 + $0x24] sm:$0xf]
      %v890 = vsel %vm673, %v764, %v889
      %891 = vst [vmem:[%s867 + $0x24] sm:$0xf] %v890
      %892 = vst.msk [vmem:[%s867 + $0x28] sm:$0xf] %vm677, %v773
      %v893 = vld [vmem:[%s867 + $0x2c] sm:$0x1]
      %v894 = vsel %vm680, %v774, %v893
      %895 = vst [vmem:[%s867 + $0x2c] sm:$0x1] %v894
      %v896 = vld [vmem:[%s867 + $0x30] sm:$0xf]
      %v897 = vsel %vm673, %v781, %v896
      %898 = vst [vmem:[%s867 + $0x30] sm:$0xf] %v897
      %899 = vst.msk [vmem:[%s867 + $0x34] sm:$0xf] %vm677, %v790
      %v900 = vld [vmem:[%s867 + $0x38] sm:$0x1]
      %v901 = vsel %vm680, %v791, %v900
      %902 = vst [vmem:[%s867 + $0x38] sm:$0x1] %v901
      %v903 = vld [vmem:[%s867 + $0x3c] sm:$0xf]
      %v904 = vsel %vm673, %v798, %v903
      %905 = vst [vmem:[%s867 + $0x3c] sm:$0xf] %v904
      %906 = vst.msk [vmem:[%s867 + $0x40] sm:$0xf] %vm677, %v807
      %v907 = vld [vmem:[%s867 + $0x44] sm:$0x1]
      %v908 = vsel %vm680, %v808, %v907
      %909 = vst [vmem:[%s867 + $0x44] sm:$0x1] %v908
      %v910 = vld [vmem:[%s867 + $0x48] sm:$0xf]
      %v911 = vsel %vm673, %v815, %v910
      %912 = vst [vmem:[%s867 + $0x48] sm:$0xf] %v911
      %913 = vst.msk [vmem:[%s867 + $0x4c] sm:$0xf] %vm677, %v824
      %v914 = vld [vmem:[%s867 + $0x50] sm:$0x1]
      %v915 = vsel %vm680, %v825, %v914
      %916 = vst [vmem:[%s867 + $0x50] sm:$0x1] %v915
      %v917 = vld [vmem:[%s867 + $0x54] sm:$0xf]
      %v918 = vsel %vm673, %v832, %v917
      %919 = vst [vmem:[%s867 + $0x54] sm:$0xf] %v918
      %920 = vst.msk [vmem:[%s867 + $0x58] sm:$0xf] %vm677, %v841
      %v921 = vld [vmem:[%s867 + $0x5c] sm:$0x1]
      %v922 = vsel %vm680, %v842, %v921
      %923 = vst [vmem:[%s867 + $0x5c] sm:$0x1] %v922
      %v924 = vld [vmem:[%s494] sm:$0xf]
      %v925 = vld [vmem:[%s494 + $0x4] sm:$0xf]
      %v926 = vld [vmem:[%s494 + $0x8] sm:$0xf]
      %v927 = vld [vmem:[%s494 + $0xc] sm:$0xf]
      %s928 = sshll.u32 %s606, 16
      %s929 = sor.u32 %s606, %s928
      %v930 = vstv %s929
      %v932 = vunpack.c.l.bf16 %v924
      %v933 = vunpack.c.l.bf16 %v925
      %v934 = vunpack.c.l.bf16 %v926
      %v935 = vunpack.c.l.bf16 %v927
      %v936 = vunpack.c.l.bf16 %v930
      %v937 = vmul.f32 %v932, %v936
      %v938 = vmul.f32 %v933, %v936
      %v939 = vmul.f32 %v934, %v936
      %v940 = vmul.f32 %v935, %v936
      %v941 = vpack.c.bf16 %v937, %v937
      %v942 = vpack.c.bf16 %v938, %v938
      %v943 = vpack.c.bf16 %v939, %v939
      %v944 = vpack.c.bf16 %v940, %v940
      %v946 = vshrl.u32 %v941, 16
      %v948 = vrot.slane %v946, 7
      %v949 = vshll.u32 %v941, 16
      %v951 = vor.u32 %v948, %v949
      %v952 = vrot.slane %v948, 4
      %v954 = vshrl.u32 %v942, 16
      %v956 = vrot.slane %v954, 7
      %v957 = vshll.u32 %v942, 16
      %v959 = vor.u32 %v956, %v957
      %v960 = vsel %vm630, %v952, %v959
      %v961 = vrot.slane %v956, 4
      %v963 = vshrl.u32 %v943, 16
      %v965 = vrot.slane %v963, 7
      %v966 = vshll.u32 %v943, 16
      %v968 = vor.u32 %v965, %v966
      %v969 = vrot.slane %v965, 4
      %v971 = vshrl.u32 %v944, 16
      %v973 = vrot.slane %v971, 7
      %v974 = vshll.u32 %v944, 16
      %v976 = vor.u32 %v973, %v974
      %v977 = vsel %vm630, %v969, %v976
      %v978 = vrot.slane %v973, 4
      %s985 = scalar_lea.vmem [#allocation2], 120
      %v986 = vld [vmem:[%s985] sm:$0xf]
      %v987 = vsel %vm673, %v951, %v986
      %988 = vst [vmem:[%s985] sm:$0xf] %v987
      %989 = vst.msk [vmem:[%s985 + $0x4] sm:$0xf] %vm677, %v960
      %v990 = vld [vmem:[%s985 + $0x8] sm:$0x1]
      %v991 = vsel %vm680, %v961, %v990
      %992 = vst [vmem:[%s985 + $0x8] sm:$0x1] %v991
      %v993 = vld [vmem:[%s985 + $0xc] sm:$0xf]
      %v994 = vsel %vm673, %v968, %v993
      %995 = vst [vmem:[%s985 + $0xc] sm:$0xf] %v994
      %996 = vst.msk [vmem:[%s985 + $0x10] sm:$0xf] %vm677, %v977
      %v997 = vld [vmem:[%s985 + $0x14] sm:$0x1]
      %v998 = vsel %vm680, %v978, %v997
      %999 = vst [vmem:[%s985 + $0x14] sm:$0x1] %v998
      %v1000 = vld [vmem:[#allocation2] sm:$0xf]
      %v1001 = vld [vmem:[#allocation2 + $0x4] sm:$0xf]
      %v1002 = vld [vmem:[#allocation2 + $0x8] sm:$0x1]
      %v1003 = vld [vmem:[#allocation2 + $0xc] sm:$0xf]
      %v1004 = vld [vmem:[#allocation2 + $0x10] sm:$0xf]
      %v1005 = vld [vmem:[#allocation2 + $0x14] sm:$0x1]
      %v1006 = vld [vmem:[#allocation2 + $0x18] sm:$0xf]
      %v1007 = vld [vmem:[#allocation2 + $0x1c] sm:$0xf]
      %v1008 = vld [vmem:[#allocation2 + $0x20] sm:$0x1]
      %v1009 = vld [vmem:[#allocation2 + $0x24] sm:$0xf]
      %v1010 = vld [vmem:[#allocation2 + $0x28] sm:$0xf]
      %v1011 = vld [vmem:[#allocation2 + $0x2c] sm:$0x1]
      %v1012 = vld [vmem:[#allocation2 + $0x30] sm:$0xf]
      %v1013 = vld [vmem:[#allocation2 + $0x34] sm:$0xf]
      %v1014 = vld [vmem:[#allocation2 + $0x38] sm:$0x1]
      %v1015 = vld [vmem:[#allocation2 + $0x3c] sm:$0xf]
      %v1016 = vld [vmem:[#allocation2 + $0x40] sm:$0xf]
      %v1017 = vld [vmem:[#allocation2 + $0x44] sm:$0x1]
      %v1018 = vld [vmem:[#allocation2 + $0x48] sm:$0xf]
      %v1019 = vld [vmem:[#allocation2 + $0x4c] sm:$0xf]
      %v1020 = vld [vmem:[#allocation2 + $0x50] sm:$0x1]
      %v1021 = vld [vmem:[#allocation2 + $0x54] sm:$0xf]
      %v1022 = vld [vmem:[#allocation2 + $0x58] sm:$0xf]
      %v1023 = vld [vmem:[#allocation2 + $0x5c] sm:$0x1]
      %v1024 = vld [vmem:[#allocation2 + $0x60] sm:$0xf]
      %v1025 = vld [vmem:[#allocation2 + $0x64] sm:$0xf]
      %v1026 = vld [vmem:[#allocation2 + $0x68] sm:$0x1]
      %v1027 = vld [vmem:[#allocation2 + $0x6c] sm:$0xf]
      %v1028 = vld [vmem:[#allocation2 + $0x70] sm:$0xf]
      %v1029 = vld [vmem:[#allocation2 + $0x74] sm:$0x1]
      %v1030 = vld [vmem:[#allocation2 + $0x78] sm:$0xf]
      %v1031 = vld [vmem:[#allocation2 + $0x7c] sm:$0xf]
      %v1032 = vld [vmem:[#allocation2 + $0x80] sm:$0x1]
      %v1033 = vld [vmem:[#allocation2 + $0x84] sm:$0xf]
      %v1034 = vld [vmem:[#allocation2 + $0x88] sm:$0xf]
      %v1035 = vld [vmem:[#allocation2 + $0x8c] sm:$0x1]
      %vm1036 = vsmask.f32 3328
      %vm1037 = vsmask.f32 7440
      %vm1038 = vmor %vm1036, %vm1037
      %v1040 = vshrl.u32 %v1000, 16
      %v1042 = vrot.slane %v1040, 4
      %v1043 = vshll.u32 %v1000, 16
      %v1045 = vrot.slane %v1043, 5
      %v1046 = vor.u32 %v1042, %v1045
      %v1047 = vrot.slane %v1046, 4
      %v1049 = vshll.u32 %v1001, 16
      %v1051 = vrot.slane %v1049, 5
      %v1052 = vsel %vm1038, %v1047, %v1051
      %v1053 = vshrl.u32 %v1001, 16
      %v1055 = vrot.slane %v1053, 4
      %v1056 = vor.u32 %v1055, %v1051
      %v1057 = vrot.slane %v1056, 4
      %v1059 = vshll.u32 %v1002, 16
      %v1061 = vrot.slane %v1059, 5
      %v1062 = vsel %vm1038, %v1057, %v1061
      %v1064 = vshrl.u32 %v1003, 16
      %v1066 = vrot.slane %v1064, 4
      %v1067 = vshll.u32 %v1003, 16
      %v1069 = vrot.slane %v1067, 5
      %v1070 = vor.u32 %v1066, %v1069
      %v1071 = vrot.slane %v1070, 4
      %v1073 = vshll.u32 %v1004, 16
      %v1075 = vrot.slane %v1073, 5
      %v1076 = vsel %vm1038, %v1071, %v1075
      %v1077 = vshrl.u32 %v1004, 16
      %v1079 = vrot.slane %v1077, 4
      %v1080 = vor.u32 %v1079, %v1075
      %v1081 = vrot.slane %v1080, 4
      %v1083 = vshll.u32 %v1005, 16
      %v1085 = vrot.slane %v1083, 5
      %v1086 = vsel %vm1038, %v1081, %v1085
      %v1088 = vshrl.u32 %v1006, 16
      %v1090 = vrot.slane %v1088, 4
      %v1091 = vshll.u32 %v1006, 16
      %v1093 = vrot.slane %v1091, 5
      %v1094 = vor.u32 %v1090, %v1093
      %v1095 = vrot.slane %v1094, 4
      %v1097 = vshll.u32 %v1007, 16
      %v1099 = vrot.slane %v1097, 5
      %v1100 = vsel %vm1038, %v1095, %v1099
      %v1101 = vshrl.u32 %v1007, 16
      %v1103 = vrot.slane %v1101, 4
      %v1104 = vor.u32 %v1103, %v1099
      %v1105 = vrot.slane %v1104, 4
      %v1107 = vshll.u32 %v1008, 16
      %v1109 = vrot.slane %v1107, 5
      %v1110 = vsel %vm1038, %v1105, %v1109
      %v1112 = vshrl.u32 %v1009, 16
      %v1114 = vrot.slane %v1112, 4
      %v1115 = vshll.u32 %v1009, 16
      %v1117 = vrot.slane %v1115, 5
      %v1118 = vor.u32 %v1114, %v1117
      %v1119 = vrot.slane %v1118, 4
      %v1121 = vshll.u32 %v1010, 16
      %v1123 = vrot.slane %v1121, 5
      %v1124 = vsel %vm1038, %v1119, %v1123
      %v1125 = vshrl.u32 %v1010, 16
      %v1127 = vrot.slane %v1125, 4
      %v1128 = vor.u32 %v1127, %v1123
      %v1129 = vrot.slane %v1128, 4
      %v1131 = vshll.u32 %v1011, 16
      %v1133 = vrot.slane %v1131, 5
      %v1134 = vsel %vm1038, %v1129, %v1133
      %v1136 = vshrl.u32 %v1012, 16
      %v1138 = vrot.slane %v1136, 4
      %v1139 = vshll.u32 %v1012, 16
      %v1141 = vrot.slane %v1139, 5
      %v1142 = vor.u32 %v1138, %v1141
      %v1143 = vrot.slane %v1142, 4
      %v1145 = vshll.u32 %v1013, 16
      %v1147 = vrot.slane %v1145, 5
      %v1148 = vsel %vm1038, %v1143, %v1147
      %v1149 = vshrl.u32 %v1013, 16
      %v1151 = vrot.slane %v1149, 4
      %v1152 = vor.u32 %v1151, %v1147
      %v1153 = vrot.slane %v1152, 4
      %v1155 = vshll.u32 %v1014, 16
      %v1157 = vrot.slane %v1155, 5
      %v1158 = vsel %vm1038, %v1153, %v1157
      %v1160 = vshrl.u32 %v1015, 16
      %v1162 = vrot.slane %v1160, 4
      %v1163 = vshll.u32 %v1015, 16
      %v1165 = vrot.slane %v1163, 5
      %v1166 = vor.u32 %v1162, %v1165
      %v1167 = vrot.slane %v1166, 4
      %v1169 = vshll.u32 %v1016, 16
      %v1171 = vrot.slane %v1169, 5
      %v1172 = vsel %vm1038, %v1167, %v1171
      %v1173 = vshrl.u32 %v1016, 16
      %v1175 = vrot.slane %v1173, 4
      %v1176 = vor.u32 %v1175, %v1171
      %v1177 = vrot.slane %v1176, 4
      %v1179 = vshll.u32 %v1017, 16
      %v1181 = vrot.slane %v1179, 5
      %v1182 = vsel %vm1038, %v1177, %v1181
      %v1184 = vshrl.u32 %v1018, 16
      %v1186 = vrot.slane %v1184, 4
      %v1187 = vshll.u32 %v1018, 16
      %v1189 = vrot.slane %v1187, 5
      %v1190 = vor.u32 %v1186, %v1189
      %v1191 = vrot.slane %v1190, 4
      %v1193 = vshll.u32 %v1019, 16
      %v1195 = vrot.slane %v1193, 5
      %v1196 = vsel %vm1038, %v1191, %v1195
      %v1197 = vshrl.u32 %v1019, 16
      %v1199 = vrot.slane %v1197, 4
      %v1200 = vor.u32 %v1199, %v1195
      %v1201 = vrot.slane %v1200, 4
      %v1203 = vshll.u32 %v1020, 16
      %v1205 = vrot.slane %v1203, 5
      %v1206 = vsel %vm1038, %v1201, %v1205
      %v1208 = vshrl.u32 %v1021, 16
      %v1210 = vrot.slane %v1208, 4
      %v1211 = vshll.u32 %v1021, 16
      %v1213 = vrot.slane %v1211, 5
      %v1214 = vor.u32 %v1210, %v1213
      %v1215 = vrot.slane %v1214, 4
      %v1217 = vshll.u32 %v1022, 16
      %v1219 = vrot.slane %v1217, 5
      %v1220 = vsel %vm1038, %v1215, %v1219
      %v1221 = vshrl.u32 %v1022, 16
      %v1223 = vrot.slane %v1221, 4
      %v1224 = vor.u32 %v1223, %v1219
      %v1225 = vrot.slane %v1224, 4
      %v1227 = vshll.u32 %v1023, 16
      %v1229 = vrot.slane %v1227, 5
      %v1230 = vsel %vm1038, %v1225, %v1229
      %v1232 = vshrl.u32 %v1024, 16
      %v1234 = vrot.slane %v1232, 4
      %v1235 = vshll.u32 %v1024, 16
      %v1237 = vrot.slane %v1235, 5
      %v1238 = vor.u32 %v1234, %v1237
      %v1239 = vrot.slane %v1238, 4
      %v1241 = vshll.u32 %v1025, 16
      %v1243 = vrot.slane %v1241, 5
      %v1244 = vsel %vm1038, %v1239, %v1243
      %v1245 = vshrl.u32 %v1025, 16
      %v1247 = vrot.slane %v1245, 4
      %v1248 = vor.u32 %v1247, %v1243
      %v1249 = vrot.slane %v1248, 4
      %v1251 = vshll.u32 %v1026, 16
      %v1253 = vrot.slane %v1251, 5
      %v1254 = vsel %vm1038, %v1249, %v1253
      %v1256 = vshrl.u32 %v1027, 16
      %v1258 = vrot.slane %v1256, 4
      %v1259 = vshll.u32 %v1027, 16
      %v1261 = vrot.slane %v1259, 5
      %v1262 = vor.u32 %v1258, %v1261
      %v1263 = vrot.slane %v1262, 4
      %v1265 = vshll.u32 %v1028, 16
      %v1267 = vrot.slane %v1265, 5
      %v1268 = vsel %vm1038, %v1263, %v1267
      %v1269 = vshrl.u32 %v1028, 16
      %v1271 = vrot.slane %v1269, 4
      %v1272 = vor.u32 %v1271, %v1267
      %v1273 = vrot.slane %v1272, 4
      %v1275 = vshll.u32 %v1029, 16
      %v1277 = vrot.slane %v1275, 5
      %v1278 = vsel %vm1038, %v1273, %v1277
      %vm1309 = vcmask 1042432
      %vm1310 = vcmask 1046532
      %vm1311 = vmor %vm1309, %vm1310
      %v1312 = vrot.slane %v1000, 5
      %v1313 = vrot.slane %v1312, 4
      %v1314 = vrot.slane %v1001, 5
      %v1315 = vsel %vm1311, %v1313, %v1314
      %v1316 = vrot.slane %v1314, 4
      %v1317 = vrot.slane %v1002, 5
      %v1318 = vsel %vm1311, %v1316, %v1317
      %v1319 = vrot.slane %v1003, 5
      %v1320 = vrot.slane %v1319, 4
      %v1321 = vrot.slane %v1004, 5
      %v1322 = vsel %vm1311, %v1320, %v1321
      %v1323 = vrot.slane %v1321, 4
      %v1324 = vrot.slane %v1005, 5
      %v1325 = vsel %vm1311, %v1323, %v1324
      %v1326 = vrot.slane %v1006, 5
      %v1327 = vrot.slane %v1326, 4
      %v1328 = vrot.slane %v1007, 5
      %v1329 = vsel %vm1311, %v1327, %v1328
      %v1330 = vrot.slane %v1328, 4
      %v1331 = vrot.slane %v1008, 5
      %v1332 = vsel %vm1311, %v1330, %v1331
      %v1333 = vrot.slane %v1009, 5
      %v1334 = vrot.slane %v1333, 4
      %v1335 = vrot.slane %v1010, 5
      %v1336 = vsel %vm1311, %v1334, %v1335
      %v1337 = vrot.slane %v1335, 4
      %v1338 = vrot.slane %v1011, 5
      %v1339 = vsel %vm1311, %v1337, %v1338
      %v1340 = vrot.slane %v1012, 5
      %v1341 = vrot.slane %v1340, 4
      %v1342 = vrot.slane %v1013, 5
      %v1343 = vsel %vm1311, %v1341, %v1342
      %v1344 = vrot.slane %v1342, 4
      %v1345 = vrot.slane %v1014, 5
      %v1346 = vsel %vm1311, %v1344, %v1345
      %v1347 = vrot.slane %v1015, 5
      %v1348 = vrot.slane %v1347, 4
      %v1349 = vrot.slane %v1016, 5
      %v1350 = vsel %vm1311, %v1348, %v1349
      %v1351 = vrot.slane %v1349, 4
      %v1352 = vrot.slane %v1017, 5
      %v1353 = vsel %vm1311, %v1351, %v1352
      %v1354 = vrot.slane %v1018, 5
      %v1355 = vrot.slane %v1354, 4
      %v1356 = vrot.slane %v1019, 5
      %v1357 = vsel %vm1311, %v1355, %v1356
      %v1358 = vrot.slane %v1356, 4
      %v1359 = vrot.slane %v1020, 5
      %v1360 = vsel %vm1311, %v1358, %v1359
      %v1361 = vrot.slane %v1021, 5
      %v1362 = vrot.slane %v1361, 4
      %v1363 = vrot.slane %v1022, 5
      %v1364 = vsel %vm1311, %v1362, %v1363
      %v1365 = vrot.slane %v1363, 4
      %v1366 = vrot.slane %v1023, 5
      %v1367 = vsel %vm1311, %v1365, %v1366
      %v1368 = vrot.slane %v1024, 5
      %v1369 = vrot.slane %v1368, 4
      %v1370 = vrot.slane %v1025, 5
      %v1371 = vsel %vm1311, %v1369, %v1370
      %v1372 = vrot.slane %v1370, 4
      %v1373 = vrot.slane %v1026, 5
      %v1374 = vsel %vm1311, %v1372, %v1373
      %v1375 = vrot.slane %v1027, 5
      %v1376 = vrot.slane %v1375, 4
      %v1377 = vrot.slane %v1028, 5
      %v1378 = vsel %vm1311, %v1376, %v1377
      %v1379 = vrot.slane %v1377, 4
      %v1380 = vrot.slane %v1029, 5
      %v1381 = vsel %vm1311, %v1379, %v1380
      %v1382 = vunpack.c.l.b16 %v1000
      %v1383 = vunpack.c.l.b16 %v1001
      %v1384 = vunpack.c.l.b16 %v1003
      %v1385 = vunpack.c.l.b16 %v1004
      %v1386 = vunpack.c.l.b16 %v1006
      %v1387 = vunpack.c.l.b16 %v1007
      %v1388 = vunpack.c.l.b16 %v1009
      %v1389 = vunpack.c.l.b16 %v1010
      %v1390 = vunpack.c.l.b16 %v1012
      %v1391 = vunpack.c.l.b16 %v1013
      %v1392 = vunpack.c.l.b16 %v1015
      %v1393 = vunpack.c.l.b16 %v1016
      %v1394 = vunpack.c.l.b16 %v1018
      %v1395 = vunpack.c.l.b16 %v1019
      %v1396 = vunpack.c.l.b16 %v1021
      %v1397 = vunpack.c.l.b16 %v1022
      %v1398 = vunpack.c.l.b16 %v1024
      %v1399 = vunpack.c.l.b16 %v1025
      %v1400 = vunpack.c.l.b16 %v1027
      %v1401 = vunpack.c.l.b16 %v1028
      %v1402 = vpack.c.b16 %v1383, %v1382
      %v1403 = vpack.c.b16 %v1385, %v1384
      %v1404 = vpack.c.b16 %v1387, %v1386
      %v1405 = vpack.c.b16 %v1389, %v1388
      %v1406 = vpack.c.b16 %v1391, %v1390
      %v1407 = vpack.c.b16 %v1393, %v1392
      %v1408 = vpack.c.b16 %v1395, %v1394
      %v1409 = vpack.c.b16 %v1397, %v1396
      %v1410 = vpack.c.b16 %v1399, %v1398
      %v1411 = vpack.c.b16 %v1401, %v1400
      %v1412 = vunpack.c.l.b16 %v1052
      %v1413 = vunpack.c.l.b16 %v1062
      %v1414 = vunpack.c.l.b16 %v1076
      %v1415 = vunpack.c.l.b16 %v1086
      %v1416 = vunpack.c.l.b16 %v1100
      %v1417 = vunpack.c.l.b16 %v1110
      %v1418 = vunpack.c.l.b16 %v1124
      %v1419 = vunpack.c.l.b16 %v1134
      %v1420 = vunpack.c.l.b16 %v1148
      %v1421 = vunpack.c.l.b16 %v1158
      %v1422 = vunpack.c.l.b16 %v1172
      %v1423 = vunpack.c.l.b16 %v1182
      %v1424 = vunpack.c.l.b16 %v1196
      %v1425 = vunpack.c.l.b16 %v1206
      %v1426 = vunpack.c.l.b16 %v1220
      %v1427 = vunpack.c.l.b16 %v1230
      %v1428 = vunpack.c.l.b16 %v1244
      %v1429 = vunpack.c.l.b16 %v1254
      %v1430 = vunpack.c.l.b16 %v1268
      %v1431 = vunpack.c.l.b16 %v1278
      %v1432 = vpack.c.b16 %v1413, %v1412
      %v1433 = vpack.c.b16 %v1415, %v1414
      %v1434 = vpack.c.b16 %v1417, %v1416
      %v1435 = vpack.c.b16 %v1419, %v1418
      %v1436 = vpack.c.b16 %v1421, %v1420
      %v1437 = vpack.c.b16 %v1423, %v1422
      %v1438 = vpack.c.b16 %v1425, %v1424
      %v1439 = vpack.c.b16 %v1427, %v1426
      %v1440 = vpack.c.b16 %v1429, %v1428
      %v1441 = vpack.c.b16 %v1431, %v1430
      %1442 = vrot.lane.b32.xlu0 %v1432, 4
      %v1443 = vpop.permute.xlu0 %1442
      %1444 = vrot.lane.b32.xlu0 %v1433, 4
      %v1445 = vpop.permute.xlu0 %1444
      %1446 = vrot.lane.b32.xlu0 %v1434, 4
      %v1447 = vpop.permute.xlu0 %1446
      %1448 = vrot.lane.b32.xlu0 %v1435, 4
      %v1449 = vpop.permute.xlu0 %1448
      %1450 = vrot.lane.b32.xlu0 %v1436, 4
      %v1451 = vpop.permute.xlu0 %1450
      %1452 = vrot.lane.b32.xlu0 %v1437, 4
      %v1453 = vpop.permute.xlu0 %1452
      %1454 = vrot.lane.b32.xlu0 %v1438, 4
      %v1455 = vpop.permute.xlu0 %1454
      %1456 = vrot.lane.b32.xlu0 %v1439, 4
      %v1457 = vpop.permute.xlu0 %1456
      %1458 = vrot.lane.b32.xlu0 %v1440, 4
      %v1459 = vpop.permute.xlu0 %1458
      %1460 = vrot.lane.b32.xlu0 %v1441, 4
      %v1461 = vpop.permute.xlu0 %1460
      %v1462 = vunpack.c.l.b16 %v1315
      %v1463 = vunpack.c.l.b16 %v1318
      %v1464 = vunpack.c.l.b16 %v1322
      %v1465 = vunpack.c.l.b16 %v1325
      %v1466 = vunpack.c.l.b16 %v1329
      %v1467 = vunpack.c.l.b16 %v1332
      %v1468 = vunpack.c.l.b16 %v1336
      %v1469 = vunpack.c.l.b16 %v1339
      %v1470 = vunpack.c.l.b16 %v1343
      %v1471 = vunpack.c.l.b16 %v1346
      %v1472 = vunpack.c.l.b16 %v1350
      %v1473 = vunpack.c.l.b16 %v1353
      %v1474 = vunpack.c.l.b16 %v1357
      %v1475 = vunpack.c.l.b16 %v1360
      %v1476 = vunpack.c.l.b16 %v1364
      %v1477 = vunpack.c.l.b16 %v1367
      %v1478 = vunpack.c.l.b16 %v1371
      %v1479 = vunpack.c.l.b16 %v1374
      %v1480 = vunpack.c.l.b16 %v1378
      %v1481 = vunpack.c.l.b16 %v1381
      %v1482 = vpack.c.b16 %v1463, %v1462
      %v1483 = vpack.c.b16 %v1465, %v1464
      %v1484 = vpack.c.b16 %v1467, %v1466
      %v1485 = vpack.c.b16 %v1469, %v1468
      %v1486 = vpack.c.b16 %v1471, %v1470
      %v1487 = vpack.c.b16 %v1473, %v1472
      %v1488 = vpack.c.b16 %v1475, %v1474
      %v1489 = vpack.c.b16 %v1477, %v1476
      %v1490 = vpack.c.b16 %v1479, %v1478
      %v1491 = vpack.c.b16 %v1481, %v1480
      %1492 = vrot.lane.b32.xlu0 %v1482, 8
      %v1493 = vpop.permute.xlu0 %1492
      %1494 = vrot.lane.b32.xlu0 %v1483, 8
      %v1495 = vpop.permute.xlu0 %1494
      %1496 = vrot.lane.b32.xlu0 %v1484, 8
      %v1497 = vpop.permute.xlu0 %1496
      %1498 = vrot.lane.b32.xlu0 %v1485, 8
      %v1499 = vpop.permute.xlu0 %1498
      %1500 = vrot.lane.b32.xlu0 %v1486, 8
      %v1501 = vpop.permute.xlu0 %1500
      %1502 = vrot.lane.b32.xlu0 %v1487, 8
      %v1503 = vpop.permute.xlu0 %1502
      %1504 = vrot.lane.b32.xlu0 %v1488, 8
      %v1505 = vpop.permute.xlu0 %1504
      %1506 = vrot.lane.b32.xlu0 %v1489, 8
      %v1507 = vpop.permute.xlu0 %1506
      %1508 = vrot.lane.b32.xlu0 %v1490, 8
      %v1509 = vpop.permute.xlu0 %1508
      %1510 = vrot.lane.b32.xlu0 %v1491, 8
      %v1511 = vpop.permute.xlu0 %1510
      %vm1512 = vcmask 31744
      %v1515 = vsel %vm1512, %v1402, %v1443
      %v1518 = vsel %vm1512, %v1403, %v1445
      %v1521 = vsel %vm1512, %v1404, %v1447
      %v1524 = vsel %vm1512, %v1405, %v1449
      %v1527 = vsel %vm1512, %v1406, %v1451
      %v1530 = vsel %vm1512, %v1407, %v1453
      %v1533 = vsel %vm1512, %v1408, %v1455
      %v1536 = vsel %vm1512, %v1409, %v1457
      %v1539 = vsel %vm1512, %v1410, %v1459
      %v1542 = vsel %vm1512, %v1411, %v1461
      %vm1543 = vcmask 64512
      %v1545 = vsel %vm1543, %v1515, %v1493
      %v1547 = vsel %vm1543, %v1518, %v1495
      %v1549 = vsel %vm1543, %v1521, %v1497
      %v1551 = vsel %vm1543, %v1524, %v1499
      %v1553 = vsel %vm1543, %v1527, %v1501
      %v1555 = vsel %vm1543, %v1530, %v1503
      %v1557 = vsel %vm1543, %v1533, %v1505
      %v1559 = vsel %vm1543, %v1536, %v1507
      %v1561 = vsel %vm1543, %v1539, %v1509
      %v1563 = vsel %vm1543, %v1542, %v1511
      %v1564 = vld [vmem:[%s3] sm:$0xf]
      %v1565 = vld [vmem:[%s3 + $0x4] sm:$0x3]
      %v1567 = vshrl.u32 %v1030, 16
      %v1569 = vrot.slane %v1567, 4
      %v1570 = vshll.u32 %v1030, 16
      %v1572 = vrot.slane %v1570, 5
      %v1573 = vor.u32 %v1569, %v1572
      %v1574 = vrot.slane %v1573, 4
      %v1576 = vshll.u32 %v1031, 16
      %v1578 = vrot.slane %v1576, 5
      %v1579 = vsel %vm1038, %v1574, %v1578
      %v1580 = vshrl.u32 %v1031, 16
      %v1582 = vrot.slane %v1580, 4
      %v1583 = vor.u32 %v1582, %v1578
      %v1584 = vrot.slane %v1583, 4
      %v1586 = vshll.u32 %v1032, 16
      %v1588 = vrot.slane %v1586, 5
      %v1589 = vsel %vm1038, %v1584, %v1588
      %v1593 = vrot.slane %v1030, 5
      %v1594 = vrot.slane %v1593, 4
      %v1595 = vrot.slane %v1031, 5
      %v1596 = vsel %vm1311, %v1594, %v1595
      %v1597 = vrot.slane %v1595, 4
      %v1598 = vrot.slane %v1032, 5
      %v1599 = vsel %vm1311, %v1597, %v1598
      %v1600 = vunpack.c.l.b16 %v1030
      %v1601 = vunpack.c.l.b16 %v1031
      %v1602 = vpack.c.b16 %v1601, %v1600
      %v1603 = vunpack.c.l.b16 %v1579
      %v1604 = vunpack.c.l.b16 %v1589
      %v1605 = vpack.c.b16 %v1604, %v1603
      %1606 = vrot.lane.b32.xlu0 %v1605, 4
      %v1607 = vpop.permute.xlu0 %1606
      %v1608 = vunpack.c.l.b16 %v1596
      %v1609 = vunpack.c.l.b16 %v1599
      %v1610 = vpack.c.b16 %v1609, %v1608
      %1611 = vrot.lane.b32.xlu0 %v1610, 8
      %v1612 = vpop.permute.xlu0 %1611
      %v1615 = vsel %vm1512, %v1602, %v1607
      %v1617 = vsel %vm1543, %v1615, %v1612
      %s1618 = scalar_lea.vmem %s3, 8
      %v1619 = vld [vmem:[%s1618] sm:$0xf]
      %v1620 = vld [vmem:[%s1618 + $0x4] sm:$0x3]
      %v1623 = vunpack.c.l.b16 %v1619
      %v1624 = vunpack.c.l.b16 %v1620
      %v1625 = vpack.c.b16 %v1624, %v1623
      %vm1626 = vcmask 97280
      %v1627 = vsel %vm1626, %v1547, 0
      %v1629 = vsel %vm1626, %v1549, 0
      %v1631 = vsel %vm1626, %v1551, 0
      %v1633 = vsel %vm1626, %v1553, 0
      %v1635 = vsel %vm1626, %v1555, 0
      %v1637 = vsel %vm1626, %v1557, 0
      %v1639 = vsel %vm1626, %v1559, 0
      %v1641 = vsel %vm1626, %v1561, 0
      %v1643 = vsel %vm1626, %v1563, 0
      %v1645 = vsel %vm1626, %v1617, 0
      %vm1647 = vcmask 1045504
      %v1649 = vsel %vm1647, %v1625, 0
      %1651 = vmatpush.bf16.msra.mxu0 0
      %1652 = vmatpush.bf16.msra.mxu0 0
      %1653 = vmatpush.bf16.msra.mxu0 0
      %1654 = vmatpush.bf16.msra.mxu0 0
      %1655 = vmatpush.bf16.msra.mxu0 0
      %1656 = vmatpush.bf16.msra.mxu0 0
      %1657 = vmatpush.bf16.msra.mxu0 0
      %1658 = vmatpush.bf16.msra.mxu0 %v1649
      %1659 = vmatmul.bf16.gmra.mxu0 %v1627
      %v1660 = vpop.f32.mrf.mxu0
      %v1661 = vadd.f32 0.0, %v1660
      %v1662 = vpop.f32.mrf.mxu0
      %v1663 = vadd.f32 0.0, %v1662
      %1664 = vmatmul.bf16.gmra.mxu0 %v1629
      %v1665 = vpop.f32.mrf.mxu0
      %v1666 = vadd.f32 0.0, %v1665
      %v1667 = vpop.f32.mrf.mxu0
      %v1668 = vadd.f32 0.0, %v1667
      %1669 = vmatmul.bf16.gmra.mxu0 %v1631
      %v1670 = vpop.f32.mrf.mxu0
      %v1671 = vadd.f32 0.0, %v1670
      %v1672 = vpop.f32.mrf.mxu0
      %v1673 = vadd.f32 0.0, %v1672
      %1674 = vmatmul.bf16.gmra.mxu0 %v1633
      %v1675 = vpop.f32.mrf.mxu0
      %v1676 = vadd.f32 0.0, %v1675
      %v1677 = vpop.f32.mrf.mxu0
      %v1678 = vadd.f32 0.0, %v1677
      %1679 = vmatmul.bf16.gmra.mxu0 %v1635
      %v1680 = vpop.f32.mrf.mxu0
      %v1681 = vadd.f32 0.0, %v1680
      %v1682 = vpop.f32.mrf.mxu0
      %v1683 = vadd.f32 0.0, %v1682
      %1684 = vmatmul.bf16.gmra.mxu0 %v1637
      %v1685 = vpop.f32.mrf.mxu0
      %v1686 = vadd.f32 0.0, %v1685
      %v1687 = vpop.f32.mrf.mxu0
      %v1688 = vadd.f32 0.0, %v1687
      %1689 = vmatmul.bf16.gmra.mxu0 %v1639
      %v1690 = vpop.f32.mrf.mxu0
      %v1691 = vadd.f32 0.0, %v1690
      %v1692 = vpop.f32.mrf.mxu0
      %v1693 = vadd.f32 0.0, %v1692
      %1694 = vmatmul.bf16.gmra.mxu0 %v1641
      %v1695 = vpop.f32.mrf.mxu0
      %v1696 = vadd.f32 0.0, %v1695
      %v1697 = vpop.f32.mrf.mxu0
      %v1698 = vadd.f32 0.0, %v1697
      %1699 = vmatmul.bf16.gmra.mxu0 %v1643
      %v1700 = vpop.f32.mrf.mxu0
      %v1701 = vadd.f32 0.0, %v1700
      %v1702 = vpop.f32.mrf.mxu0
      %v1703 = vadd.f32 0.0, %v1702
      %1704 = vmatmul.bf16.gmra.mxu0 %v1645
      %v1705 = vpop.f32.mrf.mxu0
      %v1706 = vadd.f32 0.0, %v1705
      %v1707 = vpop.f32.mrf.mxu0
      %v1708 = vadd.f32 0.0, %v1707
      %1709 = vdwg.mxu0
      %v1712 = vunpack.c.l.b16 %v1564
      %v1713 = vunpack.c.l.b16 %v1565
      %v1714 = vpack.c.b16 %v1713, %v1712
      %v1715 = vsel %vm1626, %v1545, 0
      %v1718 = vsel %vm1647, %v1714, 0
      %1720 = vmatpush.bf16.msra.mxu0 0
      %1721 = vmatpush.bf16.msra.mxu0 0
      %1722 = vmatpush.bf16.msra.mxu0 0
      %1723 = vmatpush.bf16.msra.mxu0 0
      %1724 = vmatpush.bf16.msra.mxu0 0
      %1725 = vmatpush.bf16.msra.mxu0 0
      %1726 = vmatpush.bf16.msra.mxu0 0
      %1727 = vmatpush.bf16.msra.mxu0 %v1718
      %1728 = vmatmul.bf16.gmra.mxu0 %v1715
      %v1729 = vpop.f32.mrf.mxu0
      %v1730 = vadd.f32 %v1661, %v1729
      %v1731 = vpop.f32.mrf.mxu0
      %v1732 = vadd.f32 %v1663, %v1731
      %1733 = vmatmul.bf16.gmra.mxu0 %v1627
      %v1734 = vpop.f32.mrf.mxu0
      %v1735 = vadd.f32 %v1666, %v1734
      %v1736 = vpop.f32.mrf.mxu0
      %v1737 = vadd.f32 %v1668, %v1736
      %1738 = vmatmul.bf16.gmra.mxu0 %v1629
      %v1739 = vpop.f32.mrf.mxu0
      %v1740 = vadd.f32 %v1671, %v1739
      %v1741 = vpop.f32.mrf.mxu0
      %v1742 = vadd.f32 %v1673, %v1741
      %1743 = vmatmul.bf16.gmra.mxu0 %v1631
      %v1744 = vpop.f32.mrf.mxu0
      %v1745 = vadd.f32 %v1676, %v1744
      %v1746 = vpop.f32.mrf.mxu0
      %v1747 = vadd.f32 %v1678, %v1746
      %1748 = vmatmul.bf16.gmra.mxu0 %v1633
      %v1749 = vpop.f32.mrf.mxu0
      %v1750 = vadd.f32 %v1681, %v1749
      %v1751 = vpop.f32.mrf.mxu0
      %v1752 = vadd.f32 %v1683, %v1751
      %1753 = vmatmul.bf16.gmra.mxu0 %v1635
      %v1754 = vpop.f32.mrf.mxu0
      %v1755 = vadd.f32 %v1686, %v1754
      %v1756 = vpop.f32.mrf.mxu0
      %v1757 = vadd.f32 %v1688, %v1756
      %1758 = vmatmul.bf16.gmra.mxu0 %v1637
      %v1759 = vpop.f32.mrf.mxu0
      %v1760 = vadd.f32 %v1691, %v1759
      %v1761 = vpop.f32.mrf.mxu0
      %v1762 = vadd.f32 %v1693, %v1761
      %1763 = vmatmul.bf16.gmra.mxu0 %v1639
      %v1764 = vpop.f32.mrf.mxu0
      %v1765 = vadd.f32 %v1696, %v1764
      %v1766 = vpop.f32.mrf.mxu0
      %v1767 = vadd.f32 %v1698, %v1766
      %1768 = vmatmul.bf16.gmra.mxu0 %v1641
      %v1769 = vpop.f32.mrf.mxu0
      %v1770 = vadd.f32 %v1701, %v1769
      %v1771 = vpop.f32.mrf.mxu0
      %v1772 = vadd.f32 %v1703, %v1771
      %1773 = vmatmul.bf16.gmra.mxu0 %v1643
      %v1774 = vpop.f32.mrf.mxu0
      %v1775 = vadd.f32 %v1706, %v1774
      %v1776 = vpop.f32.mrf.mxu0
      %v1777 = vadd.f32 %v1708, %v1776
      %1778 = vdwg.mxu0
      %v1780 = vshrl.u32 %v1033, 16
      %v1782 = vrot.slane %v1780, 4
      %v1783 = vshll.u32 %v1033, 16
      %v1785 = vrot.slane %v1783, 5
      %v1786 = vor.u32 %v1782, %v1785
      %v1787 = vrot.slane %v1786, 4
      %v1789 = vshll.u32 %v1034, 16
      %v1791 = vrot.slane %v1789, 5
      %v1792 = vsel %vm1038, %v1787, %v1791
      %v1793 = vshrl.u32 %v1034, 16
      %v1795 = vrot.slane %v1793, 4
      %v1796 = vor.u32 %v1795, %v1791
      %v1797 = vrot.slane %v1796, 4
      %v1799 = vshll.u32 %v1035, 16
      %v1801 = vrot.slane %v1799, 5
      %v1802 = vsel %vm1038, %v1797, %v1801
      %v1806 = vrot.slane %v1033, 5
      %v1807 = vrot.slane %v1806, 4
      %v1808 = vrot.slane %v1034, 5
      %v1809 = vsel %vm1311, %v1807, %v1808
      %v1810 = vrot.slane %v1808, 4
      %v1811 = vrot.slane %v1035, 5
      %v1812 = vsel %vm1311, %v1810, %v1811
      %v1813 = vunpack.c.l.b16 %v1033
      %v1814 = vunpack.c.l.b16 %v1034
      %v1815 = vpack.c.b16 %v1814, %v1813
      %v1816 = vunpack.c.l.b16 %v1792
      %v1817 = vunpack.c.l.b16 %v1802
      %v1818 = vpack.c.b16 %v1817, %v1816
      %1819 = vrot.lane.b32.xlu0 %v1818, 4
      %v1820 = vpop.permute.xlu0 %1819
      %v1821 = vunpack.c.l.b16 %v1809
      %v1822 = vunpack.c.l.b16 %v1812
      %v1823 = vpack.c.b16 %v1822, %v1821
      %1824 = vrot.lane.b32.xlu0 %v1823, 8
      %v1825 = vpop.permute.xlu0 %1824
      %v1828 = vsel %vm1512, %v1815, %v1820
      %v1830 = vsel %vm1543, %v1828, %v1825
      %s1831 = scalar_lea.vmem %s3, 16
      %v1832 = vld [vmem:[%s1831] sm:$0xf]
      %v1833 = vld [vmem:[%s1831 + $0x4] sm:$0x3]
      %v1836 = vunpack.c.l.b16 %v1832
      %v1837 = vunpack.c.l.b16 %v1833
      %v1838 = vpack.c.b16 %v1837, %v1836
      %v1839 = vsel %vm1626, %v1830, 0
      %v1842 = vsel %vm1647, %v1838, 0
      %1844 = vmatpush.bf16.msra.mxu0 0
      %1845 = vmatpush.bf16.msra.mxu0 0
      %1846 = vmatpush.bf16.msra.mxu0 0
      %1847 = vmatpush.bf16.msra.mxu0 0
      %1848 = vmatpush.bf16.msra.mxu0 0
      %1849 = vmatpush.bf16.msra.mxu0 0
      %1850 = vmatpush.bf16.msra.mxu0 0
      %1851 = vmatpush.bf16.msra.mxu0 %v1842
      %1852 = vmatmul.bf16.gmra.mxu0 %v1629
      %v1853 = vpop.f32.mrf.mxu0
      %v1854 = vadd.f32 0.0, %v1853
      %v1855 = vpop.f32.mrf.mxu0
      %v1856 = vadd.f32 0.0, %v1855
      %1857 = vmatmul.bf16.gmra.mxu0 %v1631
      %v1858 = vpop.f32.mrf.mxu0
      %v1859 = vadd.f32 0.0, %v1858
      %v1860 = vpop.f32.mrf.mxu0
      %v1861 = vadd.f32 0.0, %v1860
      %1862 = vmatmul.bf16.gmra.mxu0 %v1633
      %v1863 = vpop.f32.mrf.mxu0
      %v1864 = vadd.f32 0.0, %v1863
      %v1865 = vpop.f32.mrf.mxu0
      %v1866 = vadd.f32 0.0, %v1865
      %1867 = vmatmul.bf16.gmra.mxu0 %v1635
      %v1868 = vpop.f32.mrf.mxu0
      %v1869 = vadd.f32 0.0, %v1868
      %v1870 = vpop.f32.mrf.mxu0
      %v1871 = vadd.f32 0.0, %v1870
      %1872 = vmatmul.bf16.gmra.mxu0 %v1637
      %v1873 = vpop.f32.mrf.mxu0
      %v1874 = vadd.f32 0.0, %v1873
      %v1875 = vpop.f32.mrf.mxu0
      %v1876 = vadd.f32 0.0, %v1875
      %1877 = vmatmul.bf16.gmra.mxu0 %v1639
      %v1878 = vpop.f32.mrf.mxu0
      %v1879 = vadd.f32 0.0, %v1878
      %v1880 = vpop.f32.mrf.mxu0
      %v1881 = vadd.f32 0.0, %v1880
      %1882 = vmatmul.bf16.gmra.mxu0 %v1641
      %v1883 = vpop.f32.mrf.mxu0
      %v1884 = vadd.f32 0.0, %v1883
      %v1885 = vpop.f32.mrf.mxu0
      %v1886 = vadd.f32 0.0, %v1885
      %1887 = vmatmul.bf16.gmra.mxu0 %v1643
      %v1888 = vpop.f32.mrf.mxu0
      %v1889 = vadd.f32 0.0, %v1888
      %v1890 = vpop.f32.mrf.mxu0
      %v1891 = vadd.f32 0.0, %v1890
      %1892 = vmatmul.bf16.gmra.mxu0 %v1645
      %v1893 = vpop.f32.mrf.mxu0
      %v1894 = vadd.f32 0.0, %v1893
      %v1895 = vpop.f32.mrf.mxu0
      %v1896 = vadd.f32 0.0, %v1895
      %1897 = vmatmul.bf16.gmra.mxu0 %v1839
      %v1898 = vpop.f32.mrf.mxu0
      %v1899 = vadd.f32 0.0, %v1898
      %v1900 = vpop.f32.mrf.mxu0
      %v1901 = vadd.f32 0.0, %v1900
      %1902 = vdwg.mxu0
      %v1903 = vadd.f32 %v1730, %v1854
      %v1904 = vadd.f32 %v1732, %v1856
      %v1905 = vadd.f32 %v1735, %v1859
      %v1906 = vadd.f32 %v1737, %v1861
      %v1907 = vadd.f32 %v1740, %v1864
      %v1908 = vadd.f32 %v1742, %v1866
      %v1909 = vadd.f32 %v1745, %v1869
      %v1910 = vadd.f32 %v1747, %v1871
      %v1911 = vadd.f32 %v1750, %v1874
      %v1912 = vadd.f32 %v1752, %v1876
      %v1913 = vadd.f32 %v1755, %v1879
      %v1914 = vadd.f32 %v1757, %v1881
      %v1915 = vadd.f32 %v1760, %v1884
      %v1916 = vadd.f32 %v1762, %v1886
      %v1917 = vadd.f32 %v1765, %v1889
      %v1918 = vadd.f32 %v1767, %v1891
      %v1919 = vadd.f32 %v1770, %v1894
      %v1920 = vadd.f32 %v1772, %v1896
      %v1921 = vadd.f32 %v1775, %v1899
      %v1922 = vadd.f32 %v1777, %v1901
      %v1923 = vld [vmem:[%s4] sm:$0x1]
      %v1925 = vperm.slane %v1923, 0
      %v1927 = vmul.f32 %v1903, %v1925
      %v1928 = vmul.f32 %v1904, %v1925
      %v1929 = vmul.f32 %v1905, %v1925
      %v1930 = vmul.f32 %v1906, %v1925
      %v1931 = vmul.f32 %v1907, %v1925
      %v1932 = vmul.f32 %v1908, %v1925
      %v1933 = vmul.f32 %v1909, %v1925
      %v1934 = vmul.f32 %v1910, %v1925
      %v1935 = vmul.f32 %v1911, %v1925
      %v1936 = vmul.f32 %v1912, %v1925
      %v1937 = vmul.f32 %v1913, %v1925
      %v1938 = vmul.f32 %v1914, %v1925
      %v1939 = vmul.f32 %v1915, %v1925
      %v1940 = vmul.f32 %v1916, %v1925
      %v1941 = vmul.f32 %v1917, %v1925
      %v1942 = vmul.f32 %v1918, %v1925
      %v1943 = vmul.f32 %v1919, %v1925
      %v1944 = vmul.f32 %v1920, %v1925
      %v1945 = vmul.f32 %v1921, %v1925
      %v1946 = vmul.f32 %v1922, %v1925
      %v1947 = vld [vmem:[%s5] sm:$0x1]
      %v1949 = vperm.slane %v1947, 0
      %v1951 = vadd.f32 %v1927, %v1949
      %v1952 = vadd.f32 %v1928, %v1949
      %v1953 = vadd.f32 %v1929, %v1949
      %v1954 = vadd.f32 %v1930, %v1949
      %v1955 = vadd.f32 %v1931, %v1949
      %v1956 = vadd.f32 %v1932, %v1949
      %v1957 = vadd.f32 %v1933, %v1949
      %v1958 = vadd.f32 %v1934, %v1949
      %v1959 = vadd.f32 %v1935, %v1949
      %v1960 = vadd.f32 %v1936, %v1949
      %v1961 = vadd.f32 %v1937, %v1949
      %v1962 = vadd.f32 %v1938, %v1949
      %v1963 = vadd.f32 %v1939, %v1949
      %v1964 = vadd.f32 %v1940, %v1949
      %v1965 = vadd.f32 %v1941, %v1949
      %v1966 = vadd.f32 %v1942, %v1949
      %v1967 = vadd.f32 %v1943, %v1949
      %v1968 = vadd.f32 %v1944, %v1949
      %v1969 = vadd.f32 %v1945, %v1949
      %v1970 = vadd.f32 %v1946, %v1949
      %v1971 = vmax.f32 %v1951, 0.0
      %v1972 = vmax.f32 %v1952, 0.0
      %v1973 = vmax.f32 %v1953, 0.0
      %v1974 = vmax.f32 %v1954, 0.0
      %v1975 = vmax.f32 %v1955, 0.0
      %v1976 = vmax.f32 %v1956, 0.0
      %v1977 = vmax.f32 %v1957, 0.0
      %v1978 = vmax.f32 %v1958, 0.0
      %v1979 = vmax.f32 %v1959, 0.0
      %v1980 = vmax.f32 %v1960, 0.0
      %v1981 = vmax.f32 %v1961, 0.0
      %v1982 = vmax.f32 %v1962, 0.0
      %v1983 = vmax.f32 %v1963, 0.0
      %v1984 = vmax.f32 %v1964, 0.0
      %v1985 = vmax.f32 %v1965, 0.0
      %v1986 = vmax.f32 %v1966, 0.0
      %v1987 = vmax.f32 %v1967, 0.0
      %v1988 = vmax.f32 %v1968, 0.0
      %v1989 = vmax.f32 %v1969, 0.0
      %v1990 = vmax.f32 %v1970, 0.0
      %s1991 = smul.u32 %s25, 8
      %s1992 = ssub.s32 %s1991, 1
      %v1993 = vstv %s1992
      %v1994 = vadd.s32 %v1993, 1
      %v1995 = vadd.s32 %v1993, 2
      %v1996 = vadd.s32 %v1993, 3
      %v1997 = vadd.s32 %v1993, 4
      %v1998 = vadd.s32 %v1993, 5
      %v1999 = vadd.s32 %v1993, 6
      %v2000 = vadd.s32 %v1993, 7
      %v2001 = vadd.s32 %v1993, 8
      %v2002 = vadd.s32 %v1993, 9
      %vm2003 = vcmp.ge.s32.totalorder %v1993, 0
      %vm2004 = vcmp.ge.s32.totalorder %v1994, 0
      %vm2005 = vcmp.ge.s32.totalorder %v1995, 0
      %vm2006 = vcmp.ge.s32.totalorder %v1996, 0
      %vm2007 = vcmp.ge.s32.totalorder %v1997, 0
      %vm2008 = vcmp.ge.s32.totalorder %v1998, 0
      %vm2009 = vcmp.ge.s32.totalorder %v1999, 0
      %vm2010 = vcmp.ge.s32.totalorder %v2000, 0
      %vm2011 = vcmp.ge.s32.totalorder %v2001, 0
      %vm2012 = vcmp.ge.s32.totalorder %v2002, 0
      %vm2013 = vcmp.lt.s32.totalorder %v1993, 16
      %vm2014 = vcmp.lt.s32.totalorder %v1994, 16
      %vm2015 = vcmp.lt.s32.totalorder %v1995, 16
      %vm2016 = vcmp.lt.s32.totalorder %v1996, 16
      %vm2017 = vcmp.lt.s32.totalorder %v1997, 16
      %vm2018 = vcmp.lt.s32.totalorder %v1998, 16
      %vm2019 = vcmp.lt.s32.totalorder %v1999, 16
      %vm2020 = vcmp.lt.s32.totalorder %v2000, 16
      %vm2021 = vcmp.lt.s32.totalorder %v2001, 16
      %vm2022 = vcmp.lt.s32.totalorder %v2002, 16
      %vm2023 = vmand %vm2003, %vm2013
      %vm2024 = vmand %vm2004, %vm2014
      %vm2025 = vmand %vm2005, %vm2015
      %vm2026 = vmand %vm2006, %vm2016
      %vm2027 = vmand %vm2007, %vm2017
      %vm2028 = vmand %vm2008, %vm2018
      %vm2029 = vmand %vm2009, %vm2019
      %vm2030 = vmand %vm2010, %vm2020
      %vm2031 = vmand %vm2011, %vm2021
      %vm2032 = vmand %vm2012, %vm2022
      %v2033 = vsel %vm2023, 1, 0
      %v2034 = vsel %vm2024, 1, 0
      %v2035 = vsel %vm2025, 1, 0
      %v2036 = vsel %vm2026, 1, 0
      %v2037 = vsel %vm2027, 1, 0
      %v2038 = vsel %vm2028, 1, 0
      %v2039 = vsel %vm2029, 1, 0
      %v2040 = vsel %vm2030, 1, 0
      %v2041 = vsel %vm2031, 1, 0
      %v2042 = vsel %vm2032, 1, 0
      %v2043 = vcvt.s32.f32 %v2033
      %v2044 = vcvt.s32.f32 %v2034
      %v2045 = vcvt.s32.f32 %v2035
      %v2046 = vcvt.s32.f32 %v2036
      %v2047 = vcvt.s32.f32 %v2037
      %v2048 = vcvt.s32.f32 %v2038
      %v2049 = vcvt.s32.f32 %v2039
      %v2050 = vcvt.s32.f32 %v2040
      %v2051 = vcvt.s32.f32 %v2041
      %v2052 = vcvt.s32.f32 %v2042
      %v2053 = vmul.f32 %v1971, %v2043
      %v2054 = vmul.f32 %v1972, %v2043
      %v2055 = vmul.f32 %v1973, %v2044
      %v2056 = vmul.f32 %v1974, %v2044
      %v2057 = vmul.f32 %v1975, %v2045
      %v2058 = vmul.f32 %v1976, %v2045
      %v2059 = vmul.f32 %v1977, %v2046
      %v2060 = vmul.f32 %v1978, %v2046
      %v2061 = vmul.f32 %v1979, %v2047
      %v2062 = vmul.f32 %v1980, %v2047
      %v2063 = vmul.f32 %v1981, %v2048
      %v2064 = vmul.f32 %v1982, %v2048
      %v2065 = vmul.f32 %v1983, %v2049
      %v2066 = vmul.f32 %v1984, %v2049
      %v2067 = vmul.f32 %v1985, %v2050
      %v2068 = vmul.f32 %v1986, %v2050
      %v2069 = vmul.f32 %v1987, %v2051
      %v2070 = vmul.f32 %v1988, %v2051
      %v2071 = vmul.f32 %v1989, %v2052
      %v2072 = vmul.f32 %v1990, %v2052
      %v2073 = vpack.c.bf16 %v2053, %v2053
      %v2074 = vpack.c.bf16 %v2054, %v2054
      %v2075 = vpack.c.bf16 %v2055, %v2055
      %v2076 = vpack.c.bf16 %v2056, %v2056
      %v2077 = vpack.c.bf16 %v2057, %v2057
      %v2078 = vpack.c.bf16 %v2058, %v2058
      %v2079 = vpack.c.bf16 %v2059, %v2059
      %v2080 = vpack.c.bf16 %v2060, %v2060
      %v2081 = vpack.c.bf16 %v2061, %v2061
      %v2082 = vpack.c.bf16 %v2062, %v2062
      %v2083 = vpack.c.bf16 %v2063, %v2063
      %v2084 = vpack.c.bf16 %v2064, %v2064
      %v2085 = vpack.c.bf16 %v2065, %v2065
      %v2086 = vpack.c.bf16 %v2066, %v2066
      %v2087 = vpack.c.bf16 %v2067, %v2067
      %v2088 = vpack.c.bf16 %v2068, %v2068
      %v2089 = vpack.c.bf16 %v2069, %v2069
      %v2090 = vpack.c.bf16 %v2070, %v2070
      %v2091 = vpack.c.bf16 %v2071, %v2071
      %v2092 = vpack.c.bf16 %v2072, %v2072
      %v2094 = vshrl.u32 %v2073, 16
      %v2096 = vrot.slane %v2094, 7
      %v2097 = vshll.u32 %v2073, 16
      %v2099 = vor.u32 %v2096, %v2097
      %v2100 = vrot.slane %v2096, 4
      %v2102 = vshrl.u32 %v2074, 16
      %v2104 = vrot.slane %v2102, 7
      %v2105 = vshll.u32 %v2074, 16
      %v2107 = vor.u32 %v2104, %v2105
      %v2108 = vsel %vm630, %v2100, %v2107
      %v2109 = vrot.slane %v2104, 4
      %v2111 = vshrl.u32 %v2075, 16
      %v2113 = vrot.slane %v2111, 7
      %v2114 = vshll.u32 %v2075, 16
      %v2116 = vor.u32 %v2113, %v2114
      %v2117 = vrot.slane %v2113, 4
      %v2119 = vshrl.u32 %v2076, 16
      %v2121 = vrot.slane %v2119, 7
      %v2122 = vshll.u32 %v2076, 16
      %v2124 = vor.u32 %v2121, %v2122
      %v2125 = vsel %vm630, %v2117, %v2124
      %v2126 = vrot.slane %v2121, 4
      %v2128 = vshrl.u32 %v2077, 16
      %v2130 = vrot.slane %v2128, 7
      %v2131 = vshll.u32 %v2077, 16
      %v2133 = vor.u32 %v2130, %v2131
      %v2134 = vrot.slane %v2130, 4
      %v2136 = vshrl.u32 %v2078, 16
      %v2138 = vrot.slane %v2136, 7
      %v2139 = vshll.u32 %v2078, 16
      %v2141 = vor.u32 %v2138, %v2139
      %v2142 = vsel %vm630, %v2134, %v2141
      %v2143 = vrot.slane %v2138, 4
      %v2145 = vshrl.u32 %v2079, 16
      %v2147 = vrot.slane %v2145, 7
      %v2148 = vshll.u32 %v2079, 16
      %v2150 = vor.u32 %v2147, %v2148
      %v2151 = vrot.slane %v2147, 4
      %v2153 = vshrl.u32 %v2080, 16
      %v2155 = vrot.slane %v2153, 7
      %v2156 = vshll.u32 %v2080, 16
      %v2158 = vor.u32 %v2155, %v2156
      %v2159 = vsel %vm630, %v2151, %v2158
      %v2160 = vrot.slane %v2155, 4
      %v2162 = vshrl.u32 %v2081, 16
      %v2164 = vrot.slane %v2162, 7
      %v2165 = vshll.u32 %v2081, 16
      %v2167 = vor.u32 %v2164, %v2165
      %v2168 = vrot.slane %v2164, 4
      %v2170 = vshrl.u32 %v2082, 16
      %v2172 = vrot.slane %v2170, 7
      %v2173 = vshll.u32 %v2082, 16
      %v2175 = vor.u32 %v2172, %v2173
      %v2176 = vsel %vm630, %v2168, %v2175
      %v2177 = vrot.slane %v2172, 4
      %v2179 = vshrl.u32 %v2083, 16
      %v2181 = vrot.slane %v2179, 7
      %v2182 = vshll.u32 %v2083, 16
      %v2184 = vor.u32 %v2181, %v2182
      %v2185 = vrot.slane %v2181, 4
      %v2187 = vshrl.u32 %v2084, 16
      %v2189 = vrot.slane %v2187, 7
      %v2190 = vshll.u32 %v2084, 16
      %v2192 = vor.u32 %v2189, %v2190
      %v2193 = vsel %vm630, %v2185, %v2192
      %v2194 = vrot.slane %v2189, 4
      %v2196 = vshrl.u32 %v2085, 16
      %v2198 = vrot.slane %v2196, 7
      %v2199 = vshll.u32 %v2085, 16
      %v2201 = vor.u32 %v2198, %v2199
      %v2202 = vrot.slane %v2198, 4
      %v2204 = vshrl.u32 %v2086, 16
      %v2206 = vrot.slane %v2204, 7
      %v2207 = vshll.u32 %v2086, 16
      %v2209 = vor.u32 %v2206, %v2207
      %v2210 = vsel %vm630, %v2202, %v2209
      %v2211 = vrot.slane %v2206, 4
      %v2213 = vshrl.u32 %v2087, 16
      %v2215 = vrot.slane %v2213, 7
      %v2216 = vshll.u32 %v2087, 16
      %v2218 = vor.u32 %v2215, %v2216
      %v2219 = vrot.slane %v2215, 4
      %v2221 = vshrl.u32 %v2088, 16
      %v2223 = vrot.slane %v2221, 7
      %v2224 = vshll.u32 %v2088, 16
      %v2226 = vor.u32 %v2223, %v2224
      %v2227 = vsel %vm630, %v2219, %v2226
      %v2228 = vrot.slane %v2223, 4
      %v2230 = vshrl.u32 %v2089, 16
      %v2232 = vrot.slane %v2230, 7
      %v2233 = vshll.u32 %v2089, 16
      %v2235 = vor.u32 %v2232, %v2233
      %v2236 = vrot.slane %v2232, 4
      %v2238 = vshrl.u32 %v2090, 16
      %v2240 = vrot.slane %v2238, 7
      %v2241 = vshll.u32 %v2090, 16
      %v2243 = vor.u32 %v2240, %v2241
      %v2244 = vsel %vm630, %v2236, %v2243
      %v2245 = vrot.slane %v2240, 4
      %v2247 = vshrl.u32 %v2091, 16
      %v2249 = vrot.slane %v2247, 7
      %v2250 = vshll.u32 %v2091, 16
      %v2252 = vor.u32 %v2249, %v2250
      %v2253 = vrot.slane %v2249, 4
      %v2255 = vshrl.u32 %v2092, 16
      %v2257 = vrot.slane %v2255, 7
      %v2258 = vshll.u32 %v2092, 16
      %v2260 = vor.u32 %v2257, %v2258
      %v2261 = vsel %vm630, %v2253, %v2260
      %v2262 = vrot.slane %v2257, 4
      %v2293 = vld [vmem:[#allocation3] sm:$0xf]
      %v2294 = vsel %vm673, %v2099, %v2293
      %2295 = vst [vmem:[#allocation3] sm:$0xf] %v2294
      %2296 = vst.msk [vmem:[#allocation3 + $0x4] sm:$0xf] %vm677, %v2108
      %v2297 = vld [vmem:[#allocation3 + $0x8] sm:$0x1]
      %v2298 = vsel %vm680, %v2109, %v2297
      %2299 = vst [vmem:[#allocation3 + $0x8] sm:$0x1] %v2298
      %v2300 = vld [vmem:[#allocation3 + $0xc] sm:$0xf]
      %v2301 = vsel %vm673, %v2116, %v2300
      %2302 = vst [vmem:[#allocation3 + $0xc] sm:$0xf] %v2301
      %2303 = vst.msk [vmem:[#allocation3 + $0x10] sm:$0xf] %vm677, %v2125
      %v2304 = vld [vmem:[#allocation3 + $0x14] sm:$0x1]
      %v2305 = vsel %vm680, %v2126, %v2304
      %2306 = vst [vmem:[#allocation3 + $0x14] sm:$0x1] %v2305
      %v2307 = vld [vmem:[#allocation3 + $0x18] sm:$0xf]
      %v2308 = vsel %vm673, %v2133, %v2307
      %2309 = vst [vmem:[#allocation3 + $0x18] sm:$0xf] %v2308
      %2310 = vst.msk [vmem:[#allocation3 + $0x1c] sm:$0xf] %vm677, %v2142
      %v2311 = vld [vmem:[#allocation3 + $0x20] sm:$0x1]
      %v2312 = vsel %vm680, %v2143, %v2311
      %2313 = vst [vmem:[#allocation3 + $0x20] sm:$0x1] %v2312
      %v2314 = vld [vmem:[#allocation3 + $0x24] sm:$0xf]
      %v2315 = vsel %vm673, %v2150, %v2314
      %2316 = vst [vmem:[#allocation3 + $0x24] sm:$0xf] %v2315
      %2317 = vst.msk [vmem:[#allocation3 + $0x28] sm:$0xf] %vm677, %v2159
      %v2318 = vld [vmem:[#allocation3 + $0x2c] sm:$0x1]
      %v2319 = vsel %vm680, %v2160, %v2318
      %2320 = vst [vmem:[#allocation3 + $0x2c] sm:$0x1] %v2319
      %v2321 = vld [vmem:[#allocation3 + $0x30] sm:$0xf]
      %v2322 = vsel %vm673, %v2167, %v2321
      %2323 = vst [vmem:[#allocation3 + $0x30] sm:$0xf] %v2322
      %2324 = vst.msk [vmem:[#allocation3 + $0x34] sm:$0xf] %vm677, %v2176
      %v2325 = vld [vmem:[#allocation3 + $0x38] sm:$0x1]
      %v2326 = vsel %vm680, %v2177, %v2325
      %2327 = vst [vmem:[#allocation3 + $0x38] sm:$0x1] %v2326
      %v2328 = vld [vmem:[#allocation3 + $0x3c] sm:$0xf]
      %v2329 = vsel %vm673, %v2184, %v2328
      %2330 = vst [vmem:[#allocation3 + $0x3c] sm:$0xf] %v2329
      %2331 = vst.msk [vmem:[#allocation3 + $0x40] sm:$0xf] %vm677, %v2193
      %v2332 = vld [vmem:[#allocation3 + $0x44] sm:$0x1]
      %v2333 = vsel %vm680, %v2194, %v2332
      %2334 = vst [vmem:[#allocation3 + $0x44] sm:$0x1] %v2333
      %v2335 = vld [vmem:[#allocation3 + $0x48] sm:$0xf]
      %v2336 = vsel %vm673, %v2201, %v2335
      %2337 = vst [vmem:[#allocation3 + $0x48] sm:$0xf] %v2336
      %2338 = vst.msk [vmem:[#allocation3 + $0x4c] sm:$0xf] %vm677, %v2210
      %v2339 = vld [vmem:[#allocation3 + $0x50] sm:$0x1]
      %v2340 = vsel %vm680, %v2211, %v2339
      %2341 = vst [vmem:[#allocation3 + $0x50] sm:$0x1] %v2340
      %v2342 = vld [vmem:[#allocation3 + $0x54] sm:$0xf]
      %v2343 = vsel %vm673, %v2218, %v2342
      %2344 = vst [vmem:[#allocation3 + $0x54] sm:$0xf] %v2343
      %2345 = vst.msk [vmem:[#allocation3 + $0x58] sm:$0xf] %vm677, %v2227
      %v2346 = vld [vmem:[#allocation3 + $0x5c] sm:$0x1]
      %v2347 = vsel %vm680, %v2228, %v2346
      %2348 = vst [vmem:[#allocation3 + $0x5c] sm:$0x1] %v2347
      %v2349 = vld [vmem:[#allocation3 + $0x60] sm:$0xf]
      %v2350 = vsel %vm673, %v2235, %v2349
      %2351 = vst [vmem:[#allocation3 + $0x60] sm:$0xf] %v2350
      %2352 = vst.msk [vmem:[#allocation3 + $0x64] sm:$0xf] %vm677, %v2244
      %v2353 = vld [vmem:[#allocation3 + $0x68] sm:$0x1]
      %v2354 = vsel %vm680, %v2245, %v2353
      %2355 = vst [vmem:[#allocation3 + $0x68] sm:$0x1] %v2354
      %v2356 = vld [vmem:[#allocation3 + $0x6c] sm:$0xf]
      %v2357 = vsel %vm673, %v2252, %v2356
      %2358 = vst [vmem:[#allocation3 + $0x6c] sm:$0xf] %v2357
      %2359 = vst.msk [vmem:[#allocation3 + $0x70] sm:$0xf] %vm677, %v2261
      %v2360 = vld [vmem:[#allocation3 + $0x74] sm:$0x1]
      %v2361 = vsel %vm680, %v2262, %v2360
      %2362 = vst [vmem:[#allocation3 + $0x74] sm:$0x1] %v2361
      %v2363 = vld [vmem:[#allocation3] sm:$0xf]
      %v2364 = vld [vmem:[#allocation3 + $0x4] sm:$0xf]
      %v2365 = vld [vmem:[#allocation3 + $0x8] sm:$0x1]
      %v2366 = vld [vmem:[#allocation3 + $0xc] sm:$0xf]
      %v2367 = vld [vmem:[#allocation3 + $0x10] sm:$0xf]
      %v2368 = vld [vmem:[#allocation3 + $0x14] sm:$0x1]
      %v2369 = vld [vmem:[#allocation3 + $0x18] sm:$0xf]
      %v2370 = vld [vmem:[#allocation3 + $0x1c] sm:$0xf]
      %v2371 = vld [vmem:[#allocation3 + $0x20] sm:$0x1]
      %v2372 = vld [vmem:[#allocation3 + $0x24] sm:$0xf]
      %v2373 = vld [vmem:[#allocation3 + $0x28] sm:$0xf]
      %v2374 = vld [vmem:[#allocation3 + $0x2c] sm:$0x1]
      %v2375 = vld [vmem:[#allocation3 + $0x30] sm:$0xf]
      %v2376 = vld [vmem:[#allocation3 + $0x34] sm:$0xf]
      %v2377 = vld [vmem:[#allocation3 + $0x38] sm:$0x1]
      %v2378 = vld [vmem:[#allocation3 + $0x3c] sm:$0xf]
      %v2379 = vld [vmem:[#allocation3 + $0x40] sm:$0xf]
      %v2380 = vld [vmem:[#allocation3 + $0x44] sm:$0x1]
      %v2381 = vld [vmem:[#allocation3 + $0x48] sm:$0xf]
      %v2382 = vld [vmem:[#allocation3 + $0x4c] sm:$0xf]
      %v2383 = vld [vmem:[#allocation3 + $0x50] sm:$0x1]
      %v2384 = vld [vmem:[#allocation3 + $0x54] sm:$0xf]
      %v2385 = vld [vmem:[#allocation3 + $0x58] sm:$0xf]
      %v2386 = vld [vmem:[#allocation3 + $0x5c] sm:$0x1]
      %v2387 = vld [vmem:[#allocation3 + $0x60] sm:$0xf]
      %v2388 = vld [vmem:[#allocation3 + $0x64] sm:$0xf]
      %v2389 = vld [vmem:[#allocation3 + $0x68] sm:$0x1]
      %v2390 = vld [vmem:[#allocation3 + $0x6c] sm:$0xf]
      %v2391 = vld [vmem:[#allocation3 + $0x70] sm:$0xf]
      %v2392 = vld [vmem:[#allocation3 + $0x74] sm:$0x1]
      %v2394 = vshrl.u32 %v2363, 16
      %v2396 = vrot.slane %v2394, 4
      %v2397 = vshll.u32 %v2363, 16
      %v2399 = vrot.slane %v2397, 5
      %v2400 = vor.u32 %v2396, %v2399
      %v2401 = vrot.slane %v2400, 4
      %v2403 = vshll.u32 %v2364, 16
      %v2405 = vrot.slane %v2403, 5
      %v2406 = vsel %vm1038, %v2401, %v2405
      %v2407 = vshrl.u32 %v2364, 16
      %v2409 = vrot.slane %v2407, 4
      %v2410 = vor.u32 %v2409, %v2405
      %v2411 = vrot.slane %v2410, 4
      %v2413 = vshll.u32 %v2365, 16
      %v2415 = vrot.slane %v2413, 5
      %v2416 = vsel %vm1038, %v2411, %v2415
      %v2418 = vshrl.u32 %v2366, 16
      %v2420 = vrot.slane %v2418, 4
      %v2421 = vshll.u32 %v2366, 16
      %v2423 = vrot.slane %v2421, 5
      %v2424 = vor.u32 %v2420, %v2423
      %v2425 = vrot.slane %v2424, 4
      %v2427 = vshll.u32 %v2367, 16
      %v2429 = vrot.slane %v2427, 5
      %v2430 = vsel %vm1038, %v2425, %v2429
      %v2431 = vshrl.u32 %v2367, 16
      %v2433 = vrot.slane %v2431, 4
      %v2434 = vor.u32 %v2433, %v2429
      %v2435 = vrot.slane %v2434, 4
      %v2437 = vshll.u32 %v2368, 16
      %v2439 = vrot.slane %v2437, 5
      %v2440 = vsel %vm1038, %v2435, %v2439
      %v2442 = vshrl.u32 %v2369, 16
      %v2444 = vrot.slane %v2442, 4
      %v2445 = vshll.u32 %v2369, 16
      %v2447 = vrot.slane %v2445, 5
      %v2448 = vor.u32 %v2444, %v2447
      %v2449 = vrot.slane %v2448, 4
      %v2451 = vshll.u32 %v2370, 16
      %v2453 = vrot.slane %v2451, 5
      %v2454 = vsel %vm1038, %v2449, %v2453
      %v2455 = vshrl.u32 %v2370, 16
      %v2457 = vrot.slane %v2455, 4
      %v2458 = vor.u32 %v2457, %v2453
      %v2459 = vrot.slane %v2458, 4
      %v2461 = vshll.u32 %v2371, 16
      %v2463 = vrot.slane %v2461, 5
      %v2464 = vsel %vm1038, %v2459, %v2463
      %v2466 = vshrl.u32 %v2372, 16
      %v2468 = vrot.slane %v2466, 4
      %v2469 = vshll.u32 %v2372, 16
      %v2471 = vrot.slane %v2469, 5
      %v2472 = vor.u32 %v2468, %v2471
      %v2473 = vrot.slane %v2472, 4
      %v2475 = vshll.u32 %v2373, 16
      %v2477 = vrot.slane %v2475, 5
      %v2478 = vsel %vm1038, %v2473, %v2477
      %v2479 = vshrl.u32 %v2373, 16
      %v2481 = vrot.slane %v2479, 4
      %v2482 = vor.u32 %v2481, %v2477
      %v2483 = vrot.slane %v2482, 4
      %v2485 = vshll.u32 %v2374, 16
      %v2487 = vrot.slane %v2485, 5
      %v2488 = vsel %vm1038, %v2483, %v2487
      %v2490 = vshrl.u32 %v2375, 16
      %v2492 = vrot.slane %v2490, 4
      %v2493 = vshll.u32 %v2375, 16
      %v2495 = vrot.slane %v2493, 5
      %v2496 = vor.u32 %v2492, %v2495
      %v2497 = vrot.slane %v2496, 4
      %v2499 = vshll.u32 %v2376, 16
      %v2501 = vrot.slane %v2499, 5
      %v2502 = vsel %vm1038, %v2497, %v2501
      %v2503 = vshrl.u32 %v2376, 16
      %v2505 = vrot.slane %v2503, 4
      %v2506 = vor.u32 %v2505, %v2501
      %v2507 = vrot.slane %v2506, 4
      %v2509 = vshll.u32 %v2377, 16
      %v2511 = vrot.slane %v2509, 5
      %v2512 = vsel %vm1038, %v2507, %v2511
      %v2514 = vshrl.u32 %v2378, 16
      %v2516 = vrot.slane %v2514, 4
      %v2517 = vshll.u32 %v2378, 16
      %v2519 = vrot.slane %v2517, 5
      %v2520 = vor.u32 %v2516, %v2519
      %v2521 = vrot.slane %v2520, 4
      %v2523 = vshll.u32 %v2379, 16
      %v2525 = vrot.slane %v2523, 5
      %v2526 = vsel %vm1038, %v2521, %v2525
      %v2527 = vshrl.u32 %v2379, 16
      %v2529 = vrot.slane %v2527, 4
      %v2530 = vor.u32 %v2529, %v2525
      %v2531 = vrot.slane %v2530, 4
      %v2533 = vshll.u32 %v2380, 16
      %v2535 = vrot.slane %v2533, 5
      %v2536 = vsel %vm1038, %v2531, %v2535
      %v2538 = vshrl.u32 %v2381, 16
      %v2540 = vrot.slane %v2538, 4
      %v2541 = vshll.u32 %v2381, 16
      %v2543 = vrot.slane %v2541, 5
      %v2544 = vor.u32 %v2540, %v2543
      %v2545 = vrot.slane %v2544, 4
      %v2547 = vshll.u32 %v2382, 16
      %v2549 = vrot.slane %v2547, 5
      %v2550 = vsel %vm1038, %v2545, %v2549
      %v2551 = vshrl.u32 %v2382, 16
      %v2553 = vrot.slane %v2551, 4
      %v2554 = vor.u32 %v2553, %v2549
      %v2555 = vrot.slane %v2554, 4
      %v2557 = vshll.u32 %v2383, 16
      %v2559 = vrot.slane %v2557, 5
      %v2560 = vsel %vm1038, %v2555, %v2559
      %v2562 = vshrl.u32 %v2384, 16
      %v2564 = vrot.slane %v2562, 4
      %v2565 = vshll.u32 %v2384, 16
      %v2567 = vrot.slane %v2565, 5
      %v2568 = vor.u32 %v2564, %v2567
      %v2569 = vrot.slane %v2568, 4
      %v2571 = vshll.u32 %v2385, 16
      %v2573 = vrot.slane %v2571, 5
      %v2574 = vsel %vm1038, %v2569, %v2573
      %v2575 = vshrl.u32 %v2385, 16
      %v2577 = vrot.slane %v2575, 4
      %v2578 = vor.u32 %v2577, %v2573
      %v2579 = vrot.slane %v2578, 4
      %v2581 = vshll.u32 %v2386, 16
      %v2583 = vrot.slane %v2581, 5
      %v2584 = vsel %vm1038, %v2579, %v2583
      %v2609 = vrot.slane %v2363, 5
      %v2610 = vrot.slane %v2609, 4
      %v2611 = vrot.slane %v2364, 5
      %v2612 = vsel %vm1311, %v2610, %v2611
      %v2613 = vrot.slane %v2611, 4
      %v2614 = vrot.slane %v2365, 5
      %v2615 = vsel %vm1311, %v2613, %v2614
      %v2616 = vrot.slane %v2366, 5
      %v2617 = vrot.slane %v2616, 4
      %v2618 = vrot.slane %v2367, 5
      %v2619 = vsel %vm1311, %v2617, %v2618
      %v2620 = vrot.slane %v2618, 4
      %v2621 = vrot.slane %v2368, 5
      %v2622 = vsel %vm1311, %v2620, %v2621
      %v2623 = vrot.slane %v2369, 5
      %v2624 = vrot.slane %v2623, 4
      %v2625 = vrot.slane %v2370, 5
      %v2626 = vsel %vm1311, %v2624, %v2625
      %v2627 = vrot.slane %v2625, 4
      %v2628 = vrot.slane %v2371, 5
      %v2629 = vsel %vm1311, %v2627, %v2628
      %v2630 = vrot.slane %v2372, 5
      %v2631 = vrot.slane %v2630, 4
      %v2632 = vrot.slane %v2373, 5
      %v2633 = vsel %vm1311, %v2631, %v2632
      %v2634 = vrot.slane %v2632, 4
      %v2635 = vrot.slane %v2374, 5
      %v2636 = vsel %vm1311, %v2634, %v2635
      %v2637 = vrot.slane %v2375, 5
      %v2638 = vrot.slane %v2637, 4
      %v2639 = vrot.slane %v2376, 5
      %v2640 = vsel %vm1311, %v2638, %v2639
      %v2641 = vrot.slane %v2639, 4
      %v2642 = vrot.slane %v2377, 5
      %v2643 = vsel %vm1311, %v2641, %v2642
      %v2644 = vrot.slane %v2378, 5
      %v2645 = vrot.slane %v2644, 4
      %v2646 = vrot.slane %v2379, 5
      %v2647 = vsel %vm1311, %v2645, %v2646
      %v2648 = vrot.slane %v2646, 4
      %v2649 = vrot.slane %v2380, 5
      %v2650 = vsel %vm1311, %v2648, %v2649
      %v2651 = vrot.slane %v2381, 5
      %v2652 = vrot.slane %v2651, 4
      %v2653 = vrot.slane %v2382, 5
      %v2654 = vsel %vm1311, %v2652, %v2653
      %v2655 = vrot.slane %v2653, 4
      %v2656 = vrot.slane %v2383, 5
      %v2657 = vsel %vm1311, %v2655, %v2656
      %v2658 = vrot.slane %v2384, 5
      %v2659 = vrot.slane %v2658, 4
      %v2660 = vrot.slane %v2385, 5
      %v2661 = vsel %vm1311, %v2659, %v2660
      %v2662 = vrot.slane %v2660, 4
      %v2663 = vrot.slane %v2386, 5
      %v2664 = vsel %vm1311, %v2662, %v2663
      %v2665 = vunpack.c.l.b16 %v2363
      %v2666 = vunpack.c.l.b16 %v2364
      %v2667 = vunpack.c.l.b16 %v2366
      %v2668 = vunpack.c.l.b16 %v2367
      %v2669 = vunpack.c.l.b16 %v2369
      %v2670 = vunpack.c.l.b16 %v2370
      %v2671 = vunpack.c.l.b16 %v2372
      %v2672 = vunpack.c.l.b16 %v2373
      %v2673 = vunpack.c.l.b16 %v2375
      %v2674 = vunpack.c.l.b16 %v2376
      %v2675 = vunpack.c.l.b16 %v2378
      %v2676 = vunpack.c.l.b16 %v2379
      %v2677 = vunpack.c.l.b16 %v2381
      %v2678 = vunpack.c.l.b16 %v2382
      %v2679 = vunpack.c.l.b16 %v2384
      %v2680 = vunpack.c.l.b16 %v2385
      %v2681 = vpack.c.b16 %v2666, %v2665
      %v2682 = vpack.c.b16 %v2668, %v2667
      %v2683 = vpack.c.b16 %v2670, %v2669
      %v2684 = vpack.c.b16 %v2672, %v2671
      %v2685 = vpack.c.b16 %v2674, %v2673
      %v2686 = vpack.c.b16 %v2676, %v2675
      %v2687 = vpack.c.b16 %v2678, %v2677
      %v2688 = vpack.c.b16 %v2680, %v2679
      %v2689 = vunpack.c.l.b16 %v2406
      %v2690 = vunpack.c.l.b16 %v2416
      %v2691 = vunpack.c.l.b16 %v2430
      %v2692 = vunpack.c.l.b16 %v2440
      %v2693 = vunpack.c.l.b16 %v2454
      %v2694 = vunpack.c.l.b16 %v2464
      %v2695 = vunpack.c.l.b16 %v2478
      %v2696 = vunpack.c.l.b16 %v2488
      %v2697 = vunpack.c.l.b16 %v2502
      %v2698 = vunpack.c.l.b16 %v2512
      %v2699 = vunpack.c.l.b16 %v2526
      %v2700 = vunpack.c.l.b16 %v2536
      %v2701 = vunpack.c.l.b16 %v2550
      %v2702 = vunpack.c.l.b16 %v2560
      %v2703 = vunpack.c.l.b16 %v2574
      %v2704 = vunpack.c.l.b16 %v2584
      %v2705 = vpack.c.b16 %v2690, %v2689
      %v2706 = vpack.c.b16 %v2692, %v2691
      %v2707 = vpack.c.b16 %v2694, %v2693
      %v2708 = vpack.c.b16 %v2696, %v2695
      %v2709 = vpack.c.b16 %v2698, %v2697
      %v2710 = vpack.c.b16 %v2700, %v2699
      %v2711 = vpack.c.b16 %v2702, %v2701
      %v2712 = vpack.c.b16 %v2704, %v2703
      %2713 = vrot.lane.b32.xlu0 %v2705, 4
      %v2714 = vpop.permute.xlu0 %2713
      %2715 = vrot.lane.b32.xlu0 %v2706, 4
      %v2716 = vpop.permute.xlu0 %2715
      %2717 = vrot.lane.b32.xlu0 %v2707, 4
      %v2718 = vpop.permute.xlu0 %2717
      %2719 = vrot.lane.b32.xlu0 %v2708, 4
      %v2720 = vpop.permute.xlu0 %2719
      %2721 = vrot.lane.b32.xlu0 %v2709, 4
      %v2722 = vpop.permute.xlu0 %2721
      %2723 = vrot.lane.b32.xlu0 %v2710, 4
      %v2724 = vpop.permute.xlu0 %2723
      %2725 = vrot.lane.b32.xlu0 %v2711, 4
      %v2726 = vpop.permute.xlu0 %2725
      %2727 = vrot.lane.b32.xlu0 %v2712, 4
      %v2728 = vpop.permute.xlu0 %2727
      %v2729 = vunpack.c.l.b16 %v2612
      %v2730 = vunpack.c.l.b16 %v2615
      %v2731 = vunpack.c.l.b16 %v2619
      %v2732 = vunpack.c.l.b16 %v2622
      %v2733 = vunpack.c.l.b16 %v2626
      %v2734 = vunpack.c.l.b16 %v2629
      %v2735 = vunpack.c.l.b16 %v2633
      %v2736 = vunpack.c.l.b16 %v2636
      %v2737 = vunpack.c.l.b16 %v2640
      %v2738 = vunpack.c.l.b16 %v2643
      %v2739 = vunpack.c.l.b16 %v2647
      %v2740 = vunpack.c.l.b16 %v2650
      %v2741 = vunpack.c.l.b16 %v2654
      %v2742 = vunpack.c.l.b16 %v2657
      %v2743 = vunpack.c.l.b16 %v2661
      %v2744 = vunpack.c.l.b16 %v2664
      %v2745 = vpack.c.b16 %v2730, %v2729
      %v2746 = vpack.c.b16 %v2732, %v2731
      %v2747 = vpack.c.b16 %v2734, %v2733
      %v2748 = vpack.c.b16 %v2736, %v2735
      %v2749 = vpack.c.b16 %v2738, %v2737
      %v2750 = vpack.c.b16 %v2740, %v2739
      %v2751 = vpack.c.b16 %v2742, %v2741
      %v2752 = vpack.c.b16 %v2744, %v2743
      %2753 = vrot.lane.b32.xlu0 %v2745, 8
      %v2754 = vpop.permute.xlu0 %2753
      %2755 = vrot.lane.b32.xlu0 %v2746, 8
      %v2756 = vpop.permute.xlu0 %2755
      %2757 = vrot.lane.b32.xlu0 %v2747, 8
      %v2758 = vpop.permute.xlu0 %2757
      %2759 = vrot.lane.b32.xlu0 %v2748, 8
      %v2760 = vpop.permute.xlu0 %2759
      %2761 = vrot.lane.b32.xlu0 %v2749, 8
      %v2762 = vpop.permute.xlu0 %2761
      %2763 = vrot.lane.b32.xlu0 %v2750, 8
      %v2764 = vpop.permute.xlu0 %2763
      %2765 = vrot.lane.b32.xlu0 %v2751, 8
      %v2766 = vpop.permute.xlu0 %2765
      %2767 = vrot.lane.b32.xlu0 %v2752, 8
      %v2768 = vpop.permute.xlu0 %2767
      %v2771 = vsel %vm1512, %v2681, %v2714
      %v2774 = vsel %vm1512, %v2682, %v2716
      %v2777 = vsel %vm1512, %v2683, %v2718
      %v2780 = vsel %vm1512, %v2684, %v2720
      %v2783 = vsel %vm1512, %v2685, %v2722
      %v2786 = vsel %vm1512, %v2686, %v2724
      %v2789 = vsel %vm1512, %v2687, %v2726
      %v2792 = vsel %vm1512, %v2688, %v2728
      %v2794 = vsel %vm1543, %v2771, %v2754
      %v2796 = vsel %vm1543, %v2774, %v2756
      %v2798 = vsel %vm1543, %v2777, %v2758
      %v2800 = vsel %vm1543, %v2780, %v2760
      %v2802 = vsel %vm1543, %v2783, %v2762
      %v2804 = vsel %vm1543, %v2786, %v2764
      %v2806 = vsel %vm1543, %v2789, %v2766
      %v2808 = vsel %vm1543, %v2792, %v2768
      %v2809 = vld [vmem:[%s6] sm:$0xf]
      %v2810 = vld [vmem:[%s6 + $0x4] sm:$0x3]
      %v2812 = vshrl.u32 %v2387, 16
      %v2814 = vrot.slane %v2812, 4
      %v2815 = vshll.u32 %v2387, 16
      %v2817 = vrot.slane %v2815, 5
      %v2818 = vor.u32 %v2814, %v2817
      %v2819 = vrot.slane %v2818, 4
      %v2821 = vshll.u32 %v2388, 16
      %v2823 = vrot.slane %v2821, 5
      %v2824 = vsel %vm1038, %v2819, %v2823
      %v2825 = vshrl.u32 %v2388, 16
      %v2827 = vrot.slane %v2825, 4
      %v2828 = vor.u32 %v2827, %v2823
      %v2829 = vrot.slane %v2828, 4
      %v2831 = vshll.u32 %v2389, 16
      %v2833 = vrot.slane %v2831, 5
      %v2834 = vsel %vm1038, %v2829, %v2833
      %v2838 = vrot.slane %v2387, 5
      %v2839 = vrot.slane %v2838, 4
      %v2840 = vrot.slane %v2388, 5
      %v2841 = vsel %vm1311, %v2839, %v2840
      %v2842 = vrot.slane %v2840, 4
      %v2843 = vrot.slane %v2389, 5
      %v2844 = vsel %vm1311, %v2842, %v2843
      %v2845 = vunpack.c.l.b16 %v2387
      %v2846 = vunpack.c.l.b16 %v2388
      %v2847 = vpack.c.b16 %v2846, %v2845
      %v2848 = vunpack.c.l.b16 %v2824
      %v2849 = vunpack.c.l.b16 %v2834
      %v2850 = vpack.c.b16 %v2849, %v2848
      %2851 = vrot.lane.b32.xlu0 %v2850, 4
      %v2852 = vpop.permute.xlu0 %2851
      %v2853 = vunpack.c.l.b16 %v2841
      %v2854 = vunpack.c.l.b16 %v2844
      %v2855 = vpack.c.b16 %v2854, %v2853
      %2856 = vrot.lane.b32.xlu0 %v2855, 8
      %v2857 = vpop.permute.xlu0 %2856
      %v2860 = vsel %vm1512, %v2847, %v2852
      %v2862 = vsel %vm1543, %v2860, %v2857
      %s2863 = scalar_lea.vmem %s6, 8
      %v2864 = vld [vmem:[%s2863] sm:$0xf]
      %v2865 = vld [vmem:[%s2863 + $0x4] sm:$0x3]
      %v2868 = vunpack.c.l.b16 %v2864
      %v2869 = vunpack.c.l.b16 %v2865
      %v2870 = vpack.c.b16 %v2869, %v2868
      %v2871 = vsel %vm1626, %v2796, 0
      %v2873 = vsel %vm1626, %v2798, 0
      %v2875 = vsel %vm1626, %v2800, 0
      %v2877 = vsel %vm1626, %v2802, 0
      %v2879 = vsel %vm1626, %v2804, 0
      %v2881 = vsel %vm1626, %v2806, 0
      %v2883 = vsel %vm1626, %v2808, 0
      %v2885 = vsel %vm1626, %v2862, 0
      %v2888 = vsel %vm1647, %v2870, 0
      %2890 = vmatpush.bf16.msra.mxu0 0
      %2891 = vmatpush.bf16.msra.mxu0 0
      %2892 = vmatpush.bf16.msra.mxu0 0
      %2893 = vmatpush.bf16.msra.mxu0 0
      %2894 = vmatpush.bf16.msra.mxu0 0
      %2895 = vmatpush.bf16.msra.mxu0 0
      %2896 = vmatpush.bf16.msra.mxu0 0
      %2897 = vmatpush.bf16.msra.mxu0 %v2888
      %2898 = vmatmul.bf16.gmra.mxu0 %v2871
      %v2899 = vpop.f32.mrf.mxu0
      %v2900 = vadd.f32 0.0, %v2899
      %v2901 = vpop.f32.mrf.mxu0
      %v2902 = vadd.f32 0.0, %v2901
      %2903 = vmatmul.bf16.gmra.mxu0 %v2873
      %v2904 = vpop.f32.mrf.mxu0
      %v2905 = vadd.f32 0.0, %v2904
      %v2906 = vpop.f32.mrf.mxu0
      %v2907 = vadd.f32 0.0, %v2906
      %2908 = vmatmul.bf16.gmra.mxu0 %v2875
      %v2909 = vpop.f32.mrf.mxu0
      %v2910 = vadd.f32 0.0, %v2909
      %v2911 = vpop.f32.mrf.mxu0
      %v2912 = vadd.f32 0.0, %v2911
      %2913 = vmatmul.bf16.gmra.mxu0 %v2877
      %v2914 = vpop.f32.mrf.mxu0
      %v2915 = vadd.f32 0.0, %v2914
      %v2916 = vpop.f32.mrf.mxu0
      %v2917 = vadd.f32 0.0, %v2916
      %2918 = vmatmul.bf16.gmra.mxu0 %v2879
      %v2919 = vpop.f32.mrf.mxu0
      %v2920 = vadd.f32 0.0, %v2919
      %v2921 = vpop.f32.mrf.mxu0
      %v2922 = vadd.f32 0.0, %v2921
      %2923 = vmatmul.bf16.gmra.mxu0 %v2881
      %v2924 = vpop.f32.mrf.mxu0
      %v2925 = vadd.f32 0.0, %v2924
      %v2926 = vpop.f32.mrf.mxu0
      %v2927 = vadd.f32 0.0, %v2926
      %2928 = vmatmul.bf16.gmra.mxu0 %v2883
      %v2929 = vpop.f32.mrf.mxu0
      %v2930 = vadd.f32 0.0, %v2929
      %v2931 = vpop.f32.mrf.mxu0
      %v2932 = vadd.f32 0.0, %v2931
      %2933 = vmatmul.bf16.gmra.mxu0 %v2885
      %v2934 = vpop.f32.mrf.mxu0
      %v2935 = vadd.f32 0.0, %v2934
      %v2936 = vpop.f32.mrf.mxu0
      %v2937 = vadd.f32 0.0, %v2936
      %2938 = vdwg.mxu0
      %v2941 = vunpack.c.l.b16 %v2809
      %v2942 = vunpack.c.l.b16 %v2810
      %v2943 = vpack.c.b16 %v2942, %v2941
      %v2944 = vsel %vm1626, %v2794, 0
      %v2947 = vsel %vm1647, %v2943, 0
      %2949 = vmatpush.bf16.msra.mxu0 0
      %2950 = vmatpush.bf16.msra.mxu0 0
      %2951 = vmatpush.bf16.msra.mxu0 0
      %2952 = vmatpush.bf16.msra.mxu0 0
      %2953 = vmatpush.bf16.msra.mxu0 0
      %2954 = vmatpush.bf16.msra.mxu0 0
      %2955 = vmatpush.bf16.msra.mxu0 0
      %2956 = vmatpush.bf16.msra.mxu0 %v2947
      %2957 = vmatmul.bf16.gmra.mxu0 %v2944
      %v2958 = vpop.f32.mrf.mxu0
      %v2959 = vadd.f32 %v2900, %v2958
      %v2960 = vpop.f32.mrf.mxu0
      %v2961 = vadd.f32 %v2902, %v2960
      %2962 = vmatmul.bf16.gmra.mxu0 %v2871
      %v2963 = vpop.f32.mrf.mxu0
      %v2964 = vadd.f32 %v2905, %v2963
      %v2965 = vpop.f32.mrf.mxu0
      %v2966 = vadd.f32 %v2907, %v2965
      %2967 = vmatmul.bf16.gmra.mxu0 %v2873
      %v2968 = vpop.f32.mrf.mxu0
      %v2969 = vadd.f32 %v2910, %v2968
      %v2970 = vpop.f32.mrf.mxu0
      %v2971 = vadd.f32 %v2912, %v2970
      %2972 = vmatmul.bf16.gmra.mxu0 %v2875
      %v2973 = vpop.f32.mrf.mxu0
      %v2974 = vadd.f32 %v2915, %v2973
      %v2975 = vpop.f32.mrf.mxu0
      %v2976 = vadd.f32 %v2917, %v2975
      %2977 = vmatmul.bf16.gmra.mxu0 %v2877
      %v2978 = vpop.f32.mrf.mxu0
      %v2979 = vadd.f32 %v2920, %v2978
      %v2980 = vpop.f32.mrf.mxu0
      %v2981 = vadd.f32 %v2922, %v2980
      %2982 = vmatmul.bf16.gmra.mxu0 %v2879
      %v2983 = vpop.f32.mrf.mxu0
      %v2984 = vadd.f32 %v2925, %v2983
      %v2985 = vpop.f32.mrf.mxu0
      %v2986 = vadd.f32 %v2927, %v2985
      %2987 = vmatmul.bf16.gmra.mxu0 %v2881
      %v2988 = vpop.f32.mrf.mxu0
      %v2989 = vadd.f32 %v2930, %v2988
      %v2990 = vpop.f32.mrf.mxu0
      %v2991 = vadd.f32 %v2932, %v2990
      %2992 = vmatmul.bf16.gmra.mxu0 %v2883
      %v2993 = vpop.f32.mrf.mxu0
      %v2994 = vadd.f32 %v2935, %v2993
      %v2995 = vpop.f32.mrf.mxu0
      %v2996 = vadd.f32 %v2937, %v2995
      %2997 = vdwg.mxu0
      %v2999 = vshrl.u32 %v2390, 16
      %v3001 = vrot.slane %v2999, 4
      %v3002 = vshll.u32 %v2390, 16
      %v3004 = vrot.slane %v3002, 5
      %v3005 = vor.u32 %v3001, %v3004
      %v3006 = vrot.slane %v3005, 4
      %v3008 = vshll.u32 %v2391, 16
      %v3010 = vrot.slane %v3008, 5
      %v3011 = vsel %vm1038, %v3006, %v3010
      %v3012 = vshrl.u32 %v2391, 16
      %v3014 = vrot.slane %v3012, 4
      %v3015 = vor.u32 %v3014, %v3010
      %v3016 = vrot.slane %v3015, 4
      %v3018 = vshll.u32 %v2392, 16
      %v3020 = vrot.slane %v3018, 5
      %v3021 = vsel %vm1038, %v3016, %v3020
      %v3025 = vrot.slane %v2390, 5
      %v3026 = vrot.slane %v3025, 4
      %v3027 = vrot.slane %v2391, 5
      %v3028 = vsel %vm1311, %v3026, %v3027
      %v3029 = vrot.slane %v3027, 4
      %v3030 = vrot.slane %v2392, 5
      %v3031 = vsel %vm1311, %v3029, %v3030
      %v3032 = vunpack.c.l.b16 %v2390
      %v3033 = vunpack.c.l.b16 %v2391
      %v3034 = vpack.c.b16 %v3033, %v3032
      %v3035 = vunpack.c.l.b16 %v3011
      %v3036 = vunpack.c.l.b16 %v3021
      %v3037 = vpack.c.b16 %v3036, %v3035
      %3038 = vrot.lane.b32.xlu0 %v3037, 4
      %v3039 = vpop.permute.xlu0 %3038
      %v3040 = vunpack.c.l.b16 %v3028
      %v3041 = vunpack.c.l.b16 %v3031
      %v3042 = vpack.c.b16 %v3041, %v3040
      %3043 = vrot.lane.b32.xlu0 %v3042, 8
      %v3044 = vpop.permute.xlu0 %3043
      %v3047 = vsel %vm1512, %v3034, %v3039
      %v3049 = vsel %vm1543, %v3047, %v3044
      %s3050 = scalar_lea.vmem %s6, 16
      %v3051 = vld [vmem:[%s3050] sm:$0xf]
      %v3052 = vld [vmem:[%s3050 + $0x4] sm:$0x3]
      %v3055 = vunpack.c.l.b16 %v3051
      %v3056 = vunpack.c.l.b16 %v3052
      %v3057 = vpack.c.b16 %v3056, %v3055
      %v3058 = vsel %vm1626, %v3049, 0
      %v3061 = vsel %vm1647, %v3057, 0
      %3063 = vmatpush.bf16.msra.mxu0 0
      %3064 = vmatpush.bf16.msra.mxu0 0
      %3065 = vmatpush.bf16.msra.mxu0 0
      %3066 = vmatpush.bf16.msra.mxu0 0
      %3067 = vmatpush.bf16.msra.mxu0 0
      %3068 = vmatpush.bf16.msra.mxu0 0
      %3069 = vmatpush.bf16.msra.mxu0 0
      %3070 = vmatpush.bf16.msra.mxu0 %v3061
      %3071 = vmatmul.bf16.gmra.mxu0 %v2873
      %v3072 = vpop.f32.mrf.mxu0
      %v3073 = vadd.f32 0.0, %v3072
      %v3074 = vpop.f32.mrf.mxu0
      %v3075 = vadd.f32 0.0, %v3074
      %3076 = vmatmul.bf16.gmra.mxu0 %v2875
      %v3077 = vpop.f32.mrf.mxu0
      %v3078 = vadd.f32 0.0, %v3077
      %v3079 = vpop.f32.mrf.mxu0
      %v3080 = vadd.f32 0.0, %v3079
      %3081 = vmatmul.bf16.gmra.mxu0 %v2877
      %v3082 = vpop.f32.mrf.mxu0
      %v3083 = vadd.f32 0.0, %v3082
      %v3084 = vpop.f32.mrf.mxu0
      %v3085 = vadd.f32 0.0, %v3084
      %3086 = vmatmul.bf16.gmra.mxu0 %v2879
      %v3087 = vpop.f32.mrf.mxu0
      %v3088 = vadd.f32 0.0, %v3087
      %v3089 = vpop.f32.mrf.mxu0
      %v3090 = vadd.f32 0.0, %v3089
      %3091 = vmatmul.bf16.gmra.mxu0 %v2881
      %v3092 = vpop.f32.mrf.mxu0
      %v3093 = vadd.f32 0.0, %v3092
      %v3094 = vpop.f32.mrf.mxu0
      %v3095 = vadd.f32 0.0, %v3094
      %3096 = vmatmul.bf16.gmra.mxu0 %v2883
      %v3097 = vpop.f32.mrf.mxu0
      %v3098 = vadd.f32 0.0, %v3097
      %v3099 = vpop.f32.mrf.mxu0
      %v3100 = vadd.f32 0.0, %v3099
      %3101 = vmatmul.bf16.gmra.mxu0 %v2885
      %v3102 = vpop.f32.mrf.mxu0
      %v3103 = vadd.f32 0.0, %v3102
      %v3104 = vpop.f32.mrf.mxu0
      %v3105 = vadd.f32 0.0, %v3104
      %3106 = vmatmul.bf16.gmra.mxu0 %v3058
      %v3107 = vpop.f32.mrf.mxu0
      %v3108 = vadd.f32 0.0, %v3107
      %v3109 = vpop.f32.mrf.mxu0
      %v3110 = vadd.f32 0.0, %v3109
      %3111 = vdwg.mxu0
      %v3112 = vadd.f32 %v2959, %v3073
      %v3113 = vadd.f32 %v2961, %v3075
      %v3114 = vadd.f32 %v2964, %v3078
      %v3115 = vadd.f32 %v2966, %v3080
      %v3116 = vadd.f32 %v2969, %v3083
      %v3117 = vadd.f32 %v2971, %v3085
      %v3118 = vadd.f32 %v2974, %v3088
      %v3119 = vadd.f32 %v2976, %v3090
      %v3120 = vadd.f32 %v2979, %v3093
      %v3121 = vadd.f32 %v2981, %v3095
      %v3122 = vadd.f32 %v2984, %v3098
      %v3123 = vadd.f32 %v2986, %v3100
      %v3124 = vadd.f32 %v2989, %v3103
      %v3125 = vadd.f32 %v2991, %v3105
      %v3126 = vadd.f32 %v2994, %v3108
      %v3127 = vadd.f32 %v2996, %v3110
      %v3128 = vld [vmem:[%s7] sm:$0x1]
      %v3130 = vperm.slane %v3128, 0
      %v3132 = vmul.f32 %v3112, %v3130
      %v3133 = vmul.f32 %v3113, %v3130
      %v3134 = vmul.f32 %v3114, %v3130
      %v3135 = vmul.f32 %v3115, %v3130
      %v3136 = vmul.f32 %v3116, %v3130
      %v3137 = vmul.f32 %v3117, %v3130
      %v3138 = vmul.f32 %v3118, %v3130
      %v3139 = vmul.f32 %v3119, %v3130
      %v3140 = vmul.f32 %v3120, %v3130
      %v3141 = vmul.f32 %v3121, %v3130
      %v3142 = vmul.f32 %v3122, %v3130
      %v3143 = vmul.f32 %v3123, %v3130
      %v3144 = vmul.f32 %v3124, %v3130
      %v3145 = vmul.f32 %v3125, %v3130
      %v3146 = vmul.f32 %v3126, %v3130
      %v3147 = vmul.f32 %v3127, %v3130
      %v3148 = vld [vmem:[%s8] sm:$0x1]
      %v3150 = vperm.slane %v3148, 0
      %v3152 = vadd.f32 %v3132, %v3150
      %v3153 = vadd.f32 %v3133, %v3150
      %v3154 = vadd.f32 %v3134, %v3150
      %v3155 = vadd.f32 %v3135, %v3150
      %v3156 = vadd.f32 %v3136, %v3150
      %v3157 = vadd.f32 %v3137, %v3150
      %v3158 = vadd.f32 %v3138, %v3150
      %v3159 = vadd.f32 %v3139, %v3150
      %v3160 = vadd.f32 %v3140, %v3150
      %v3161 = vadd.f32 %v3141, %v3150
      %v3162 = vadd.f32 %v3142, %v3150
      %v3163 = vadd.f32 %v3143, %v3150
      %v3164 = vadd.f32 %v3144, %v3150
      %v3165 = vadd.f32 %v3145, %v3150
      %v3166 = vadd.f32 %v3146, %v3150
      %v3167 = vadd.f32 %v3147, %v3150
      %v3168 = vld [vmem:[%s460] sm:$0xf]
      %v3169 = vld [vmem:[%s460 + $0x4] sm:$0xf]
      %v3170 = vld [vmem:[%s460 + $0x8] sm:$0xf]
      %v3171 = vld [vmem:[%s460 + $0xc] sm:$0xf]
      %v3172 = vld [vmem:[%s460 + $0x10] sm:$0xf]
      %v3173 = vld [vmem:[%s460 + $0x14] sm:$0xf]
      %v3174 = vld [vmem:[%s460 + $0x18] sm:$0xf]
      %v3175 = vld [vmem:[%s460 + $0x1c] sm:$0xf]
      %v3176 = vld [vmem:[%s460 + $0x20] sm:$0xf]
      %v3177 = vld [vmem:[%s460 + $0x24] sm:$0xf]
      %v3178 = vld [vmem:[%s460 + $0x28] sm:$0xf]
      %v3179 = vld [vmem:[%s460 + $0x2c] sm:$0xf]
      %v3180 = vld [vmem:[%s460 + $0x30] sm:$0xf]
      %v3181 = vld [vmem:[%s460 + $0x34] sm:$0xf]
      %v3182 = vld [vmem:[%s460 + $0x38] sm:$0xf]
      %v3183 = vld [vmem:[%s460 + $0x3c] sm:$0xf]
      %v3184 = vunpack.c.l.bf16 %v3168
      %v3185 = vunpack.c.l.bf16 %v3169
      %v3186 = vunpack.c.l.bf16 %v3170
      %v3187 = vunpack.c.l.bf16 %v3171
      %v3188 = vunpack.c.l.bf16 %v3172
      %v3189 = vunpack.c.l.bf16 %v3173
      %v3190 = vunpack.c.l.bf16 %v3174
      %v3191 = vunpack.c.l.bf16 %v3175
      %v3192 = vunpack.c.l.bf16 %v3176
      %v3193 = vunpack.c.l.bf16 %v3177
      %v3194 = vunpack.c.l.bf16 %v3178
      %v3195 = vunpack.c.l.bf16 %v3179
      %v3196 = vunpack.c.l.bf16 %v3180
      %v3197 = vunpack.c.l.bf16 %v3181
      %v3198 = vunpack.c.l.bf16 %v3182
      %v3199 = vunpack.c.l.bf16 %v3183
      %v3200 = vadd.f32 %v3152, %v3184
      %v3201 = vadd.f32 %v3153, %v3185
      %v3202 = vadd.f32 %v3154, %v3186
      %v3203 = vadd.f32 %v3155, %v3187
      %v3204 = vadd.f32 %v3156, %v3188
      %v3205 = vadd.f32 %v3157, %v3189
      %v3206 = vadd.f32 %v3158, %v3190
      %v3207 = vadd.f32 %v3159, %v3191
      %v3208 = vadd.f32 %v3160, %v3192
      %v3209 = vadd.f32 %v3161, %v3193
      %v3210 = vadd.f32 %v3162, %v3194
      %v3211 = vadd.f32 %v3163, %v3195
      %v3212 = vadd.f32 %v3164, %v3196
      %v3213 = vadd.f32 %v3165, %v3197
      %v3214 = vadd.f32 %v3166, %v3198
      %v3215 = vadd.f32 %v3167, %v3199
      %v3216 = vmax.f32 %v3200, 0.0
      %v3217 = vmax.f32 %v3201, 0.0
      %v3218 = vmax.f32 %v3202, 0.0
      %v3219 = vmax.f32 %v3203, 0.0
      %v3220 = vmax.f32 %v3204, 0.0
      %v3221 = vmax.f32 %v3205, 0.0
      %v3222 = vmax.f32 %v3206, 0.0
      %v3223 = vmax.f32 %v3207, 0.0
      %v3224 = vmax.f32 %v3208, 0.0
      %v3225 = vmax.f32 %v3209, 0.0
      %v3226 = vmax.f32 %v3210, 0.0
      %v3227 = vmax.f32 %v3211, 0.0
      %v3228 = vmax.f32 %v3212, 0.0
      %v3229 = vmax.f32 %v3213, 0.0
      %v3230 = vmax.f32 %v3214, 0.0
      %v3231 = vmax.f32 %v3215, 0.0
      %3232 = vst.msk [vmem:[%s509] sm:$0xff] %vm1512, %v3216
      %3233 = vst.msk [vmem:[%s509 + $0x8] sm:$0xff] %vm1512, %v3217
      %3234 = vst.msk [vmem:[%s509 + $0x10] sm:$0xff] %vm1512, %v3218
      %3235 = vst.msk [vmem:[%s509 + $0x18] sm:$0xff] %vm1512, %v3219
      %3236 = vst.msk [vmem:[%s509 + $0x20] sm:$0xff] %vm1512, %v3220
      %3237 = vst.msk [vmem:[%s509 + $0x28] sm:$0xff] %vm1512, %v3221
      %3238 = vst.msk [vmem:[%s509 + $0x30] sm:$0xff] %vm1512, %v3222
      %3239 = vst.msk [vmem:[%s509 + $0x38] sm:$0xff] %vm1512, %v3223
      %3240 = vst.msk [vmem:[%s509 + $0x40] sm:$0xff] %vm1512, %v3224
      %3241 = vst.msk [vmem:[%s509 + $0x48] sm:$0xff] %vm1512, %v3225
      %3242 = vst.msk [vmem:[%s509 + $0x50] sm:$0xff] %vm1512, %v3226
      %3243 = vst.msk [vmem:[%s509 + $0x58] sm:$0xff] %vm1512, %v3227
      %3244 = vst.msk [vmem:[%s509 + $0x60] sm:$0xff] %vm1512, %v3228
      %3245 = vst.msk [vmem:[%s509 + $0x68] sm:$0xff] %vm1512, %v3229
      %3246 = vst.msk [vmem:[%s509 + $0x70] sm:$0xff] %vm1512, %v3230
      %3247 = vst.msk [vmem:[%s509 + $0x78] sm:$0xff] %vm1512, %v3231
      %s3248 = smul.u32 8, %s25
      %p3249 = scmp.lt.s32.totalorder %s24, 1
      %s3250 = scalar_select %p3249, %s24, 1
      %p3251 = scmp.lt.s32.totalorder %s3248, 15
      %s3252 = scalar_select %p3251, %s3248, 15
      %s3253 = smul.addr %s3252, 2
      %s3254 = smul.addr %s3250, 32
      %s3255 = sadd.s32 %s3253, %s3254
      %s3256 = smul.addr %s3255, 8
      %s3257 = scalar_lea.vmem %s9, %s3256
      // Predicated region
      $region61: #{basic_block_pallas.1} parent=55 // pred_check
        %p3258 = pneg %p278
      $region62: #{basic_block_pallas.1} parent=55 // pred_check_branch
        %3260 = sbr.rel (%p3258) target = $region64
      $region63: #{basic_block_pallas.1} parent=55 // pred_region
        %s3261 = smul.u32 8, %s25
      $region64: #{basic_block_pallas.1} parent=55 // pred_fallthru
        _
    $region56: #{basic_block_pallas.1} parent=5 // pred_fallthru
      _
    %p3262 = scmp.le.s32.totalorder 2, %s15
    // Predicated region
    $region65: #{basic_block_pallas.1} parent=5 // pred_check
      %p3263 = pneg %p3262
    $region66: #{basic_block_pallas.1} parent=5 // pred_check_branch
      %3265 = sbr.rel (%p3263) target = $region68
    $region67: #{basic_block_pallas.1} parent=5 // pred_region
      %s3266 = ssub.s32 %s15, 2
      // Predicated region
      $region69: #{basic_block_pallas.1} parent=67 // pred_check
        %p3267 = pneg %p284
      $region70: #{basic_block_pallas.1} parent=67 // pred_check_branch
        %3269 = sbr.rel (%p3267) target = $region72
      $region71: #{basic_block_pallas.1} parent=67 // pred_region
        %s3270 = smul.u32 8, %s27
        %p3271 = scmp.lt.s32.totalorder %s26, 1
        %s3272 = scalar_select %p3271, %s26, 1
        %p3273 = scmp.lt.s32.totalorder %s3270, 15
        %s3274 = scalar_select %p3273, %s3270, 15
        %s3275 = smul.addr %s3274, 2
        %s3276 = smul.addr %s3272, 32
        %s3277 = sadd.s32 %s3275, %s3276
        %s3278 = smul.addr %s3277, 8
        %s3279 = scalar_lea.vmem %s9, %s3278
      $region72: #{basic_block_pallas.1} parent=67 // pred_fallthru
        _
    $region68: #{basic_block_pallas.1} parent=5 // pred_fallthru
      _
  $region6: #{basic_block_pallas.1} parent=0 // loop_footer
    %s19 = sadd.s32 1, %s15
  $region7: #{basic_block_pallas.1} parent=0 // loop_footer_branch
    %14 = sbr.rel target = $region3
  $region8: #{basic_block_pallas.1} parent=0 // loop_exit
    _

</llo_original>
